<compile_context>
chip_gen: v7x
topology: tpu7x:2x2x1
jax: 0.10.0
libtpu: 0.0.40
codegen_flags: <defaults>
</compile_context>

<pallas_src>
import functools

import jax
import jax.numpy as jnp
from jax.experimental import pallas as pl
from jax.experimental.pallas import tpu as pltpu

INPUT_DIM = 784
HIDDEN_DIM = 400
LATENT_DIM = 20

HID_PAD = 512          # 4 * 128 (hidden lane pad)
LATENT_PAD = 64        # mu lives in lanes [0:64], log_var in lanes [64:128]
HEAD = 2 * LATENT_PAD  # 128: fused mu|log_var head, lane-dense
IN_PAD = 896           # 7 * 128 (decoder output lane pad -> unmasked, lane-dense stores)


def _round_up(n, m):
    return ((n + m - 1) // m) * m


def _default_batch_tile(b):
    """Amortize per-grid-step overhead; keep >=2 grid steps when the batch allows
    (megacore on v7x); align tiny batches to the bf16 sublane tile (16)."""
    if b >= 1024:
        return 512
    if b >= 512:
        return 256
    if b >= 256:
        return 128
    return _round_up(b, 16)


def _epilogue_dtype():
    """bf16 transcendental epilogue on v6e/v7x; f32 elsewhere (v5e/v4 have no bf16 EUP)."""
    try:
        kind = jax.devices()[0].device_kind.lower()
    except Exception:
        return jnp.float32
    return jnp.bfloat16 if ("v6" in kind or "v7" in kind) else jnp.float32


def _vae_fwd_kernel(
    x_ref, eps_ref,
    w1_ref, b1_ref,            # (784, HID_PAD) bf16, (1, HID_PAD) f32
    w2_ref, b2_ref,            # fused mu|log_var head: (HID_PAD, HEAD) bf16, (1, HEAD) f32
    w3_ref, b3_ref,            # (HEAD, HID_PAD) bf16 (rows >= 20 are zero), (1, HID_PAD) f32
    w4_ref, b4_ref,            # (HID_PAD, IN_PAD) bf16, (1, IN_PAD) f32
    out_ref, head_ref,
    *, epilogue_dtype,
):
    f32, bf16 = jnp.float32, jnp.bfloat16

    x = x_ref[...].astype(bf16)                                # (BT, 784)
    eps = eps_ref[...]                                         # (BT, HEAD) f32, zeros beyond lane 20

    # ---- encoder ----
    h1 = jnp.dot(x, w1_ref[...], preferred_element_type=f32) + b1_ref[...]
    h1 = jnp.maximum(h1, 0.0)                                  # ReLU (f32)

    # fused mu / log_var head: one lane-dense (BT, 128) result
    y = jnp.dot(h1.astype(bf16), w2_ref[...], preferred_element_type=f32) + b2_ref[...]

    # ---- reparameterize (128-lane dense; no lane-64 slices) ----
    # roll by 64 swaps halves so log_var aligns with mu.  Lanes [64:128] of z end up
    # holding log_var values, which w3's zero rows kill in the decoder matmul.
    log_var_aligned = pltpu.roll(y, shift=LATENT_PAD, axis=1)
    z = y + eps * jnp.exp(0.5 * log_var_aligned)

    # ---- decoder ----
    h2 = jnp.dot(z.astype(bf16), w3_ref[...], preferred_element_type=f32) + b3_ref[...]
    h2 = jnp.maximum(h2, 0.0)                                  # ReLU

    logits = jnp.dot(h2.astype(bf16), w4_ref[...], preferred_element_type=f32) + b4_ref[...]
    recon = jax.nn.sigmoid(logits.astype(epilogue_dtype))      # Sigmoid (bf16 EUP on v6e/v7x)

    out_ref[...] = recon.astype(out_ref.dtype)                 # (BT, IN_PAD) bf16, lane-dense
    head_ref[...] = y.astype(head_ref.dtype)                   # (BT, HEAD) f32, lane-dense


def prepare_params(p):
    """Pre-transpose to (in, out), pad to lane multiples, cast weights to bf16.

    The encoder's second Linear (hidden -> 2*latent) stays fused: mu rows land in
    lanes [0:20] and log_var rows in lanes [64:84] of one padded weight.  Padding
    rows/cols are zero, so padded outputs are exactly zero.  w3 gets 128 rows so the
    full 128-lane z (whose upper half carries log_var garbage) can be used directly.
    """
    f32, bf16 = jnp.float32, jnp.bfloat16

    w1t = jnp.zeros((INPUT_DIM, HID_PAD), bf16).at[:, :HIDDEN_DIM].set(
        p["w1"].T.astype(bf16))
    b1p = jnp.zeros((1, HID_PAD), f32).at[0, :HIDDEN_DIM].set(p["b1"])

    w2t = jnp.zeros((HID_PAD, HEAD), bf16)
    w2t = w2t.at[:HIDDEN_DIM, :LATENT_DIM].set(p["w2"][:LATENT_DIM].T.astype(bf16))
    w2t = w2t.at[:HIDDEN_DIM, LATENT_PAD:LATENT_PAD + LATENT_DIM].set(
        p["w2"][LATENT_DIM:].T.astype(bf16))
    b2p = jnp.zeros((1, HEAD), f32)
    b2p = b2p.at[0, :LATENT_DIM].set(p["b2"][:LATENT_DIM])
    b2p = b2p.at[0, LATENT_PAD:LATENT_PAD + LATENT_DIM].set(p["b2"][LATENT_DIM:])

    w3t = jnp.zeros((HEAD, HID_PAD), bf16).at[:LATENT_DIM, :HIDDEN_DIM].set(
        p["w3"].T.astype(bf16))
    b3p = jnp.zeros((1, HID_PAD), f32).at[0, :HIDDEN_DIM].set(p["b3"])

    w4t = jnp.zeros((HID_PAD, IN_PAD), bf16).at[:HIDDEN_DIM, :INPUT_DIM].set(
        p["w4"].T.astype(bf16))
    b4p = jnp.zeros((1, IN_PAD), f32).at[0, :INPUT_DIM].set(p["b4"])

    return dict(w1t=w1t, b1p=b1p, w2t=w2t, b2p=b2p,
                w3t=w3t, b3p=b3p, w4t=w4t, b4p=b4p)


def vae_forward(x, eps, prepped, *, batch_tile=None):
    """Full VAE forward.  Grid over batch tiles; weights stay resident in VMEM.

    Returns (recon[bf16], mu[f32], log_var[f32]).  recon is stored as bf16 to halve
    the dominant HBM write stream; cast in the caller if f32 is needed.  mu/log_var
    stay f32 (they usually feed the KL term).
    """
    B = x.shape[0]
    BT = batch_tile if batch_tile is not None else _default_batch_tile(B)
    Bp = _round_up(B, BT)

    # Batch-pad only when needed.  No 784->896 lane pad and no wrapper-side cast of x:
    # the kernel reads the full 784-lane block and casts to bf16 in-register.
    x_p = x if Bp == B else jnp.pad(x, ((0, Bp - B), (0, 0)))
    eps_p = jnp.zeros((Bp, HEAD), jnp.float32).at[:B, :LATENT_DIM].set(
        eps.astype(jnp.float32))

    def w_spec(shape):
        # Resident across all batch tiles (constant index_map -> DMA'd once).
        # TODO(synk): pipeline_mode=pl.Buffered(1) would drop the unused second weight
        # buffer (~2 MiB VMEM headroom); left at the default for portability.
        return pl.BlockSpec(shape, lambda i: (0, 0))

    grid = (Bp // BT,)
    in_specs = [
        pl.BlockSpec((BT, INPUT_DIM), lambda i: (i, 0)),       # x (full 784 lane dim)
        pl.BlockSpec((BT, HEAD), lambda i: (i, 0)),            # eps (lane-padded to 128)
        w_spec((INPUT_DIM, HID_PAD)), w_spec((1, HID_PAD)),    # w1, b1
        w_spec((HID_PAD, HEAD)), w_spec((1, HEAD)),            # fused mu|log_var head
        w_spec((HEAD, HID_PAD)), w_spec((1, HID_PAD)),         # w3, b3
        w_spec((HID_PAD, IN_PAD)), w_spec((1, IN_PAD)),        # w4, b4
    ]
    out_specs = (
        pl.BlockSpec((BT, IN_PAD), lambda i: (i, 0)),
        pl.BlockSpec((BT, HEAD), lambda i: (i, 0)),
    )
    out_shape = (
        jax.ShapeDtypeStruct((Bp, IN_PAD), jnp.bfloat16),      # recon: bf16 writeback
        jax.ShapeDtypeStruct((Bp, HEAD), jnp.float32),         # mu|log_var head: f32
    )

    # Advisory cost so XLA can overlap surrounding ops (loss / KL term) with the call.
    mm_terms = (INPUT_DIM * HID_PAD + HID_PAD * HEAD + HEAD * HID_PAD + HID_PAD * IN_PAD)
    flops = 2 * Bp * mm_terms
    transcendentals = Bp * (IN_PAD + HEAD)
    weight_bytes = 2 * mm_terms + 4 * (2 * HID_PAD + HEAD + IN_PAD)
    bytes_accessed = (Bp * INPUT_DIM * x_p.dtype.itemsize      # x read
                      + Bp * HEAD * 4                          # eps read
                      + weight_bytes                           # resident weights
                      + Bp * IN_PAD * 2 + Bp * HEAD * 4)       # recon + head writes

    # v5e's default scoped VMEM is 16 MiB; big tiles need an explicit 32 MiB limit
    # (still <= the v6e/v7x defaults, and well below physical VMEM everywhere).
    vmem_limit = 32 * 1024 * 1024 if BT >= 256 else None

    recon_p, head = pl.pallas_call(
        functools.partial(_vae_fwd_kernel, epilogue_dtype=_epilogue_dtype()),
        grid=grid,
        in_specs=in_specs,
        out_specs=out_specs,
        out_shape=out_shape,
        compiler_params=pltpu.CompilerParams(
            dimension_semantics=("parallel",),
            vmem_limit_bytes=vmem_limit,
        ),
        cost_estimate=pl.CostEstimate(
            flops=flops,
            transcendentals=transcendentals,
            bytes_accessed=bytes_accessed),
    )(
        x_p, eps_p,
        prepped["w1t"], prepped["b1p"],
        prepped["w2t"], prepped["b2p"],
        prepped["w3t"], prepped["b3p"],
        prepped["w4t"], prepped["b4p"],
    )

    recon = recon_p[:B, :INPUT_DIM]
    mu = head[:B, :LATENT_DIM]
    log_var = head[:B, LATENT_PAD:LATENT_PAD + LATENT_DIM]
    return recon, mu, log_var


def init_params(key):
    """Parameter init matching the nn.Module shapes (PyTorch (out, in) Linear layout)."""
    ks = jax.random.split(key, 8)
    scale = 0.05
    return {
        "w1": scale * jax.random.normal(ks[0], (HIDDEN_DIM, INPUT_DIM), jnp.float32),
        "b1": scale * jax.random.normal(ks[1], (HIDDEN_DIM,), jnp.float32),
        "w2": scale * jax.random.normal(ks[2], (2 * LATENT_DIM, HIDDEN_DIM), jnp.float32),
        "b2": scale * jax.random.normal(ks[3], (2 * LATENT_DIM,), jnp.float32),
        "w3": scale * jax.random.normal(ks[4], (HIDDEN_DIM, LATENT_DIM), jnp.float32),
        "b3": scale * jax.random.normal(ks[5], (HIDDEN_DIM,), jnp.float32),
        "w4": scale * jax.random.normal(ks[6], (INPUT_DIM, HIDDEN_DIM), jnp.float32),
        "b4": scale * jax.random.normal(ks[7], (INPUT_DIM,), jnp.float32),
    }


def vae_forward_ref(x, eps, p):
    """Pure-JAX f32 reference matching the PyTorch forward."""
    h1 = jnp.maximum(x @ p["w1"].T + p["b1"], 0.0)
    h = h1 @ p["w2"].T + p["b2"]
    mu, log_var = h[:, :LATENT_DIM], h[:, LATENT_DIM:]
    z = mu + eps * jnp.exp(0.5 * log_var)
    h2 = jnp.maximum(z @ p["w3"].T + p["b3"], 0.0)
    recon = jax.nn.sigmoid(h2 @ p["w4"].T + p["b4"])
    return recon, mu, log_var


if __name__ == "__main__":
    key = jax.random.PRNGKey(0)
    k_param, k_x, k_eps = jax.random.split(key, 3)

    B = 8
    params = init_params(k_param)
    prepped = prepare_params(params)

    x = jax.random.uniform(k_x, (B, INPUT_DIM), jnp.float32)    # pixel-like inputs in [0,1)
    # TODO(synk): torch.randn_like(std) is sampled outside the kernel as a deterministic eps input.
    eps = jax.random.normal(k_eps, (B, LATENT_DIM), jnp.float32)

    recon, mu, log_var = vae_forward(x, eps, prepped)
    jax.block_until_ready((recon, mu, log_var))

    r_ref, mu_ref, lv_ref = vae_forward_ref(x, eps, params)
    # bf16 weights/activations on the MXU path + bf16 recon store -> loosened tolerances.
    assert jnp.allclose(recon.astype(jnp.float32), r_ref, atol=2e-2, rtol=2e-2)
    assert jnp.allclose(mu, mu_ref, atol=2e-2, rtol=2e-2)
    assert jnp.allclose(log_var, lv_ref, atol=2e-2, rtol=2e-2)

    print("KERNEL_OK")
</pallas_src>

<mosaic_0001>
module attributes {stable_mosaic.version = 11 : i64} {
  func.func @_vae_fwd_kernel(%arg0: i32, %arg1: memref<16x784xf32, #tpu.memory_space<vmem>>, %arg2: memref<16x128xf32, #tpu.memory_space<vmem>>, %arg3: memref<784x512xbf16, #tpu.memory_space<vmem>>, %arg4: memref<1x512xf32, #tpu.memory_space<vmem>>, %arg5: memref<512x128xbf16, #tpu.memory_space<vmem>>, %arg6: memref<1x128xf32, #tpu.memory_space<vmem>>, %arg7: memref<128x512xbf16, #tpu.memory_space<vmem>>, %arg8: memref<1x512xf32, #tpu.memory_space<vmem>>, %arg9: memref<512x896xbf16, #tpu.memory_space<vmem>>, %arg10: memref<1x896xf32, #tpu.memory_space<vmem>>, %arg11: memref<16x896xbf16, #tpu.memory_space<vmem>>, %arg12: memref<16x128xf32, #tpu.memory_space<vmem>>) attributes {dimension_semantics = [#tpu.dimension_semantics<parallel>], iteration_bounds = array<i64: 1>, scalar_prefetch = 0 : i64, scratch_operands = 0 : i64, tpu.core_type = #tpu.core_type<tc>, window_params = [{transform_indices = @transform_0, window_bounds = array<i64: 16, 784>}, {transform_indices = @transform_1, window_bounds = array<i64: 16, 128>}, {pipeline_mode = #tpu.pipeline_mode<synchronous>, transform_indices = @transform_2, window_bounds = array<i64: 784, 512>}, {pipeline_mode = #tpu.pipeline_mode<synchronous>, transform_indices = @transform_3, window_bounds = array<i64: 1, 512>}, {pipeline_mode = #tpu.pipeline_mode<synchronous>, transform_indices = @transform_4, window_bounds = array<i64: 512, 128>}, {pipeline_mode = #tpu.pipeline_mode<synchronous>, transform_indices = @transform_5, window_bounds = array<i64: 1, 128>}, {pipeline_mode = #tpu.pipeline_mode<synchronous>, transform_indices = @transform_6, window_bounds = array<i64: 128, 512>}, {pipeline_mode = #tpu.pipeline_mode<synchronous>, transform_indices = @transform_7, window_bounds = array<i64: 1, 512>}, {pipeline_mode = #tpu.pipeline_mode<synchronous>, transform_indices = @transform_8, window_bounds = array<i64: 512, 896>}, {pipeline_mode = #tpu.pipeline_mode<synchronous>, transform_indices = @transform_9, window_bounds = array<i64: 1, 896>}, {transform_indices = @transform_10, window_bounds = array<i64: 16, 896>}, {transform_indices = @transform_11, window_bounds = array<i64: 16, 128>}]} {
    %c0 = arith.constant 0 : index
    %c0_0 = arith.constant 0 : index
    %0 = vector.load %arg1[%c0, %c0_0] : memref<16x784xf32, #tpu.memory_space<vmem>>, vector<16x784xf32>
    %1 = arith.truncf %0 : vector<16x784xf32> to vector<16x784xbf16>
    %c0_1 = arith.constant 0 : index
    %c0_2 = arith.constant 0 : index
    %2 = vector.load %arg2[%c0_1, %c0_2] : memref<16x128xf32, #tpu.memory_space<vmem>>, vector<16x128xf32>
    %c0_3 = arith.constant 0 : index
    %c0_4 = arith.constant 0 : index
    %3 = vector.load %arg3[%c0_3, %c0_4] : memref<784x512xbf16, #tpu.memory_space<vmem>>, vector<784x512xbf16>
    %cst = arith.constant dense<0.000000e+00> : vector<16x512xf32>
    %4 = tpu.matmul %1, %3, %cst {dimension_numbers = #tpu.dot_dimension_numbers<[1], [0], [0], [1], [0, 0, 1, 1], [], []>} : vector<16x784xbf16>, vector<784x512xbf16>, vector<16x512xf32> -> vector<16x512xf32>
    %c0_5 = arith.constant 0 : index
    %c0_6 = arith.constant 0 : index
    %5 = vector.load %arg4[%c0_5, %c0_6] : memref<1x512xf32, #tpu.memory_space<vmem>>, vector<1x512xf32>
    %6 = vector.broadcast %5 : vector<1x512xf32> to vector<16x512xf32>
    %7 = arith.addf %4, %6 : vector<16x512xf32>
    %cst_7 = arith.constant 0.000000e+00 : f32
    %8 = vector.broadcast %cst_7 : f32 to vector<16x512xf32>
    %9 = arith.maximumf %7, %8 : vector<16x512xf32>
    %10 = arith.truncf %9 : vector<16x512xf32> to vector<16x512xbf16>
    %c0_8 = arith.constant 0 : index
    %c0_9 = arith.constant 0 : index
    %11 = vector.load %arg5[%c0_8, %c0_9] : memref<512x128xbf16, #tpu.memory_space<vmem>>, vector<512x128xbf16>
    %cst_10 = arith.constant dense<0.000000e+00> : vector<16x128xf32>
    %12 = tpu.matmul %10, %11, %cst_10 {dimension_numbers = #tpu.dot_dimension_numbers<[1], [0], [0], [1], [0, 0, 1, 1], [], []>} : vector<16x512xbf16>, vector<512x128xbf16>, vector<16x128xf32> -> vector<16x128xf32>
    %c0_11 = arith.constant 0 : index
    %c0_12 = arith.constant 0 : index
    %13 = vector.load %arg6[%c0_11, %c0_12] : memref<1x128xf32, #tpu.memory_space<vmem>>, vector<1x128xf32>
    %14 = vector.broadcast %13 : vector<1x128xf32> to vector<16x128xf32>
    %15 = arith.addf %12, %14 : vector<16x128xf32>
    %c64_i32 = arith.constant 64 : i32
    %16 = tpu.dynamic_rotate %15 by %c64_i32 dim 1 : vector<16x128xf32>, i32 -> vector<16x128xf32>
    %cst_13 = arith.constant 5.000000e-01 : f32
    %17 = vector.broadcast %cst_13 : f32 to vector<16x128xf32>
    %18 = arith.mulf %17, %16 : vector<16x128xf32>
    %19 = math.exp %18 : vector<16x128xf32>
    %20 = arith.mulf %2, %19 : vector<16x128xf32>
    %21 = arith.addf %15, %20 : vector<16x128xf32>
    %22 = arith.truncf %21 : vector<16x128xf32> to vector<16x128xbf16>
    %c0_14 = arith.constant 0 : index
    %c0_15 = arith.constant 0 : index
    %23 = vector.load %arg7[%c0_14, %c0_15] : memref<128x512xbf16, #tpu.memory_space<vmem>>, vector<128x512xbf16>
    %cst_16 = arith.constant dense<0.000000e+00> : vector<16x512xf32>
    %24 = tpu.matmul %22, %23, %cst_16 {dimension_numbers = #tpu.dot_dimension_numbers<[1], [0], [0], [1], [0, 0, 1, 1], [], []>} : vector<16x128xbf16>, vector<128x512xbf16>, vector<16x512xf32> -> vector<16x512xf32>
    %c0_17 = arith.constant 0 : index
    %c0_18 = arith.constant 0 : index
    %25 = vector.load %arg8[%c0_17, %c0_18] : memref<1x512xf32, #tpu.memory_space<vmem>>, vector<1x512xf32>
    %26 = vector.broadcast %25 : vector<1x512xf32> to vector<16x512xf32>
    %27 = arith.addf %24, %26 : vector<16x512xf32>
    %cst_19 = arith.constant 0.000000e+00 : f32
    %28 = vector.broadcast %cst_19 : f32 to vector<16x512xf32>
    %29 = arith.maximumf %27, %28 : vector<16x512xf32>
    %30 = arith.truncf %29 : vector<16x512xf32> to vector<16x512xbf16>
    %c0_20 = arith.constant 0 : index
    %c0_21 = arith.constant 0 : index
    %31 = vector.load %arg9[%c0_20, %c0_21] : memref<512x896xbf16, #tpu.memory_space<vmem>>, vector<512x896xbf16>
    %cst_22 = arith.constant dense<0.000000e+00> : vector<16x896xf32>
    %32 = tpu.matmul %30, %31, %cst_22 {dimension_numbers = #tpu.dot_dimension_numbers<[1], [0], [0], [1], [0, 0, 1, 1], [], []>} : vector<16x512xbf16>, vector<512x896xbf16>, vector<16x896xf32> -> vector<16x896xf32>
    %c0_23 = arith.constant 0 : index
    %c0_24 = arith.constant 0 : index
    %33 = vector.load %arg10[%c0_23, %c0_24] : memref<1x896xf32, #tpu.memory_space<vmem>>, vector<1x896xf32>
    %34 = vector.broadcast %33 : vector<1x896xf32> to vector<16x896xf32>
    %35 = arith.addf %32, %34 : vector<16x896xf32>
    %36 = arith.negf %35 : vector<16x896xf32>
    %37 = math.exp %36 : vector<16x896xf32>
    %cst_25 = arith.constant 1.000000e+00 : f32
    %38 = vector.broadcast %cst_25 : f32 to vector<16x896xf32>
    %39 = arith.addf %38, %37 : vector<16x896xf32>
    %40 = arith.divf %38, %39 : vector<16x896xf32>
    %41 = arith.truncf %40 : vector<16x896xf32> to vector<16x896xbf16>
    %c0_26 = arith.constant 0 : index
    %c0_27 = arith.constant 0 : index
    %42 = vector.load %arg11[%c0_26, %c0_27] : memref<16x896xbf16, #tpu.memory_space<vmem>>, vector<16x896xbf16>
    tpu.vector_store %arg11[%c0_26, %c0_27], %41 {strides = array<i32>} : memref<16x896xbf16, #tpu.memory_space<vmem>>, vector<16x896xbf16>,
    %c0_28 = arith.constant 0 : index
    %c0_29 = arith.constant 0 : index
    %43 = vector.load %arg12[%c0_28, %c0_29] : memref<16x128xf32, #tpu.memory_space<vmem>>, vector<16x128xf32>
    tpu.vector_store %arg12[%c0_28, %c0_29], %15 {strides = array<i32>} : memref<16x128xf32, #tpu.memory_space<vmem>>, vector<16x128xf32>,
    return
  }
  func.func @transform_0(%arg0: i32) -> (i32, i32) {
    %c0_i32 = arith.constant 0 : i32
    %c0_i32_0 = arith.constant 0 : i32
    return %arg0, %c0_i32 : i32, i32
  }
  func.func @transform_1(%arg0: i32) -> (i32, i32) {
    %c0_i32 = arith.constant 0 : i32
    %c0_i32_0 = arith.constant 0 : i32
    return %arg0, %c0_i32 : i32, i32
  }
  func.func @transform_2(%arg0: i32) -> (i32, i32) {
    %c0_i32 = arith.constant 0 : i32
    %c0_i32_0 = arith.constant 0 : i32
    %c0_i32_1 = arith.constant 0 : i32
    return %c0_i32, %c0_i32_0 : i32, i32
  }
  func.func @transform_3(%arg0: i32) -> (i32, i32) {
    %c0_i32 = arith.constant 0 : i32
    %c0_i32_0 = arith.constant 0 : i32
    %c0_i32_1 = arith.constant 0 : i32
    return %c0_i32, %c0_i32_0 : i32, i32
  }
  func.func @transform_4(%arg0: i32) -> (i32, i32) {
    %c0_i32 = arith.constant 0 : i32
    %c0_i32_0 = arith.constant 0 : i32
    %c0_i32_1 = arith.constant 0 : i32
    return %c0_i32, %c0_i32_0 : i32, i32
  }
  func.func @transform_5(%arg0: i32) -> (i32, i32) {
    %c0_i32 = arith.constant 0 : i32
    %c0_i32_0 = arith.constant 0 : i32
    %c0_i32_1 = arith.constant 0 : i32
    return %c0_i32, %c0_i32_0 : i32, i32
  }
  func.func @transform_6(%arg0: i32) -> (i32, i32) {
    %c0_i32 = arith.constant 0 : i32
    %c0_i32_0 = arith.constant 0 : i32
    %c0_i32_1 = arith.constant 0 : i32
    return %c0_i32, %c0_i32_0 : i32, i32
  }
  func.func @transform_7(%arg0: i32) -> (i32, i32) {
    %c0_i32 = arith.constant 0 : i32
    %c0_i32_0 = arith.constant 0 : i32
    %c0_i32_1 = arith.constant 0 : i32
    return %c0_i32, %c0_i32_0 : i32, i32
  }
  func.func @transform_8(%arg0: i32) -> (i32, i32) {
    %c0_i32 = arith.constant 0 : i32
    %c0_i32_0 = arith.constant 0 : i32
    %c0_i32_1 = arith.constant 0 : i32
    return %c0_i32, %c0_i32_0 : i32, i32
  }
  func.func @transform_9(%arg0: i32) -> (i32, i32) {
    %c0_i32 = arith.constant 0 : i32
    %c0_i32_0 = arith.constant 0 : i32
    %c0_i32_1 = arith.constant 0 : i32
    return %c0_i32, %c0_i32_0 : i32, i32
  }
  func.func @transform_10(%arg0: i32) -> (i32, i32) {
    %c0_i32 = arith.constant 0 : i32
    %c0_i32_0 = arith.constant 0 : i32
    return %arg0, %c0_i32 : i32, i32
  }
  func.func @transform_11(%arg0: i32) -> (i32, i32) {
    %c0_i32 = arith.constant 0 : i32
    %c0_i32_0 = arith.constant 0 : i32
    return %arg0, %c0_i32 : i32, i32
  }
}

</mosaic_0001>

<llo_original>
// kernel: tpu_custom_call.1
$region0: #{tpu_custom_call.1}
  #allocation0 [shape = 'u32[]', space=smem, size = 0x4, offset = 0x4, fixed_abs, tag = 'smem constant byte address 0x4 - core index']
  #allocation1 [shape = 'u32[144,128]{1,0:T(1,128)}', space=vmem, size = 0x12000, scoped, tag = 'internal scratch']
  %s0 = inlined_call_operand.hbm [shape: f32[16,784], index: 0, kind: input, shape index: {}]
  %s1 = inlined_call_operand.hbm [shape: f32[16,128], index: 1, kind: input, shape index: {}]
  %s2 = inlined_call_operand.hbm [shape: bf16[784,512], index: 2, kind: input, shape index: {}]
  %s3 = inlined_call_operand.vmem [shape: f32[1,512], index: 3, kind: input, shape index: {}]
  %s4 = inlined_call_operand.hbm [shape: bf16[512,128], index: 4, kind: input, shape index: {}]
  %s5 = inlined_call_operand.vmem [shape: f32[1,128], index: 5, kind: input, shape index: {}]
  %s6 = inlined_call_operand.hbm [shape: bf16[128,512], index: 6, kind: input, shape index: {}]
  %s7 = inlined_call_operand.vmem [shape: f32[1,512], index: 7, kind: input, shape index: {}]
  %s8 = inlined_call_operand.hbm [shape: bf16[512,896], index: 8, kind: input, shape index: {}]
  %s9 = inlined_call_operand.vmem [shape: f32[1,896], index: 9, kind: input, shape index: {}]
  %s10 = inlined_call_operand.hbm [shape: bf16[16,896], index: 10, kind: output, shape index: {0}]
  %s11 = inlined_call_operand.hbm [shape: f32[16,128], index: 11, kind: output, shape index: {1}]
  %12 = xla_tuple %s10, %s11
  %s13 = sld [smem:[#allocation0]]
  $region82: #{tpu_custom_call.1} parent=0
    _
  %s15 = ssub.s32 1, %s13
  %s16 = scalar_select 0, %s15, %s13
  $region1: #{tpu_custom_call.1} parent=0
    #allocation2 [shape = 'u8[57344]{0}', space=vmem, size = 0xe000, scoped, tag = 'input window, operand 0, single buffered']
    #allocation3 [shape = 's32[1]{0}', space=sflag, size = 0x4, scoped, tag = 'scoped memory for tpu_custom_call.1']
    #allocation4 [shape = 's32[1]{0}', space=sflag, size = 0x4, scoped, tag = 'scoped memory for tpu_custom_call.1']
    #allocation5 [shape = 'u8[8192]{0}', space=vmem, size = 0x2000, scoped, tag = 'input window, operand 1, single buffered']
    #allocation6 [shape = 's32[1]{0}', space=sflag, size = 0x4, scoped, tag = 'scoped memory for tpu_custom_call.1']
    #allocation7 [shape = 'u8[802816]{0}', space=vmem, size = 0xc4000, scoped, tag = 'input window, operand 2, single buffered']
    #allocation8 [shape = 'u8[131072]{0}', space=vmem, size = 0x20000, scoped, tag = 'input window, operand 4, single buffered']
    #allocation9 [shape = 's32[1]{0}', space=sflag, size = 0x4, scoped, tag = 'scoped memory for tpu_custom_call.1']
    #allocation10 [shape = 'u8[131072]{0}', space=vmem, size = 0x20000, scoped, tag = 'input window, operand 6, single buffered']
    #allocation11 [shape = 'u8[917504]{0}', space=vmem, size = 0xe0000, scoped, tag = 'input window, operand 8, single buffered']
    #allocation12 [shape = 's32[1]{0}', space=sflag, size = 0x4, scoped, tag = 'scoped memory for tpu_custom_call.1']
    #allocation13 [shape = 'u8[28672]{0}', space=vmem, size = 0x7000, scoped, tag = 'output window, operand 0, single buffered']
    #allocation14 [shape = 'u8[8192]{0}', space=vmem, size = 0x2000, scoped, tag = 'output window, operand 1, single buffered']
    #allocation15 [shape = 's32[1]{0}', space=sflag, size = 0x4, scoped, tag = 'scoped memory for tpu_custom_call.1']
    %17 = vsyncpa [#allocation3], 0
    %18 = vsyncpa [#allocation6], 0
    %19 = vsyncpa [#allocation9], 0
    %20 = vsyncpa [#allocation12], 0
    %21 = vsyncpa [#allocation4], 0
    %22 = vsyncpa [#allocation15], 0
    // Predicated region
    $region2: #{tpu_custom_call.1} parent=1 // pred_check
      _
    $region3: #{tpu_custom_call.1} parent=1 // pred_check_branch
      %24 = sbr.rel (0) target = $region5
    $region4: #{tpu_custom_call.1} parent=1 // pred_region
      %s26 = ssub.s32 1792, 1792
      %27 = vsyncadd [#allocation3], %s26
      %s28 = sshll.u32 [#allocation2], 4
      %s29 = int_to_ptr.vmem [resolvable:$true] %s28
      %34 = dma.hbm_to_vmem [thread:$0]  %s0, 1792, %s29, [#allocation3], 896, 896, 56
    $region5: #{tpu_custom_call.1} parent=1 // pred_fallthru
      _
    // Predicated region
    $region6: #{tpu_custom_call.1} parent=1 // pred_check
      _
    $region7: #{tpu_custom_call.1} parent=1 // pred_check_branch
      %36 = sbr.rel (0) target = $region9
    $region8: #{tpu_custom_call.1} parent=1 // pred_region
      %s38 = ssub.s32 256, 256
      %39 = vsyncadd [#allocation6], %s38
      %s40 = sshll.u32 [#allocation5], 4
      %s41 = int_to_ptr.vmem [resolvable:$true] %s40
      %46 = dma.hbm_to_vmem [thread:$0]  %s1, 256, %s41, [#allocation6], 128, 128, 8
    $region9: #{tpu_custom_call.1} parent=1 // pred_fallthru
      _
    // Predicated region
    $region10: #{tpu_custom_call.1} parent=1 // pred_check
      _
    $region11: #{tpu_custom_call.1} parent=1 // pred_check_branch
      %48 = sbr.rel (0) target = $region13
    $region12: #{tpu_custom_call.1} parent=1 // pred_region
      %s50 = ssub.s32 25088, 25088
      %51 = vsyncadd [#allocation6], %s50
      %s52 = sshll.u32 [#allocation7], 4
      %s53 = int_to_ptr.vmem [resolvable:$true] %s52
      %58 = dma.hbm_to_vmem [thread:$0]  %s2, 25088, %s53, [#allocation6], 256, 256, 16
    $region13: #{tpu_custom_call.1} parent=1 // pred_fallthru
      _
    // Predicated region
    $region14: #{tpu_custom_call.1} parent=1 // pred_check
      _
    $region15: #{tpu_custom_call.1} parent=1 // pred_check_branch
      %60 = sbr.rel (0) target = $region17
    $region16: #{tpu_custom_call.1} parent=1 // pred_region
      _
    $region17: #{tpu_custom_call.1} parent=1 // pred_fallthru
      _
    // Predicated region
    $region18: #{tpu_custom_call.1} parent=1 // pred_check
      _
    $region19: #{tpu_custom_call.1} parent=1 // pred_check_branch
      %62 = sbr.rel (0) target = $region21
    $region20: #{tpu_custom_call.1} parent=1 // pred_region
      %s64 = ssub.s32 4096, 4096
      %65 = vsyncadd [#allocation9], %s64
      %s66 = sshll.u32 [#allocation8], 4
      %s67 = int_to_ptr.vmem [resolvable:$true] %s66
      %72 = dma.hbm_to_vmem [thread:$0]  %s4, 4096, %s67, [#allocation9], 64, 64, 4
    $region21: #{tpu_custom_call.1} parent=1 // pred_fallthru
      _
    // Predicated region
    $region22: #{tpu_custom_call.1} parent=1 // pred_check
      _
    $region23: #{tpu_custom_call.1} parent=1 // pred_check_branch
      %74 = sbr.rel (0) target = $region25
    $region24: #{tpu_custom_call.1} parent=1 // pred_region
      _
    $region25: #{tpu_custom_call.1} parent=1 // pred_fallthru
      _
    // Predicated region
    $region26: #{tpu_custom_call.1} parent=1 // pred_check
      _
    $region27: #{tpu_custom_call.1} parent=1 // pred_check_branch
      %76 = sbr.rel (0) target = $region29
    $region28: #{tpu_custom_call.1} parent=1 // pred_region
      %s78 = ssub.s32 4096, 4096
      %79 = vsyncadd [#allocation9], %s78
      %s80 = sshll.u32 [#allocation10], 4
      %s81 = int_to_ptr.vmem [resolvable:$true] %s80
      %86 = dma.hbm_to_vmem [thread:$0]  %s6, 4096, %s81, [#allocation9], 256, 256, 16
    $region29: #{tpu_custom_call.1} parent=1 // pred_fallthru
      _
    // Predicated region
    $region30: #{tpu_custom_call.1} parent=1 // pred_check
      _
    $region31: #{tpu_custom_call.1} parent=1 // pred_check_branch
      %88 = sbr.rel (0) target = $region33
    $region32: #{tpu_custom_call.1} parent=1 // pred_region
      _
    $region33: #{tpu_custom_call.1} parent=1 // pred_fallthru
      _
    // Predicated region
    $region34: #{tpu_custom_call.1} parent=1 // pred_check
      _
    $region35: #{tpu_custom_call.1} parent=1 // pred_check_branch
      %90 = sbr.rel (0) target = $region37
    $region36: #{tpu_custom_call.1} parent=1 // pred_region
      %s92 = ssub.s32 28672, 28672
      %93 = vsyncadd [#allocation12], %s92
      %s94 = sshll.u32 [#allocation11], 4
      %s95 = int_to_ptr.vmem [resolvable:$true] %s94
      %100 = dma.hbm_to_vmem [thread:$0]  %s8, 28672, %s95, [#allocation12], 448, 448, 28
    $region37: #{tpu_custom_call.1} parent=1 // pred_fallthru
      _
    // Predicated region
    $region38: #{tpu_custom_call.1} parent=1 // pred_check
      _
    $region39: #{tpu_custom_call.1} parent=1 // pred_check_branch
      %102 = sbr.rel (0) target = $region41
    $region40: #{tpu_custom_call.1} parent=1 // pred_region
      _
    $region41: #{tpu_custom_call.1} parent=1 // pred_fallthru
      _
    // Predicated region
    $region42: #{tpu_custom_call.1} parent=1 // pred_check
      _
    $region43: #{tpu_custom_call.1} parent=1 // pred_check_branch
      %104 = sbr.rel (0) target = $region45
    $region44: #{tpu_custom_call.1} parent=1 // pred_region
      %105 = dma.done [#allocation3], 1792
    $region45: #{tpu_custom_call.1} parent=1 // pred_fallthru
      _
    // Predicated region
    $region46: #{tpu_custom_call.1} parent=1 // pred_check
      _
    $region47: #{tpu_custom_call.1} parent=1 // pred_check_branch
      %107 = sbr.rel (0) target = $region49
    $region48: #{tpu_custom_call.1} parent=1 // pred_region
      %108 = dma.done [#allocation6], 256
    $region49: #{tpu_custom_call.1} parent=1 // pred_fallthru
      _
    // Predicated region
    $region50: #{tpu_custom_call.1} parent=1 // pred_check
      _
    $region51: #{tpu_custom_call.1} parent=1 // pred_check_branch
      %110 = sbr.rel (0) target = $region53
    $region52: #{tpu_custom_call.1} parent=1 // pred_region
      %111 = dma.done [#allocation6], 25088
    $region53: #{tpu_custom_call.1} parent=1 // pred_fallthru
      _
    // Predicated region
    $region54: #{tpu_custom_call.1} parent=1 // pred_check
      _
    $region55: #{tpu_custom_call.1} parent=1 // pred_check_branch
      %113 = sbr.rel (0) target = $region57
    $region56: #{tpu_custom_call.1} parent=1 // pred_region
      %114 = dma.done [#allocation9], 4096
    $region57: #{tpu_custom_call.1} parent=1 // pred_fallthru
      _
    // Predicated region
    $region58: #{tpu_custom_call.1} parent=1 // pred_check
      _
    $region59: #{tpu_custom_call.1} parent=1 // pred_check_branch
      %116 = sbr.rel (0) target = $region61
    $region60: #{tpu_custom_call.1} parent=1 // pred_region
      %117 = dma.done [#allocation9], 4096
    $region61: #{tpu_custom_call.1} parent=1 // pred_fallthru
      _
    // Predicated region
    $region62: #{tpu_custom_call.1} parent=1 // pred_check
      _
    $region63: #{tpu_custom_call.1} parent=1 // pred_check_branch
      %119 = sbr.rel (0) target = $region65
    $region64: #{tpu_custom_call.1} parent=1 // pred_region
      %120 = dma.done [#allocation12], 28672
    $region65: #{tpu_custom_call.1} parent=1 // pred_fallthru
      _
    %v122 = vld [vmem:[#allocation2] sm:$0xff]
    %v123 = vld [vmem:[#allocation2 + $0x8] sm:$0xff]
    %v124 = vld [vmem:[#allocation2 + $0x10] sm:$0xff]
    %v125 = vld [vmem:[#allocation2 + $0x18] sm:$0xff]
    %v126 = vld [vmem:[#allocation2 + $0x20] sm:$0xff]
    %v127 = vld [vmem:[#allocation2 + $0x28] sm:$0xff]
    %v128 = vld [vmem:[#allocation2 + $0x30] sm:$0xff]
    %v129 = vld [vmem:[#allocation2 + $0x38] sm:$0xff]
    %v130 = vld [vmem:[#allocation2 + $0x40] sm:$0xff]
    %v131 = vld [vmem:[#allocation2 + $0x48] sm:$0xff]
    %v132 = vld [vmem:[#allocation2 + $0x50] sm:$0xff]
    %v133 = vld [vmem:[#allocation2 + $0x58] sm:$0xff]
    %v134 = vld [vmem:[#allocation2 + $0x60] sm:$0xff]
    %v135 = vld [vmem:[#allocation2 + $0x68] sm:$0xff]
    %v136 = vpack.c.bf16 %v129, %v122
    %v137 = vpack.c.bf16 %v130, %v123
    %v138 = vpack.c.bf16 %v131, %v124
    %v139 = vpack.c.bf16 %v132, %v125
    %v140 = vpack.c.bf16 %v133, %v126
    %v141 = vpack.c.bf16 %v134, %v127
    %v142 = vpack.c.bf16 %v135, %v128
    %v143 = vld [vmem:[#allocation5] sm:$0xff]
    %v144 = vld [vmem:[#allocation5 + $0x8] sm:$0xff]
    %v145 = vld [vmem:[#allocation7] sm:$0xff]
    %v146 = vld [vmem:[#allocation7 + $0x8] sm:$0xff]
    %v147 = vld [vmem:[#allocation7 + $0x10] sm:$0xff]
    %v148 = vld [vmem:[#allocation7 + $0x18] sm:$0xff]
    %v149 = vld [vmem:[#allocation7 + $0x20] sm:$0xff]
    %v150 = vld [vmem:[#allocation7 + $0x28] sm:$0xff]
    %v151 = vld [vmem:[#allocation7 + $0x30] sm:$0xff]
    %v152 = vld [vmem:[#allocation7 + $0x38] sm:$0xff]
    %v153 = vld [vmem:[#allocation7 + $0x40] sm:$0xff]
    %v154 = vld [vmem:[#allocation7 + $0x48] sm:$0xff]
    %v155 = vld [vmem:[#allocation7 + $0x50] sm:$0xff]
    %v156 = vld [vmem:[#allocation7 + $0x58] sm:$0xff]
    %v157 = vld [vmem:[#allocation7 + $0x60] sm:$0xff]
    %v158 = vld [vmem:[#allocation7 + $0x68] sm:$0xff]
    %v159 = vld [vmem:[#allocation7 + $0x70] sm:$0xff]
    %v160 = vld [vmem:[#allocation7 + $0x78] sm:$0xff]
    %v161 = vld [vmem:[#allocation7 + $0x80] sm:$0xff]
    %v162 = vld [vmem:[#allocation7 + $0x88] sm:$0xff]
    %v163 = vld [vmem:[#allocation7 + $0x90] sm:$0xff]
    %v164 = vld [vmem:[#allocation7 + $0x98] sm:$0xff]
    %v165 = vld [vmem:[#allocation7 + $0xa0] sm:$0xff]
    %v166 = vld [vmem:[#allocation7 + $0xa8] sm:$0xff]
    %v167 = vld [vmem:[#allocation7 + $0xb0] sm:$0xff]
    %v168 = vld [vmem:[#allocation7 + $0xb8] sm:$0xff]
    %v169 = vld [vmem:[#allocation7 + $0xc0] sm:$0xff]
    %v170 = vld [vmem:[#allocation7 + $0xc8] sm:$0xff]
    %v171 = vld [vmem:[#allocation7 + $0xd0] sm:$0xff]
    %v172 = vld [vmem:[#allocation7 + $0xd8] sm:$0xff]
    %v173 = vld [vmem:[#allocation7 + $0xe0] sm:$0xff]
    %v174 = vld [vmem:[#allocation7 + $0xe8] sm:$0xff]
    %v175 = vld [vmem:[#allocation7 + $0xf0] sm:$0xff]
    %v176 = vld [vmem:[#allocation7 + $0xf8] sm:$0xff]
    %v177 = vld [vmem:[#allocation7 + $0x100] sm:$0xff]
    %v178 = vld [vmem:[#allocation7 + $0x108] sm:$0xff]
    %v179 = vld [vmem:[#allocation7 + $0x110] sm:$0xff]
    %v180 = vld [vmem:[#allocation7 + $0x118] sm:$0xff]
    %v181 = vld [vmem:[#allocation7 + $0x120] sm:$0xff]
    %v182 = vld [vmem:[#allocation7 + $0x128] sm:$0xff]
    %v183 = vld [vmem:[#allocation7 + $0x130] sm:$0xff]
    %v184 = vld [vmem:[#allocation7 + $0x138] sm:$0xff]
    %v185 = vld [vmem:[#allocation7 + $0x140] sm:$0xff]
    %v186 = vld [vmem:[#allocation7 + $0x148] sm:$0xff]
    %v187 = vld [vmem:[#allocation7 + $0x150] sm:$0xff]
    %v188 = vld [vmem:[#allocation7 + $0x158] sm:$0xff]
    %v189 = vld [vmem:[#allocation7 + $0x160] sm:$0xff]
    %v190 = vld [vmem:[#allocation7 + $0x168] sm:$0xff]
    %v191 = vld [vmem:[#allocation7 + $0x170] sm:$0xff]
    %v192 = vld [vmem:[#allocation7 + $0x178] sm:$0xff]
    %v193 = vld [vmem:[#allocation7 + $0x180] sm:$0xff]
    %v194 = vld [vmem:[#allocation7 + $0x188] sm:$0xff]
    %v195 = vld [vmem:[#allocation7 + $0x190] sm:$0xff]
    %v196 = vld [vmem:[#allocation7 + $0x198] sm:$0xff]
    %v197 = vld [vmem:[#allocation7 + $0x1a0] sm:$0xff]
    %v198 = vld [vmem:[#allocation7 + $0x1a8] sm:$0xff]
    %v199 = vld [vmem:[#allocation7 + $0x1b0] sm:$0xff]
    %v200 = vld [vmem:[#allocation7 + $0x1b8] sm:$0xff]
    %v201 = vld [vmem:[#allocation7 + $0x1c0] sm:$0xff]
    %v202 = vld [vmem:[#allocation7 + $0x1c8] sm:$0xff]
    %v203 = vld [vmem:[#allocation7 + $0x1d0] sm:$0xff]
    %v204 = vld [vmem:[#allocation7 + $0x1d8] sm:$0xff]
    %v205 = vld [vmem:[#allocation7 + $0x1e0] sm:$0xff]
    %v206 = vld [vmem:[#allocation7 + $0x1e8] sm:$0xff]
    %v207 = vld [vmem:[#allocation7 + $0x1f0] sm:$0xff]
    %v208 = vld [vmem:[#allocation7 + $0x1f8] sm:$0xff]
    %v209 = vld [vmem:[#allocation7 + $0x200] sm:$0xff]
    %v210 = vld [vmem:[#allocation7 + $0x208] sm:$0xff]
    %v211 = vld [vmem:[#allocation7 + $0x210] sm:$0xff]
    %v212 = vld [vmem:[#allocation7 + $0x218] sm:$0xff]
    %v213 = vld [vmem:[#allocation7 + $0x220] sm:$0xff]
    %v214 = vld [vmem:[#allocation7 + $0x228] sm:$0xff]
    %v215 = vld [vmem:[#allocation7 + $0x230] sm:$0xff]
    %v216 = vld [vmem:[#allocation7 + $0x238] sm:$0xff]
    %v217 = vld [vmem:[#allocation7 + $0x240] sm:$0xff]
    %v218 = vld [vmem:[#allocation7 + $0x248] sm:$0xff]
    %v219 = vld [vmem:[#allocation7 + $0x250] sm:$0xff]
    %v220 = vld [vmem:[#allocation7 + $0x258] sm:$0xff]
    %v221 = vld [vmem:[#allocation7 + $0x260] sm:$0xff]
    %v222 = vld [vmem:[#allocation7 + $0x268] sm:$0xff]
    %v223 = vld [vmem:[#allocation7 + $0x270] sm:$0xff]
    %v224 = vld [vmem:[#allocation7 + $0x278] sm:$0xff]
    %v225 = vld [vmem:[#allocation7 + $0x280] sm:$0xff]
    %v226 = vld [vmem:[#allocation7 + $0x288] sm:$0xff]
    %v227 = vld [vmem:[#allocation7 + $0x290] sm:$0xff]
    %v228 = vld [vmem:[#allocation7 + $0x298] sm:$0xff]
    %v229 = vld [vmem:[#allocation7 + $0x2a0] sm:$0xff]
    %v230 = vld [vmem:[#allocation7 + $0x2a8] sm:$0xff]
    %v231 = vld [vmem:[#allocation7 + $0x2b0] sm:$0xff]
    %v232 = vld [vmem:[#allocation7 + $0x2b8] sm:$0xff]
    %v233 = vld [vmem:[#allocation7 + $0x2c0] sm:$0xff]
    %v234 = vld [vmem:[#allocation7 + $0x2c8] sm:$0xff]
    %v235 = vld [vmem:[#allocation7 + $0x2d0] sm:$0xff]
    %v236 = vld [vmem:[#allocation7 + $0x2d8] sm:$0xff]
    %v237 = vld [vmem:[#allocation7 + $0x2e0] sm:$0xff]
    %v238 = vld [vmem:[#allocation7 + $0x2e8] sm:$0xff]
    %v239 = vld [vmem:[#allocation7 + $0x2f0] sm:$0xff]
    %v240 = vld [vmem:[#allocation7 + $0x2f8] sm:$0xff]
    %v241 = vld [vmem:[#allocation7 + $0x300] sm:$0xff]
    %v242 = vld [vmem:[#allocation7 + $0x308] sm:$0xff]
    %v243 = vld [vmem:[#allocation7 + $0x310] sm:$0xff]
    %v244 = vld [vmem:[#allocation7 + $0x318] sm:$0xff]
    %v245 = vld [vmem:[#allocation7 + $0x320] sm:$0xff]
    %v246 = vld [vmem:[#allocation7 + $0x328] sm:$0xff]
    %v247 = vld [vmem:[#allocation7 + $0x330] sm:$0xff]
    %v248 = vld [vmem:[#allocation7 + $0x338] sm:$0xff]
    %v249 = vld [vmem:[#allocation7 + $0x340] sm:$0xff]
    %v250 = vld [vmem:[#allocation7 + $0x348] sm:$0xff]
    %v251 = vld [vmem:[#allocation7 + $0x350] sm:$0xff]
    %v252 = vld [vmem:[#allocation7 + $0x358] sm:$0xff]
    %v253 = vld [vmem:[#allocation7 + $0x360] sm:$0xff]
    %v254 = vld [vmem:[#allocation7 + $0x368] sm:$0xff]
    %v255 = vld [vmem:[#allocation7 + $0x370] sm:$0xff]
    %v256 = vld [vmem:[#allocation7 + $0x378] sm:$0xff]
    %v257 = vld [vmem:[#allocation7 + $0x380] sm:$0xff]
    %v258 = vld [vmem:[#allocation7 + $0x388] sm:$0xff]
    %v259 = vld [vmem:[#allocation7 + $0x390] sm:$0xff]
    %v260 = vld [vmem:[#allocation7 + $0x398] sm:$0xff]
    %v261 = vld [vmem:[#allocation7 + $0x3a0] sm:$0xff]
    %v262 = vld [vmem:[#allocation7 + $0x3a8] sm:$0xff]
    %v263 = vld [vmem:[#allocation7 + $0x3b0] sm:$0xff]
    %v264 = vld [vmem:[#allocation7 + $0x3b8] sm:$0xff]
    %v265 = vld [vmem:[#allocation7 + $0x3c0] sm:$0xff]
    %v266 = vld [vmem:[#allocation7 + $0x3c8] sm:$0xff]
    %v267 = vld [vmem:[#allocation7 + $0x3d0] sm:$0xff]
    %v268 = vld [vmem:[#allocation7 + $0x3d8] sm:$0xff]
    %v269 = vld [vmem:[#allocation7 + $0x3e0] sm:$0xff]
    %v270 = vld [vmem:[#allocation7 + $0x3e8] sm:$0xff]
    %v271 = vld [vmem:[#allocation7 + $0x3f0] sm:$0xff]
    %v272 = vld [vmem:[#allocation7 + $0x3f8] sm:$0xff]
    %v273 = vld [vmem:[#allocation7 + $0x400] sm:$0xff]
    %v274 = vld [vmem:[#allocation7 + $0x408] sm:$0xff]
    %v275 = vld [vmem:[#allocation7 + $0x410] sm:$0xff]
    %v276 = vld [vmem:[#allocation7 + $0x418] sm:$0xff]
    %v277 = vld [vmem:[#allocation7 + $0x420] sm:$0xff]
    %v278 = vld [vmem:[#allocation7 + $0x428] sm:$0xff]
    %v279 = vld [vmem:[#allocation7 + $0x430] sm:$0xff]
    %v280 = vld [vmem:[#allocation7 + $0x438] sm:$0xff]
    %v281 = vld [vmem:[#allocation7 + $0x440] sm:$0xff]
    %v282 = vld [vmem:[#allocation7 + $0x448] sm:$0xff]
    %v283 = vld [vmem:[#allocation7 + $0x450] sm:$0xff]
    %v284 = vld [vmem:[#allocation7 + $0x458] sm:$0xff]
    %v285 = vld [vmem:[#allocation7 + $0x460] sm:$0xff]
    %v286 = vld [vmem:[#allocation7 + $0x468] sm:$0xff]
    %v287 = vld [vmem:[#allocation7 + $0x470] sm:$0xff]
    %v288 = vld [vmem:[#allocation7 + $0x478] sm:$0xff]
    %v289 = vld [vmem:[#allocation7 + $0x480] sm:$0xff]
    %v290 = vld [vmem:[#allocation7 + $0x488] sm:$0xff]
    %v291 = vld [vmem:[#allocation7 + $0x490] sm:$0xff]
    %v292 = vld [vmem:[#allocation7 + $0x498] sm:$0xff]
    %v293 = vld [vmem:[#allocation7 + $0x4a0] sm:$0xff]
    %v294 = vld [vmem:[#allocation7 + $0x4a8] sm:$0xff]
    %v295 = vld [vmem:[#allocation7 + $0x4b0] sm:$0xff]
    %v296 = vld [vmem:[#allocation7 + $0x4b8] sm:$0xff]
    %v297 = vld [vmem:[#allocation7 + $0x4c0] sm:$0xff]
    %v298 = vld [vmem:[#allocation7 + $0x4c8] sm:$0xff]
    %v299 = vld [vmem:[#allocation7 + $0x4d0] sm:$0xff]
    %v300 = vld [vmem:[#allocation7 + $0x4d8] sm:$0xff]
    %v301 = vld [vmem:[#allocation7 + $0x4e0] sm:$0xff]
    %v302 = vld [vmem:[#allocation7 + $0x4e8] sm:$0xff]
    %v303 = vld [vmem:[#allocation7 + $0x4f0] sm:$0xff]
    %v304 = vld [vmem:[#allocation7 + $0x4f8] sm:$0xff]
    %v305 = vld [vmem:[#allocation7 + $0x500] sm:$0xff]
    %v306 = vld [vmem:[#allocation7 + $0x508] sm:$0xff]
    %v307 = vld [vmem:[#allocation7 + $0x510] sm:$0xff]
    %v308 = vld [vmem:[#allocation7 + $0x518] sm:$0xff]
    %v309 = vld [vmem:[#allocation7 + $0x520] sm:$0xff]
    %v310 = vld [vmem:[#allocation7 + $0x528] sm:$0xff]
    %v311 = vld [vmem:[#allocation7 + $0x530] sm:$0xff]
    %v312 = vld [vmem:[#allocation7 + $0x538] sm:$0xff]
    %v313 = vld [vmem:[#allocation7 + $0x540] sm:$0xff]
    %v314 = vld [vmem:[#allocation7 + $0x548] sm:$0xff]
    %v315 = vld [vmem:[#allocation7 + $0x550] sm:$0xff]
    %v316 = vld [vmem:[#allocation7 + $0x558] sm:$0xff]
    %v317 = vld [vmem:[#allocation7 + $0x560] sm:$0xff]
    %v318 = vld [vmem:[#allocation7 + $0x568] sm:$0xff]
    %v319 = vld [vmem:[#allocation7 + $0x570] sm:$0xff]
    %v320 = vld [vmem:[#allocation7 + $0x578] sm:$0xff]
    %v321 = vld [vmem:[#allocation7 + $0x580] sm:$0xff]
    %v322 = vld [vmem:[#allocation7 + $0x588] sm:$0xff]
    %v323 = vld [vmem:[#allocation7 + $0x590] sm:$0xff]
    %v324 = vld [vmem:[#allocation7 + $0x598] sm:$0xff]
    %v325 = vld [vmem:[#allocation7 + $0x5a0] sm:$0xff]
    %v326 = vld [vmem:[#allocation7 + $0x5a8] sm:$0xff]
    %v327 = vld [vmem:[#allocation7 + $0x5b0] sm:$0xff]
    %v328 = vld [vmem:[#allocation7 + $0x5b8] sm:$0xff]
    %v329 = vld [vmem:[#allocation7 + $0x5c0] sm:$0xff]
    %v330 = vld [vmem:[#allocation7 + $0x5c8] sm:$0xff]
    %v331 = vld [vmem:[#allocation7 + $0x5d0] sm:$0xff]
    %v332 = vld [vmem:[#allocation7 + $0x5d8] sm:$0xff]
    %v333 = vld [vmem:[#allocation7 + $0x5e0] sm:$0xff]
    %v334 = vld [vmem:[#allocation7 + $0x5e8] sm:$0xff]
    %v335 = vld [vmem:[#allocation7 + $0x5f0] sm:$0xff]
    %v336 = vld [vmem:[#allocation7 + $0x5f8] sm:$0xff]
    %v337 = vld [vmem:[#allocation7 + $0x600] sm:$0xff]
    %v338 = vld [vmem:[#allocation7 + $0x608] sm:$0xff]
    %v339 = vld [vmem:[#allocation7 + $0x610] sm:$0xff]
    %v340 = vld [vmem:[#allocation7 + $0x618] sm:$0xff]
    %v341 = vld [vmem:[%s3] sm:$0xf]
    %v343 = vlaneseq
    %v344 = vshrl.u32 %v343, 7
    %v345 = vsub.s32 0, %v344
    %v346 = vrot.slane %v341, %v345
    %v347 = vlaneseq
    %v348 = vshrl.u32 %v347, 7
    %v349 = vsub.s32 1, %v348
    %v350 = vrot.slane %v341, %v349
    %v351 = vlaneseq
    %v352 = vshrl.u32 %v351, 7
    %v353 = vsub.s32 2, %v352
    %v354 = vrot.slane %v341, %v353
    %v355 = vlaneseq
    %v356 = vshrl.u32 %v355, 7
    %v357 = vsub.s32 3, %v356
    %v358 = vrot.slane %v341, %v357
    %v559 = vunpack.c.l.b16 %v145
    %v560 = vunpack.c.h.b16 %v145
    %v561 = vunpack.c.l.b16 %v146
    %v562 = vunpack.c.h.b16 %v146
    %v563 = vunpack.c.l.b16 %v147
    %v564 = vunpack.c.h.b16 %v147
    %v565 = vunpack.c.l.b16 %v148
    %v566 = vunpack.c.h.b16 %v148
    %v567 = vunpack.c.l.b16 %v149
    %v568 = vunpack.c.h.b16 %v149
    %v569 = vunpack.c.l.b16 %v150
    %v570 = vunpack.c.h.b16 %v150
    %v571 = vunpack.c.l.b16 %v151
    %v572 = vunpack.c.h.b16 %v151
    %v573 = vunpack.c.l.b16 %v152
    %v574 = vunpack.c.h.b16 %v152
    %v575 = vunpack.c.l.b16 %v153
    %v576 = vunpack.c.h.b16 %v153
    %v577 = vunpack.c.l.b16 %v154
    %v578 = vunpack.c.h.b16 %v154
    %v579 = vunpack.c.l.b16 %v155
    %v580 = vunpack.c.h.b16 %v155
    %v581 = vunpack.c.l.b16 %v156
    %v582 = vunpack.c.h.b16 %v156
    %v583 = vunpack.c.l.b16 %v157
    %v584 = vunpack.c.h.b16 %v157
    %v585 = vunpack.c.l.b16 %v158
    %v586 = vunpack.c.h.b16 %v158
    %v587 = vunpack.c.l.b16 %v159
    %v588 = vunpack.c.h.b16 %v159
    %v589 = vunpack.c.l.b16 %v160
    %v590 = vunpack.c.h.b16 %v160
    %v591 = vunpack.c.l.b16 %v161
    %v592 = vunpack.c.h.b16 %v161
    %v593 = vunpack.c.l.b16 %v162
    %v594 = vunpack.c.h.b16 %v162
    %v595 = vunpack.c.l.b16 %v163
    %v596 = vunpack.c.h.b16 %v163
    %v597 = vunpack.c.l.b16 %v164
    %v598 = vunpack.c.h.b16 %v164
    %v599 = vunpack.c.l.b16 %v165
    %v600 = vunpack.c.h.b16 %v165
    %v601 = vunpack.c.l.b16 %v166
    %v602 = vunpack.c.h.b16 %v166
    %v603 = vunpack.c.l.b16 %v167
    %v604 = vunpack.c.h.b16 %v167
    %v605 = vunpack.c.l.b16 %v168
    %v606 = vunpack.c.h.b16 %v168
    %v607 = vunpack.c.l.b16 %v169
    %v608 = vunpack.c.h.b16 %v169
    %v609 = vunpack.c.l.b16 %v170
    %v610 = vunpack.c.h.b16 %v170
    %v611 = vunpack.c.l.b16 %v171
    %v612 = vunpack.c.h.b16 %v171
    %v613 = vunpack.c.l.b16 %v172
    %v614 = vunpack.c.h.b16 %v172
    %v615 = vunpack.c.l.b16 %v173
    %v616 = vunpack.c.h.b16 %v173
    %v617 = vunpack.c.l.b16 %v174
    %v618 = vunpack.c.h.b16 %v174
    %v619 = vunpack.c.l.b16 %v175
    %v620 = vunpack.c.h.b16 %v175
    %v621 = vunpack.c.l.b16 %v176
    %v622 = vunpack.c.h.b16 %v176
    %v623 = vunpack.c.l.b16 %v177
    %v624 = vunpack.c.h.b16 %v177
    %v625 = vunpack.c.l.b16 %v178
    %v626 = vunpack.c.h.b16 %v178
    %v627 = vunpack.c.l.b16 %v179
    %v628 = vunpack.c.h.b16 %v179
    %v629 = vunpack.c.l.b16 %v180
    %v630 = vunpack.c.h.b16 %v180
    %v631 = vunpack.c.l.b16 %v181
    %v632 = vunpack.c.h.b16 %v181
    %v633 = vunpack.c.l.b16 %v182
    %v634 = vunpack.c.h.b16 %v182
    %v635 = vunpack.c.l.b16 %v183
    %v636 = vunpack.c.h.b16 %v183
    %v637 = vunpack.c.l.b16 %v184
    %v638 = vunpack.c.h.b16 %v184
    %v639 = vunpack.c.l.b16 %v185
    %v640 = vunpack.c.h.b16 %v185
    %v641 = vunpack.c.l.b16 %v186
    %v642 = vunpack.c.h.b16 %v186
    %v643 = vunpack.c.l.b16 %v187
    %v644 = vunpack.c.h.b16 %v187
    %v645 = vunpack.c.l.b16 %v188
    %v646 = vunpack.c.h.b16 %v188
    %v647 = vunpack.c.l.b16 %v189
    %v648 = vunpack.c.h.b16 %v189
    %v649 = vunpack.c.l.b16 %v190
    %v650 = vunpack.c.h.b16 %v190
    %v651 = vunpack.c.l.b16 %v191
    %v652 = vunpack.c.h.b16 %v191
    %v653 = vunpack.c.l.b16 %v192
    %v654 = vunpack.c.h.b16 %v192
    %v655 = vunpack.c.l.b16 %v193
    %v656 = vunpack.c.h.b16 %v193
    %v657 = vunpack.c.l.b16 %v194
    %v658 = vunpack.c.h.b16 %v194
    %v659 = vunpack.c.l.b16 %v195
    %v660 = vunpack.c.h.b16 %v195
    %v661 = vunpack.c.l.b16 %v196
    %v662 = vunpack.c.h.b16 %v196
    %v663 = vunpack.c.l.b16 %v197
    %v664 = vunpack.c.h.b16 %v197
    %v665 = vunpack.c.l.b16 %v198
    %v666 = vunpack.c.h.b16 %v198
    %v667 = vunpack.c.l.b16 %v199
    %v668 = vunpack.c.h.b16 %v199
    %v669 = vunpack.c.l.b16 %v200
    %v670 = vunpack.c.h.b16 %v200
    %v671 = vunpack.c.l.b16 %v201
    %v672 = vunpack.c.h.b16 %v201
    %v673 = vunpack.c.l.b16 %v202
    %v674 = vunpack.c.h.b16 %v202
    %v675 = vunpack.c.l.b16 %v203
    %v676 = vunpack.c.h.b16 %v203
    %v677 = vunpack.c.l.b16 %v204
    %v678 = vunpack.c.h.b16 %v204
    %v679 = vunpack.c.l.b16 %v205
    %v680 = vunpack.c.h.b16 %v205
    %v681 = vunpack.c.l.b16 %v206
    %v682 = vunpack.c.h.b16 %v206
    %v683 = vunpack.c.l.b16 %v207
    %v684 = vunpack.c.h.b16 %v207
    %v685 = vunpack.c.l.b16 %v208
    %v686 = vunpack.c.h.b16 %v208
    %v687 = vunpack.c.l.b16 %v209
    %v688 = vunpack.c.h.b16 %v209
    %v689 = vunpack.c.l.b16 %v210
    %v690 = vunpack.c.h.b16 %v210
    %v691 = vunpack.c.l.b16 %v211
    %v692 = vunpack.c.h.b16 %v211
    %v693 = vunpack.c.l.b16 %v212
    %v694 = vunpack.c.h.b16 %v212
    %v695 = vunpack.c.l.b16 %v213
    %v696 = vunpack.c.h.b16 %v213
    %v697 = vunpack.c.l.b16 %v214
    %v698 = vunpack.c.h.b16 %v214
    %v699 = vunpack.c.l.b16 %v215
    %v700 = vunpack.c.h.b16 %v215
    %v701 = vunpack.c.l.b16 %v216
    %v702 = vunpack.c.h.b16 %v216
    %v703 = vunpack.c.l.b16 %v217
    %v704 = vunpack.c.h.b16 %v217
    %v705 = vunpack.c.l.b16 %v218
    %v706 = vunpack.c.h.b16 %v218
    %v707 = vunpack.c.l.b16 %v219
    %v708 = vunpack.c.h.b16 %v219
    %v709 = vunpack.c.l.b16 %v220
    %v710 = vunpack.c.h.b16 %v220
    %v711 = vunpack.c.l.b16 %v221
    %v712 = vunpack.c.h.b16 %v221
    %v713 = vunpack.c.l.b16 %v222
    %v714 = vunpack.c.h.b16 %v222
    %v715 = vunpack.c.l.b16 %v223
    %v716 = vunpack.c.h.b16 %v223
    %v717 = vunpack.c.l.b16 %v224
    %v718 = vunpack.c.h.b16 %v224
    %v719 = vunpack.c.l.b16 %v225
    %v720 = vunpack.c.h.b16 %v225
    %v721 = vunpack.c.l.b16 %v226
    %v722 = vunpack.c.h.b16 %v226
    %v723 = vunpack.c.l.b16 %v227
    %v724 = vunpack.c.h.b16 %v227
    %v725 = vunpack.c.l.b16 %v228
    %v726 = vunpack.c.h.b16 %v228
    %v727 = vunpack.c.l.b16 %v229
    %v728 = vunpack.c.h.b16 %v229
    %v729 = vunpack.c.l.b16 %v230
    %v730 = vunpack.c.h.b16 %v230
    %v731 = vunpack.c.l.b16 %v231
    %v732 = vunpack.c.h.b16 %v231
    %v733 = vunpack.c.l.b16 %v232
    %v734 = vunpack.c.h.b16 %v232
    %v735 = vunpack.c.l.b16 %v233
    %v736 = vunpack.c.h.b16 %v233
    %v737 = vunpack.c.l.b16 %v234
    %v738 = vunpack.c.h.b16 %v234
    %v739 = vunpack.c.l.b16 %v235
    %v740 = vunpack.c.h.b16 %v235
    %v741 = vunpack.c.l.b16 %v236
    %v742 = vunpack.c.h.b16 %v236
    %v743 = vunpack.c.l.b16 %v237
    %v744 = vunpack.c.h.b16 %v237
    %v745 = vunpack.c.l.b16 %v238
    %v746 = vunpack.c.h.b16 %v238
    %v747 = vunpack.c.l.b16 %v239
    %v748 = vunpack.c.h.b16 %v239
    %v749 = vunpack.c.l.b16 %v240
    %v750 = vunpack.c.h.b16 %v240
    %v751 = vunpack.c.l.b16 %v241
    %v752 = vunpack.c.h.b16 %v241
    %v753 = vunpack.c.l.b16 %v242
    %v754 = vunpack.c.h.b16 %v242
    %v755 = vunpack.c.l.b16 %v243
    %v756 = vunpack.c.h.b16 %v243
    %v757 = vunpack.c.l.b16 %v244
    %v758 = vunpack.c.h.b16 %v244
    %v759 = vunpack.c.l.b16 %v245
    %v760 = vunpack.c.h.b16 %v245
    %v761 = vunpack.c.l.b16 %v246
    %v762 = vunpack.c.h.b16 %v246
    %v763 = vunpack.c.l.b16 %v247
    %v764 = vunpack.c.h.b16 %v247
    %v765 = vunpack.c.l.b16 %v248
    %v766 = vunpack.c.h.b16 %v248
    %v767 = vunpack.c.l.b16 %v249
    %v768 = vunpack.c.h.b16 %v249
    %v769 = vunpack.c.l.b16 %v250
    %v770 = vunpack.c.h.b16 %v250
    %v771 = vunpack.c.l.b16 %v251
    %v772 = vunpack.c.h.b16 %v251
    %v773 = vunpack.c.l.b16 %v252
    %v774 = vunpack.c.h.b16 %v252
    %v775 = vunpack.c.l.b16 %v253
    %v776 = vunpack.c.h.b16 %v253
    %v777 = vunpack.c.l.b16 %v254
    %v778 = vunpack.c.h.b16 %v254
    %v779 = vunpack.c.l.b16 %v255
    %v780 = vunpack.c.h.b16 %v255
    %v781 = vunpack.c.l.b16 %v256
    %v782 = vunpack.c.h.b16 %v256
    %v783 = vunpack.c.l.b16 %v257
    %v784 = vunpack.c.h.b16 %v257
    %v785 = vunpack.c.l.b16 %v258
    %v786 = vunpack.c.h.b16 %v258
    %v787 = vunpack.c.l.b16 %v259
    %v788 = vunpack.c.h.b16 %v259
    %v789 = vunpack.c.l.b16 %v260
    %v790 = vunpack.c.h.b16 %v260
    %v791 = vunpack.c.l.b16 %v261
    %v792 = vunpack.c.h.b16 %v261
    %v793 = vunpack.c.l.b16 %v262
    %v794 = vunpack.c.h.b16 %v262
    %v795 = vunpack.c.l.b16 %v263
    %v796 = vunpack.c.h.b16 %v263
    %v797 = vunpack.c.l.b16 %v264
    %v798 = vunpack.c.h.b16 %v264
    %v799 = vunpack.c.l.b16 %v265
    %v800 = vunpack.c.h.b16 %v265
    %v801 = vunpack.c.l.b16 %v266
    %v802 = vunpack.c.h.b16 %v266
    %v803 = vunpack.c.l.b16 %v267
    %v804 = vunpack.c.h.b16 %v267
    %v805 = vunpack.c.l.b16 %v268
    %v806 = vunpack.c.h.b16 %v268
    %v807 = vunpack.c.l.b16 %v269
    %v808 = vunpack.c.h.b16 %v269
    %v809 = vunpack.c.l.b16 %v270
    %v810 = vunpack.c.h.b16 %v270
    %v811 = vunpack.c.l.b16 %v271
    %v812 = vunpack.c.h.b16 %v271
    %v813 = vunpack.c.l.b16 %v272
    %v814 = vunpack.c.h.b16 %v272
    %v815 = vunpack.c.l.b16 %v273
    %v816 = vunpack.c.h.b16 %v273
    %v817 = vunpack.c.l.b16 %v274
    %v818 = vunpack.c.h.b16 %v274
    %v819 = vunpack.c.l.b16 %v275
    %v820 = vunpack.c.h.b16 %v275
    %v821 = vunpack.c.l.b16 %v276
    %v822 = vunpack.c.h.b16 %v276
    %v823 = vunpack.c.l.b16 %v277
    %v824 = vunpack.c.h.b16 %v277
    %v825 = vunpack.c.l.b16 %v278
    %v826 = vunpack.c.h.b16 %v278
    %v827 = vunpack.c.l.b16 %v279
    %v828 = vunpack.c.h.b16 %v279
    %v829 = vunpack.c.l.b16 %v280
    %v830 = vunpack.c.h.b16 %v280
    %v831 = vunpack.c.l.b16 %v281
    %v832 = vunpack.c.h.b16 %v281
    %v833 = vunpack.c.l.b16 %v282
    %v834 = vunpack.c.h.b16 %v282
    %v835 = vunpack.c.l.b16 %v283
    %v836 = vunpack.c.h.b16 %v283
    %v837 = vunpack.c.l.b16 %v284
    %v838 = vunpack.c.h.b16 %v284
    %v839 = vunpack.c.l.b16 %v285
    %v840 = vunpack.c.h.b16 %v285
    %v841 = vunpack.c.l.b16 %v286
    %v842 = vunpack.c.h.b16 %v286
    %v843 = vunpack.c.l.b16 %v287
    %v844 = vunpack.c.h.b16 %v287
    %v845 = vunpack.c.l.b16 %v288
    %v846 = vunpack.c.h.b16 %v288
    %v847 = vunpack.c.l.b16 %v289
    %v848 = vunpack.c.h.b16 %v289
    %v849 = vunpack.c.l.b16 %v290
    %v850 = vunpack.c.h.b16 %v290
    %v851 = vunpack.c.l.b16 %v291
    %v852 = vunpack.c.h.b16 %v291
    %v853 = vunpack.c.l.b16 %v292
    %v854 = vunpack.c.h.b16 %v292
    %v855 = vunpack.c.l.b16 %v293
    %v856 = vunpack.c.h.b16 %v293
    %v857 = vunpack.c.l.b16 %v294
    %v858 = vunpack.c.h.b16 %v294
    %v859 = vunpack.c.l.b16 %v295
    %v860 = vunpack.c.h.b16 %v295
    %v861 = vunpack.c.l.b16 %v296
    %v862 = vunpack.c.h.b16 %v296
    %v863 = vunpack.c.l.b16 %v297
    %v864 = vunpack.c.h.b16 %v297
    %v865 = vunpack.c.l.b16 %v298
    %v866 = vunpack.c.h.b16 %v298
    %v867 = vunpack.c.l.b16 %v299
    %v868 = vunpack.c.h.b16 %v299
    %v869 = vunpack.c.l.b16 %v300
    %v870 = vunpack.c.h.b16 %v300
    %v871 = vunpack.c.l.b16 %v301
    %v872 = vunpack.c.h.b16 %v301
    %v873 = vunpack.c.l.b16 %v302
    %v874 = vunpack.c.h.b16 %v302
    %v875 = vunpack.c.l.b16 %v303
    %v876 = vunpack.c.h.b16 %v303
    %v877 = vunpack.c.l.b16 %v304
    %v878 = vunpack.c.h.b16 %v304
    %v879 = vunpack.c.l.b16 %v305
    %v880 = vunpack.c.h.b16 %v305
    %v881 = vunpack.c.l.b16 %v306
    %v882 = vunpack.c.h.b16 %v306
    %v883 = vunpack.c.l.b16 %v307
    %v884 = vunpack.c.h.b16 %v307
    %v885 = vunpack.c.l.b16 %v308
    %v886 = vunpack.c.h.b16 %v308
    %v887 = vunpack.c.l.b16 %v309
    %v888 = vunpack.c.h.b16 %v309
    %v889 = vunpack.c.l.b16 %v310
    %v890 = vunpack.c.h.b16 %v310
    %v891 = vunpack.c.l.b16 %v311
    %v892 = vunpack.c.h.b16 %v311
    %v893 = vunpack.c.l.b16 %v312
    %v894 = vunpack.c.h.b16 %v312
    %v895 = vunpack.c.l.b16 %v313
    %v896 = vunpack.c.h.b16 %v313
    %v897 = vunpack.c.l.b16 %v314
    %v898 = vunpack.c.h.b16 %v314
    %v899 = vunpack.c.l.b16 %v315
    %v900 = vunpack.c.h.b16 %v315
    %v901 = vunpack.c.l.b16 %v316
    %v902 = vunpack.c.h.b16 %v316
    %v903 = vunpack.c.l.b16 %v317
    %v904 = vunpack.c.h.b16 %v317
    %v905 = vunpack.c.l.b16 %v318
    %v906 = vunpack.c.h.b16 %v318
    %v907 = vunpack.c.l.b16 %v319
    %v908 = vunpack.c.h.b16 %v319
    %v909 = vunpack.c.l.b16 %v320
    %v910 = vunpack.c.h.b16 %v320
    %v911 = vunpack.c.l.b16 %v321
    %v912 = vunpack.c.h.b16 %v321
    %v913 = vunpack.c.l.b16 %v322
    %v914 = vunpack.c.h.b16 %v322
    %v915 = vunpack.c.l.b16 %v323
    %v916 = vunpack.c.h.b16 %v323
    %v917 = vunpack.c.l.b16 %v324
    %v918 = vunpack.c.h.b16 %v324
    %v919 = vunpack.c.l.b16 %v325
    %v920 = vunpack.c.h.b16 %v325
    %v921 = vunpack.c.l.b16 %v326
    %v922 = vunpack.c.h.b16 %v326
    %v923 = vunpack.c.l.b16 %v327
    %v924 = vunpack.c.h.b16 %v327
    %v925 = vunpack.c.l.b16 %v328
    %v926 = vunpack.c.h.b16 %v328
    %v927 = vunpack.c.l.b16 %v329
    %v928 = vunpack.c.h.b16 %v329
    %v929 = vunpack.c.l.b16 %v330
    %v930 = vunpack.c.h.b16 %v330
    %v931 = vunpack.c.l.b16 %v331
    %v932 = vunpack.c.h.b16 %v331
    %v933 = vunpack.c.l.b16 %v332
    %v934 = vunpack.c.h.b16 %v332
    %v935 = vunpack.c.l.b16 %v333
    %v936 = vunpack.c.h.b16 %v333
    %v937 = vunpack.c.l.b16 %v334
    %v938 = vunpack.c.h.b16 %v334
    %v939 = vunpack.c.l.b16 %v335
    %v940 = vunpack.c.h.b16 %v335
    %v941 = vunpack.c.l.b16 %v336
    %v942 = vunpack.c.h.b16 %v336
    %v943 = vunpack.c.l.b16 %v337
    %v944 = vunpack.c.h.b16 %v337
    %v945 = vunpack.c.l.b16 %v338
    %v946 = vunpack.c.h.b16 %v338
    %v947 = vunpack.c.l.b16 %v339
    %v948 = vunpack.c.h.b16 %v339
    %v949 = vunpack.c.l.b16 %v340
    %v950 = vunpack.c.h.b16 %v340
    %v951 = vpack.c.b16 %v563, %v559
    %v952 = vpack.c.b16 %v564, %v560
    %v953 = vpack.c.b16 %v565, %v561
    %v954 = vpack.c.b16 %v566, %v562
    %v955 = vpack.c.b16 %v571, %v567
    %v956 = vpack.c.b16 %v572, %v568
    %v957 = vpack.c.b16 %v573, %v569
    %v958 = vpack.c.b16 %v574, %v570
    %v959 = vpack.c.b16 %v579, %v575
    %v960 = vpack.c.b16 %v580, %v576
    %v961 = vpack.c.b16 %v581, %v577
    %v962 = vpack.c.b16 %v582, %v578
    %v963 = vpack.c.b16 %v587, %v583
    %v964 = vpack.c.b16 %v588, %v584
    %v965 = vpack.c.b16 %v589, %v585
    %v966 = vpack.c.b16 %v590, %v586
    %v967 = vpack.c.b16 %v595, %v591
    %v968 = vpack.c.b16 %v596, %v592
    %v969 = vpack.c.b16 %v597, %v593
    %v970 = vpack.c.b16 %v598, %v594
    %v971 = vpack.c.b16 %v603, %v599
    %v972 = vpack.c.b16 %v604, %v600
    %v973 = vpack.c.b16 %v605, %v601
    %v974 = vpack.c.b16 %v606, %v602
    %v975 = vpack.c.b16 %v611, %v607
    %v976 = vpack.c.b16 %v612, %v608
    %v977 = vpack.c.b16 %v613, %v609
    %v978 = vpack.c.b16 %v614, %v610
    %v979 = vpack.c.b16 %v619, %v615
    %v980 = vpack.c.b16 %v620, %v616
    %v981 = vpack.c.b16 %v621, %v617
    %v982 = vpack.c.b16 %v622, %v618
    %v983 = vpack.c.b16 %v627, %v623
    %v984 = vpack.c.b16 %v628, %v624
    %v985 = vpack.c.b16 %v629, %v625
    %v986 = vpack.c.b16 %v630, %v626
    %v987 = vpack.c.b16 %v635, %v631
    %v988 = vpack.c.b16 %v636, %v632
    %v989 = vpack.c.b16 %v637, %v633
    %v990 = vpack.c.b16 %v638, %v634
    %v991 = vpack.c.b16 %v643, %v639
    %v992 = vpack.c.b16 %v644, %v640
    %v993 = vpack.c.b16 %v645, %v641
    %v994 = vpack.c.b16 %v646, %v642
    %v995 = vpack.c.b16 %v651, %v647
    %v996 = vpack.c.b16 %v652, %v648
    %v997 = vpack.c.b16 %v653, %v649
    %v998 = vpack.c.b16 %v654, %v650
    %v999 = vpack.c.b16 %v659, %v655
    %v1000 = vpack.c.b16 %v660, %v656
    %v1001 = vpack.c.b16 %v661, %v657
    %v1002 = vpack.c.b16 %v662, %v658
    %v1003 = vpack.c.b16 %v667, %v663
    %v1004 = vpack.c.b16 %v668, %v664
    %v1005 = vpack.c.b16 %v669, %v665
    %v1006 = vpack.c.b16 %v670, %v666
    %v1007 = vpack.c.b16 %v675, %v671
    %v1008 = vpack.c.b16 %v676, %v672
    %v1009 = vpack.c.b16 %v677, %v673
    %v1010 = vpack.c.b16 %v678, %v674
    %v1011 = vpack.c.b16 %v683, %v679
    %v1012 = vpack.c.b16 %v684, %v680
    %v1013 = vpack.c.b16 %v685, %v681
    %v1014 = vpack.c.b16 %v686, %v682
    %v1015 = vpack.c.b16 %v691, %v687
    %v1016 = vpack.c.b16 %v692, %v688
    %v1017 = vpack.c.b16 %v693, %v689
    %v1018 = vpack.c.b16 %v694, %v690
    %v1019 = vpack.c.b16 %v699, %v695
    %v1020 = vpack.c.b16 %v700, %v696
    %v1021 = vpack.c.b16 %v701, %v697
    %v1022 = vpack.c.b16 %v702, %v698
    %v1023 = vpack.c.b16 %v707, %v703
    %v1024 = vpack.c.b16 %v708, %v704
    %v1025 = vpack.c.b16 %v709, %v705
    %v1026 = vpack.c.b16 %v710, %v706
    %v1027 = vpack.c.b16 %v715, %v711
    %v1028 = vpack.c.b16 %v716, %v712
    %v1029 = vpack.c.b16 %v717, %v713
    %v1030 = vpack.c.b16 %v718, %v714
    %v1031 = vpack.c.b16 %v723, %v719
    %v1032 = vpack.c.b16 %v724, %v720
    %v1033 = vpack.c.b16 %v725, %v721
    %v1034 = vpack.c.b16 %v726, %v722
    %v1035 = vpack.c.b16 %v731, %v727
    %v1036 = vpack.c.b16 %v732, %v728
    %v1037 = vpack.c.b16 %v733, %v729
    %v1038 = vpack.c.b16 %v734, %v730
    %v1039 = vpack.c.b16 %v739, %v735
    %v1040 = vpack.c.b16 %v740, %v736
    %v1041 = vpack.c.b16 %v741, %v737
    %v1042 = vpack.c.b16 %v742, %v738
    %v1043 = vpack.c.b16 %v747, %v743
    %v1044 = vpack.c.b16 %v748, %v744
    %v1045 = vpack.c.b16 %v749, %v745
    %v1046 = vpack.c.b16 %v750, %v746
    %v1047 = vpack.c.b16 %v755, %v751
    %v1048 = vpack.c.b16 %v756, %v752
    %v1049 = vpack.c.b16 %v757, %v753
    %v1050 = vpack.c.b16 %v758, %v754
    %v1051 = vpack.c.b16 %v763, %v759
    %v1052 = vpack.c.b16 %v764, %v760
    %v1053 = vpack.c.b16 %v765, %v761
    %v1054 = vpack.c.b16 %v766, %v762
    %v1055 = vpack.c.b16 %v771, %v767
    %v1056 = vpack.c.b16 %v772, %v768
    %v1057 = vpack.c.b16 %v773, %v769
    %v1058 = vpack.c.b16 %v774, %v770
    %v1059 = vpack.c.b16 %v779, %v775
    %v1060 = vpack.c.b16 %v780, %v776
    %v1061 = vpack.c.b16 %v781, %v777
    %v1062 = vpack.c.b16 %v782, %v778
    %v1063 = vpack.c.b16 %v787, %v783
    %v1064 = vpack.c.b16 %v788, %v784
    %v1065 = vpack.c.b16 %v789, %v785
    %v1066 = vpack.c.b16 %v790, %v786
    %v1067 = vpack.c.b16 %v795, %v791
    %v1068 = vpack.c.b16 %v796, %v792
    %v1069 = vpack.c.b16 %v797, %v793
    %v1070 = vpack.c.b16 %v798, %v794
    %v1071 = vpack.c.b16 %v803, %v799
    %v1072 = vpack.c.b16 %v804, %v800
    %v1073 = vpack.c.b16 %v805, %v801
    %v1074 = vpack.c.b16 %v806, %v802
    %v1075 = vpack.c.b16 %v811, %v807
    %v1076 = vpack.c.b16 %v812, %v808
    %v1077 = vpack.c.b16 %v813, %v809
    %v1078 = vpack.c.b16 %v814, %v810
    %v1079 = vpack.c.b16 %v819, %v815
    %v1080 = vpack.c.b16 %v820, %v816
    %v1081 = vpack.c.b16 %v821, %v817
    %v1082 = vpack.c.b16 %v822, %v818
    %v1083 = vpack.c.b16 %v827, %v823
    %v1084 = vpack.c.b16 %v828, %v824
    %v1085 = vpack.c.b16 %v829, %v825
    %v1086 = vpack.c.b16 %v830, %v826
    %v1087 = vpack.c.b16 %v835, %v831
    %v1088 = vpack.c.b16 %v836, %v832
    %v1089 = vpack.c.b16 %v837, %v833
    %v1090 = vpack.c.b16 %v838, %v834
    %v1091 = vpack.c.b16 %v843, %v839
    %v1092 = vpack.c.b16 %v844, %v840
    %v1093 = vpack.c.b16 %v845, %v841
    %v1094 = vpack.c.b16 %v846, %v842
    %v1095 = vpack.c.b16 %v851, %v847
    %v1096 = vpack.c.b16 %v852, %v848
    %v1097 = vpack.c.b16 %v853, %v849
    %v1098 = vpack.c.b16 %v854, %v850
    %v1099 = vpack.c.b16 %v859, %v855
    %v1100 = vpack.c.b16 %v860, %v856
    %v1101 = vpack.c.b16 %v861, %v857
    %v1102 = vpack.c.b16 %v862, %v858
    %v1103 = vpack.c.b16 %v867, %v863
    %v1104 = vpack.c.b16 %v868, %v864
    %v1105 = vpack.c.b16 %v869, %v865
    %v1106 = vpack.c.b16 %v870, %v866
    %v1107 = vpack.c.b16 %v875, %v871
    %v1108 = vpack.c.b16 %v876, %v872
    %v1109 = vpack.c.b16 %v877, %v873
    %v1110 = vpack.c.b16 %v878, %v874
    %v1111 = vpack.c.b16 %v883, %v879
    %v1112 = vpack.c.b16 %v884, %v880
    %v1113 = vpack.c.b16 %v885, %v881
    %v1114 = vpack.c.b16 %v886, %v882
    %v1115 = vpack.c.b16 %v891, %v887
    %v1116 = vpack.c.b16 %v892, %v888
    %v1117 = vpack.c.b16 %v893, %v889
    %v1118 = vpack.c.b16 %v894, %v890
    %v1119 = vpack.c.b16 %v899, %v895
    %v1120 = vpack.c.b16 %v900, %v896
    %v1121 = vpack.c.b16 %v901, %v897
    %v1122 = vpack.c.b16 %v902, %v898
    %v1123 = vpack.c.b16 %v907, %v903
    %v1124 = vpack.c.b16 %v908, %v904
    %v1125 = vpack.c.b16 %v909, %v905
    %v1126 = vpack.c.b16 %v910, %v906
    %v1127 = vpack.c.b16 %v915, %v911
    %v1128 = vpack.c.b16 %v916, %v912
    %v1129 = vpack.c.b16 %v917, %v913
    %v1130 = vpack.c.b16 %v918, %v914
    %v1131 = vpack.c.b16 %v923, %v919
    %v1132 = vpack.c.b16 %v924, %v920
    %v1133 = vpack.c.b16 %v925, %v921
    %v1134 = vpack.c.b16 %v926, %v922
    %v1135 = vpack.c.b16 %v931, %v927
    %v1136 = vpack.c.b16 %v932, %v928
    %v1137 = vpack.c.b16 %v933, %v929
    %v1138 = vpack.c.b16 %v934, %v930
    %v1139 = vpack.c.b16 %v939, %v935
    %v1140 = vpack.c.b16 %v940, %v936
    %v1141 = vpack.c.b16 %v941, %v937
    %v1142 = vpack.c.b16 %v942, %v938
    %v1143 = vpack.c.b16 %v947, %v943
    %v1144 = vpack.c.b16 %v948, %v944
    %v1145 = vpack.c.b16 %v949, %v945
    %v1146 = vpack.c.b16 %v950, %v946
    %vm1343 = vcmask 130048
    %v1345 = vsel %vm1343, %v142, 0
    %1347 = vmatprep.subr.bf16.mxu0 %v952
    %1348 = vmatpush1.bf16.msra.mxu0 %v951
    %1349 = vmatprep.subr.bf16.mxu0 %v956
    %1350 = vmatpush1.bf16.msra.mxu0 %v955
    %1351 = vmatprep.subr.bf16.mxu0 %v960
    %1352 = vmatpush1.bf16.msra.mxu0 %v959
    %1353 = vmatprep.subr.bf16.mxu0 %v964
    %1354 = vmatpush1.bf16.msra.mxu0 %v963
    %1355 = vmatprep.subr.bf16.mxu0 %v968
    %1356 = vmatpush1.bf16.msra.mxu0 %v967
    %1357 = vmatprep.subr.bf16.mxu0 %v972
    %1358 = vmatpush1.bf16.msra.mxu0 %v971
    %1359 = vmatprep.subr.bf16.mxu0 %v976
    %1360 = vmatpush1.bf16.msra.mxu0 %v975
    %1361 = vmatprep.subr.bf16.mxu0 %v980
    %1362 = vmatpush1.bf16.msra.mxu0 %v979
    %1363 = vmatprep.subr.bf16.mxu0 %v984
    %1364 = vmatpush1.bf16.msra.mxu0 %v983
    %1365 = vmatprep.subr.bf16.mxu0 %v988
    %1366 = vmatpush1.bf16.msra.mxu0 %v987
    %1367 = vmatprep.subr.bf16.mxu0 %v992
    %1368 = vmatpush1.bf16.msra.mxu0 %v991
    %1369 = vmatprep.subr.bf16.mxu0 %v996
    %1370 = vmatpush1.bf16.msra.mxu0 %v995
    %1371 = vmatprep.subr.bf16.mxu0 %v1000
    %1372 = vmatpush1.bf16.msra.mxu0 %v999
    %1373 = vmatprep.subr.bf16.mxu0 %v1004
    %1374 = vmatpush1.bf16.msra.mxu0 %v1003
    %1375 = vmatprep.subr.bf16.mxu0 %v1008
    %1376 = vmatpush1.bf16.msra.mxu0 %v1007
    %1377 = vmatprep.subr.bf16.mxu0 %v1012
    %1378 = vmatpush1.bf16.msra.mxu0 %v1011
    %1379 = vmatprep.mubr.bf16.mxu0 %v137
    %1380 = vmatmul.mubr.bf16.gmra.mrb[0].mxu0 %v136
    %v1381 = vpop.f32.mrb[0].mxu0
    %v1382 = vadd.f32 %v346, %v1381
    %v1383 = vpop.f32.mrb[0].mxu0
    %v1384 = vadd.f32 %v350, %v1383
    %v1385 = vpop.f32.mrb[0].mxu0
    %v1386 = vadd.f32 %v346, %v1385
    %v1387 = vpop.f32.mrb[0].mxu0
    %v1388 = vadd.f32 %v350, %v1387
    %1389 = vdwg.mxu0
    %1390 = vmatprep.subr.bf16.mxu0 %v1016
    %1391 = vmatpush1.bf16.msra.mxu0 %v1015
    %1392 = vmatprep.subr.bf16.mxu0 %v1020
    %1393 = vmatpush1.bf16.msra.mxu0 %v1019
    %1394 = vmatprep.subr.bf16.mxu0 %v1024
    %1395 = vmatpush1.bf16.msra.mxu0 %v1023
    %1396 = vmatprep.subr.bf16.mxu0 %v1028
    %1397 = vmatpush1.bf16.msra.mxu0 %v1027
    %1398 = vmatprep.subr.bf16.mxu0 %v1032
    %1399 = vmatpush1.bf16.msra.mxu0 %v1031
    %1400 = vmatprep.subr.bf16.mxu0 %v1036
    %1401 = vmatpush1.bf16.msra.mxu0 %v1035
    %1402 = vmatprep.subr.bf16.mxu0 %v1040
    %1403 = vmatpush1.bf16.msra.mxu0 %v1039
    %1404 = vmatprep.subr.bf16.mxu0 %v1044
    %1405 = vmatpush1.bf16.msra.mxu0 %v1043
    %1406 = vmatprep.subr.bf16.mxu0 %v1048
    %1407 = vmatpush1.bf16.msra.mxu0 %v1047
    %1408 = vmatprep.subr.bf16.mxu0 %v1052
    %1409 = vmatpush1.bf16.msra.mxu0 %v1051
    %1410 = vmatprep.subr.bf16.mxu0 %v1056
    %1411 = vmatpush1.bf16.msra.mxu0 %v1055
    %1412 = vmatprep.subr.bf16.mxu0 %v1060
    %1413 = vmatpush1.bf16.msra.mxu0 %v1059
    %1414 = vmatprep.subr.bf16.mxu0 %v1064
    %1415 = vmatpush1.bf16.msra.mxu0 %v1063
    %1416 = vmatprep.subr.bf16.mxu0 %v1068
    %1417 = vmatpush1.bf16.msra.mxu0 %v1067
    %1418 = vmatprep.subr.bf16.mxu0 %v1072
    %1419 = vmatpush1.bf16.msra.mxu0 %v1071
    %1420 = vmatprep.subr.bf16.mxu0 %v1076
    %1421 = vmatpush1.bf16.msra.mxu0 %v1075
    %1422 = vmatprep.mubr.bf16.mxu0 %v139
    %1423 = vmatmul.mubr.bf16.gmra.mrb[0].mxu0 %v138
    %v1424 = vpop.f32.mrb[0].mxu0
    %v1425 = vadd.f32 %v1382, %v1424
    %v1426 = vpop.f32.mrb[0].mxu0
    %v1427 = vadd.f32 %v1384, %v1426
    %v1428 = vpop.f32.mrb[0].mxu0
    %v1429 = vadd.f32 %v1386, %v1428
    %v1430 = vpop.f32.mrb[0].mxu0
    %v1431 = vadd.f32 %v1388, %v1430
    %1432 = vdwg.mxu0
    %1433 = vmatprep.subr.bf16.mxu0 %v1080
    %1434 = vmatpush1.bf16.msra.mxu0 %v1079
    %1435 = vmatprep.subr.bf16.mxu0 %v1084
    %1436 = vmatpush1.bf16.msra.mxu0 %v1083
    %1437 = vmatprep.subr.bf16.mxu0 %v1088
    %1438 = vmatpush1.bf16.msra.mxu0 %v1087
    %1439 = vmatprep.subr.bf16.mxu0 %v1092
    %1440 = vmatpush1.bf16.msra.mxu0 %v1091
    %1441 = vmatprep.subr.bf16.mxu0 %v1096
    %1442 = vmatpush1.bf16.msra.mxu0 %v1095
    %1443 = vmatprep.subr.bf16.mxu0 %v1100
    %1444 = vmatpush1.bf16.msra.mxu0 %v1099
    %1445 = vmatprep.subr.bf16.mxu0 %v1104
    %1446 = vmatpush1.bf16.msra.mxu0 %v1103
    %1447 = vmatprep.subr.bf16.mxu0 %v1108
    %1448 = vmatpush1.bf16.msra.mxu0 %v1107
    %1449 = vmatprep.subr.bf16.mxu0 %v1112
    %1450 = vmatpush1.bf16.msra.mxu0 %v1111
    %1451 = vmatprep.subr.bf16.mxu0 %v1116
    %1452 = vmatpush1.bf16.msra.mxu0 %v1115
    %1453 = vmatprep.subr.bf16.mxu0 %v1120
    %1454 = vmatpush1.bf16.msra.mxu0 %v1119
    %1455 = vmatprep.subr.bf16.mxu0 %v1124
    %1456 = vmatpush1.bf16.msra.mxu0 %v1123
    %1457 = vmatprep.subr.bf16.mxu0 %v1128
    %1458 = vmatpush1.bf16.msra.mxu0 %v1127
    %1459 = vmatprep.subr.bf16.mxu0 %v1132
    %1460 = vmatpush1.bf16.msra.mxu0 %v1131
    %1461 = vmatprep.subr.bf16.mxu0 %v1136
    %1462 = vmatpush1.bf16.msra.mxu0 %v1135
    %1463 = vmatprep.subr.bf16.mxu0 %v1140
    %1464 = vmatpush1.bf16.msra.mxu0 %v1139
    %1465 = vmatprep.mubr.bf16.mxu0 %v141
    %1466 = vmatmul.mubr.bf16.gmra.mrb[0].mxu0 %v140
    %v1467 = vpop.f32.mrb[0].mxu0
    %v1468 = vadd.f32 %v1425, %v1467
    %v1469 = vpop.f32.mrb[0].mxu0
    %v1470 = vadd.f32 %v1427, %v1469
    %v1471 = vpop.f32.mrb[0].mxu0
    %v1472 = vadd.f32 %v1429, %v1471
    %v1473 = vpop.f32.mrb[0].mxu0
    %v1474 = vadd.f32 %v1431, %v1473
    %1475 = vdwg.mxu0
    %1476 = vmatprep.subr.bf16.mxu0 %v1144
    %1477 = vmatpush1.bf16.msra.mxu0 %v1143
    %1478 = vmatprep.subr.bf16.mxu0 0
    %1479 = vmatpush1.bf16.msra.mxu0 0
    %1480 = vmatprep.subr.bf16.mxu0 0
    %1481 = vmatpush1.bf16.msra.mxu0 0
    %1482 = vmatprep.subr.bf16.mxu0 0
    %1483 = vmatpush1.bf16.msra.mxu0 0
    %1484 = vmatprep.subr.bf16.mxu0 0
    %1485 = vmatpush1.bf16.msra.mxu0 0
    %1486 = vmatprep.subr.bf16.mxu0 0
    %1487 = vmatpush1.bf16.msra.mxu0 0
    %1488 = vmatprep.subr.bf16.mxu0 0
    %1489 = vmatpush1.bf16.msra.mxu0 0
    %1490 = vmatprep.subr.bf16.mxu0 0
    %1491 = vmatpush1.bf16.msra.mxu0 0
    %1492 = vmatprep.subr.bf16.mxu0 0
    %1493 = vmatpush1.bf16.msra.mxu0 0
    %1494 = vmatprep.subr.bf16.mxu0 0
    %1495 = vmatpush1.bf16.msra.mxu0 0
    %1496 = vmatprep.subr.bf16.mxu0 0
    %1497 = vmatpush1.bf16.msra.mxu0 0
    %1498 = vmatprep.subr.bf16.mxu0 0
    %1499 = vmatpush1.bf16.msra.mxu0 0
    %1500 = vmatprep.subr.bf16.mxu0 0
    %1501 = vmatpush1.bf16.msra.mxu0 0
    %1502 = vmatprep.subr.bf16.mxu0 0
    %1503 = vmatpush1.bf16.msra.mxu0 0
    %1504 = vmatprep.subr.bf16.mxu0 0
    %1505 = vmatpush1.bf16.msra.mxu0 0
    %1506 = vmatprep.subr.bf16.mxu0 0
    %1507 = vmatpush1.bf16.msra.mxu0 0
    %1508 = vmatprep.mubr.bf16.mxu0 0
    %1509 = vmatmul.mubr.bf16.gmra.mrb[0].mxu0 %v1345
    %v1510 = vpop.f32.mrb[0].mxu0
    %v1511 = vadd.f32 %v1468, %v1510
    %v1512 = vpop.f32.mrb[0].mxu0
    %v1513 = vadd.f32 %v1470, %v1512
    %v1514 = vpop.f32.mrb[0].mxu0
    %v1515 = vadd.f32 %v1472, %v1514
    %v1516 = vpop.f32.mrb[0].mxu0
    %v1517 = vadd.f32 %v1474, %v1516
    %1518 = vdwg.mxu0
    %1519 = vmatprep.subr.bf16.mxu0 %v954
    %1520 = vmatpush1.bf16.msra.mxu0 %v953
    %1521 = vmatprep.subr.bf16.mxu0 %v958
    %1522 = vmatpush1.bf16.msra.mxu0 %v957
    %1523 = vmatprep.subr.bf16.mxu0 %v962
    %1524 = vmatpush1.bf16.msra.mxu0 %v961
    %1525 = vmatprep.subr.bf16.mxu0 %v966
    %1526 = vmatpush1.bf16.msra.mxu0 %v965
    %1527 = vmatprep.subr.bf16.mxu0 %v970
    %1528 = vmatpush1.bf16.msra.mxu0 %v969
    %1529 = vmatprep.subr.bf16.mxu0 %v974
    %1530 = vmatpush1.bf16.msra.mxu0 %v973
    %1531 = vmatprep.subr.bf16.mxu0 %v978
    %1532 = vmatpush1.bf16.msra.mxu0 %v977
    %1533 = vmatprep.subr.bf16.mxu0 %v982
    %1534 = vmatpush1.bf16.msra.mxu0 %v981
    %1535 = vmatprep.subr.bf16.mxu0 %v986
    %1536 = vmatpush1.bf16.msra.mxu0 %v985
    %1537 = vmatprep.subr.bf16.mxu0 %v990
    %1538 = vmatpush1.bf16.msra.mxu0 %v989
    %1539 = vmatprep.subr.bf16.mxu0 %v994
    %1540 = vmatpush1.bf16.msra.mxu0 %v993
    %1541 = vmatprep.subr.bf16.mxu0 %v998
    %1542 = vmatpush1.bf16.msra.mxu0 %v997
    %1543 = vmatprep.subr.bf16.mxu0 %v1002
    %1544 = vmatpush1.bf16.msra.mxu0 %v1001
    %1545 = vmatprep.subr.bf16.mxu0 %v1006
    %1546 = vmatpush1.bf16.msra.mxu0 %v1005
    %1547 = vmatprep.subr.bf16.mxu0 %v1010
    %1548 = vmatpush1.bf16.msra.mxu0 %v1009
    %1549 = vmatprep.subr.bf16.mxu0 %v1014
    %1550 = vmatpush1.bf16.msra.mxu0 %v1013
    %1551 = vmatprep.mubr.bf16.mxu0 %v137
    %1552 = vmatmul.mubr.bf16.gmra.mrb[0].mxu0 %v136
    %v1553 = vpop.f32.mrb[0].mxu0
    %v1554 = vadd.f32 %v354, %v1553
    %v1555 = vpop.f32.mrb[0].mxu0
    %v1556 = vadd.f32 %v358, %v1555
    %v1557 = vpop.f32.mrb[0].mxu0
    %v1558 = vadd.f32 %v354, %v1557
    %v1559 = vpop.f32.mrb[0].mxu0
    %v1560 = vadd.f32 %v358, %v1559
    %1561 = vdwg.mxu0
    %1562 = vmatprep.subr.bf16.mxu0 %v1018
    %1563 = vmatpush1.bf16.msra.mxu0 %v1017
    %1564 = vmatprep.subr.bf16.mxu0 %v1022
    %1565 = vmatpush1.bf16.msra.mxu0 %v1021
    %1566 = vmatprep.subr.bf16.mxu0 %v1026
    %1567 = vmatpush1.bf16.msra.mxu0 %v1025
    %1568 = vmatprep.subr.bf16.mxu0 %v1030
    %1569 = vmatpush1.bf16.msra.mxu0 %v1029
    %1570 = vmatprep.subr.bf16.mxu0 %v1034
    %1571 = vmatpush1.bf16.msra.mxu0 %v1033
    %1572 = vmatprep.subr.bf16.mxu0 %v1038
    %1573 = vmatpush1.bf16.msra.mxu0 %v1037
    %1574 = vmatprep.subr.bf16.mxu0 %v1042
    %1575 = vmatpush1.bf16.msra.mxu0 %v1041
    %1576 = vmatprep.subr.bf16.mxu0 %v1046
    %1577 = vmatpush1.bf16.msra.mxu0 %v1045
    %1578 = vmatprep.subr.bf16.mxu0 %v1050
    %1579 = vmatpush1.bf16.msra.mxu0 %v1049
    %1580 = vmatprep.subr.bf16.mxu0 %v1054
    %1581 = vmatpush1.bf16.msra.mxu0 %v1053
    %1582 = vmatprep.subr.bf16.mxu0 %v1058
    %1583 = vmatpush1.bf16.msra.mxu0 %v1057
    %1584 = vmatprep.subr.bf16.mxu0 %v1062
    %1585 = vmatpush1.bf16.msra.mxu0 %v1061
    %1586 = vmatprep.subr.bf16.mxu0 %v1066
    %1587 = vmatpush1.bf16.msra.mxu0 %v1065
    %1588 = vmatprep.subr.bf16.mxu0 %v1070
    %1589 = vmatpush1.bf16.msra.mxu0 %v1069
    %1590 = vmatprep.subr.bf16.mxu0 %v1074
    %1591 = vmatpush1.bf16.msra.mxu0 %v1073
    %1592 = vmatprep.subr.bf16.mxu0 %v1078
    %1593 = vmatpush1.bf16.msra.mxu0 %v1077
    %1594 = vmatprep.mubr.bf16.mxu0 %v139
    %1595 = vmatmul.mubr.bf16.gmra.mrb[0].mxu0 %v138
    %v1596 = vpop.f32.mrb[0].mxu0
    %v1597 = vadd.f32 %v1554, %v1596
    %v1598 = vpop.f32.mrb[0].mxu0
    %v1599 = vadd.f32 %v1556, %v1598
    %v1600 = vpop.f32.mrb[0].mxu0
    %v1601 = vadd.f32 %v1558, %v1600
    %v1602 = vpop.f32.mrb[0].mxu0
    %v1603 = vadd.f32 %v1560, %v1602
    %1604 = vdwg.mxu0
    %1605 = vmatprep.subr.bf16.mxu0 %v1082
    %1606 = vmatpush1.bf16.msra.mxu0 %v1081
    %1607 = vmatprep.subr.bf16.mxu0 %v1086
    %1608 = vmatpush1.bf16.msra.mxu0 %v1085
    %1609 = vmatprep.subr.bf16.mxu0 %v1090
    %1610 = vmatpush1.bf16.msra.mxu0 %v1089
    %1611 = vmatprep.subr.bf16.mxu0 %v1094
    %1612 = vmatpush1.bf16.msra.mxu0 %v1093
    %1613 = vmatprep.subr.bf16.mxu0 %v1098
    %1614 = vmatpush1.bf16.msra.mxu0 %v1097
    %1615 = vmatprep.subr.bf16.mxu0 %v1102
    %1616 = vmatpush1.bf16.msra.mxu0 %v1101
    %1617 = vmatprep.subr.bf16.mxu0 %v1106
    %1618 = vmatpush1.bf16.msra.mxu0 %v1105
    %1619 = vmatprep.subr.bf16.mxu0 %v1110
    %1620 = vmatpush1.bf16.msra.mxu0 %v1109
    %1621 = vmatprep.subr.bf16.mxu0 %v1114
    %1622 = vmatpush1.bf16.msra.mxu0 %v1113
    %1623 = vmatprep.subr.bf16.mxu0 %v1118
    %1624 = vmatpush1.bf16.msra.mxu0 %v1117
    %1625 = vmatprep.subr.bf16.mxu0 %v1122
    %1626 = vmatpush1.bf16.msra.mxu0 %v1121
    %1627 = vmatprep.subr.bf16.mxu0 %v1126
    %1628 = vmatpush1.bf16.msra.mxu0 %v1125
    %1629 = vmatprep.subr.bf16.mxu0 %v1130
    %1630 = vmatpush1.bf16.msra.mxu0 %v1129
    %1631 = vmatprep.subr.bf16.mxu0 %v1134
    %1632 = vmatpush1.bf16.msra.mxu0 %v1133
    %1633 = vmatprep.subr.bf16.mxu0 %v1138
    %1634 = vmatpush1.bf16.msra.mxu0 %v1137
    %1635 = vmatprep.subr.bf16.mxu0 %v1142
    %1636 = vmatpush1.bf16.msra.mxu0 %v1141
    %1637 = vmatprep.mubr.bf16.mxu0 %v141
    %1638 = vmatmul.mubr.bf16.gmra.mrb[0].mxu0 %v140
    %v1639 = vpop.f32.mrb[0].mxu0
    %v1640 = vadd.f32 %v1597, %v1639
    %v1641 = vpop.f32.mrb[0].mxu0
    %v1642 = vadd.f32 %v1599, %v1641
    %v1643 = vpop.f32.mrb[0].mxu0
    %v1644 = vadd.f32 %v1601, %v1643
    %v1645 = vpop.f32.mrb[0].mxu0
    %v1646 = vadd.f32 %v1603, %v1645
    %1647 = vdwg.mxu0
    %1648 = vmatprep.subr.bf16.mxu0 %v1146
    %1649 = vmatpush1.bf16.msra.mxu0 %v1145
    %1650 = vmatprep.subr.bf16.mxu0 0
    %1651 = vmatpush1.bf16.msra.mxu0 0
    %1652 = vmatprep.subr.bf16.mxu0 0
    %1653 = vmatpush1.bf16.msra.mxu0 0
    %1654 = vmatprep.subr.bf16.mxu0 0
    %1655 = vmatpush1.bf16.msra.mxu0 0
    %1656 = vmatprep.subr.bf16.mxu0 0
    %1657 = vmatpush1.bf16.msra.mxu0 0
    %1658 = vmatprep.subr.bf16.mxu0 0
    %1659 = vmatpush1.bf16.msra.mxu0 0
    %1660 = vmatprep.subr.bf16.mxu0 0
    %1661 = vmatpush1.bf16.msra.mxu0 0
    %1662 = vmatprep.subr.bf16.mxu0 0
    %1663 = vmatpush1.bf16.msra.mxu0 0
    %1664 = vmatprep.subr.bf16.mxu0 0
    %1665 = vmatpush1.bf16.msra.mxu0 0
    %1666 = vmatprep.subr.bf16.mxu0 0
    %1667 = vmatpush1.bf16.msra.mxu0 0
    %1668 = vmatprep.subr.bf16.mxu0 0
    %1669 = vmatpush1.bf16.msra.mxu0 0
    %1670 = vmatprep.subr.bf16.mxu0 0
    %1671 = vmatpush1.bf16.msra.mxu0 0
    %1672 = vmatprep.subr.bf16.mxu0 0
    %1673 = vmatpush1.bf16.msra.mxu0 0
    %1674 = vmatprep.subr.bf16.mxu0 0
    %1675 = vmatpush1.bf16.msra.mxu0 0
    %1676 = vmatprep.subr.bf16.mxu0 0
    %1677 = vmatpush1.bf16.msra.mxu0 0
    %1678 = vmatprep.subr.bf16.mxu0 0
    %1679 = vmatpush1.bf16.msra.mxu0 0
    %1680 = vmatprep.mubr.bf16.mxu0 0
    %1681 = vmatmul.mubr.bf16.gmra.mrb[0].mxu0 %v1345
    %v1682 = vpop.f32.mrb[0].mxu0
    %v1683 = vadd.f32 %v1640, %v1682
    %v1684 = vpop.f32.mrb[0].mxu0
    %v1685 = vadd.f32 %v1642, %v1684
    %v1686 = vpop.f32.mrb[0].mxu0
    %v1687 = vadd.f32 %v1644, %v1686
    %v1688 = vpop.f32.mrb[0].mxu0
    %v1689 = vadd.f32 %v1646, %v1688
    %1690 = vdwg.mxu0
    %v1691 = vmax.f32 %v1511, 0.0
    %v1692 = vmax.f32 %v1513, 0.0
    %v1693 = vmax.f32 %v1683, 0.0
    %v1694 = vmax.f32 %v1685, 0.0
    %v1695 = vmax.f32 %v1515, 0.0
    %v1696 = vmax.f32 %v1517, 0.0
    %v1697 = vmax.f32 %v1687, 0.0
    %v1698 = vmax.f32 %v1689, 0.0
    %v1699 = vpack.c.bf16 %v1695, %v1691
    %v1700 = vpack.c.bf16 %v1696, %v1692
    %v1701 = vpack.c.bf16 %v1697, %v1693
    %v1702 = vpack.c.bf16 %v1698, %v1694
    %v1703 = vld [vmem:[#allocation8] sm:$0xf]
    %v1704 = vld [vmem:[#allocation8 + $0x4] sm:$0xf]
    %v1705 = vld [vmem:[#allocation8 + $0x8] sm:$0xf]
    %v1706 = vld [vmem:[#allocation8 + $0xc] sm:$0xf]
    %v1707 = vld [vmem:[#allocation8 + $0x10] sm:$0xf]
    %v1708 = vld [vmem:[#allocation8 + $0x14] sm:$0xf]
    %v1709 = vld [vmem:[#allocation8 + $0x18] sm:$0xf]
    %v1710 = vld [vmem:[#allocation8 + $0x1c] sm:$0xf]
    %v1711 = vld [vmem:[#allocation8 + $0x20] sm:$0xf]
    %v1712 = vld [vmem:[#allocation8 + $0x24] sm:$0xf]
    %v1713 = vld [vmem:[#allocation8 + $0x28] sm:$0xf]
    %v1714 = vld [vmem:[#allocation8 + $0x2c] sm:$0xf]
    %v1715 = vld [vmem:[#allocation8 + $0x30] sm:$0xf]
    %v1716 = vld [vmem:[#allocation8 + $0x34] sm:$0xf]
    %v1717 = vld [vmem:[#allocation8 + $0x38] sm:$0xf]
    %v1718 = vld [vmem:[#allocation8 + $0x3c] sm:$0xf]
    %v1719 = vld [vmem:[#allocation8 + $0x40] sm:$0xf]
    %v1720 = vld [vmem:[#allocation8 + $0x44] sm:$0xf]
    %v1721 = vld [vmem:[#allocation8 + $0x48] sm:$0xf]
    %v1722 = vld [vmem:[#allocation8 + $0x4c] sm:$0xf]
    %v1723 = vld [vmem:[#allocation8 + $0x50] sm:$0xf]
    %v1724 = vld [vmem:[#allocation8 + $0x54] sm:$0xf]
    %v1725 = vld [vmem:[#allocation8 + $0x58] sm:$0xf]
    %v1726 = vld [vmem:[#allocation8 + $0x5c] sm:$0xf]
    %v1727 = vld [vmem:[#allocation8 + $0x60] sm:$0xf]
    %v1728 = vld [vmem:[#allocation8 + $0x64] sm:$0xf]
    %v1729 = vld [vmem:[#allocation8 + $0x68] sm:$0xf]
    %v1730 = vld [vmem:[#allocation8 + $0x6c] sm:$0xf]
    %v1731 = vld [vmem:[#allocation8 + $0x70] sm:$0xf]
    %v1732 = vld [vmem:[#allocation8 + $0x74] sm:$0xf]
    %v1733 = vld [vmem:[#allocation8 + $0x78] sm:$0xf]
    %v1734 = vld [vmem:[#allocation8 + $0x7c] sm:$0xf]
    %v1735 = vld [vmem:[#allocation8 + $0x80] sm:$0xf]
    %v1736 = vld [vmem:[#allocation8 + $0x84] sm:$0xf]
    %v1737 = vld [vmem:[#allocation8 + $0x88] sm:$0xf]
    %v1738 = vld [vmem:[#allocation8 + $0x8c] sm:$0xf]
    %v1739 = vld [vmem:[#allocation8 + $0x90] sm:$0xf]
    %v1740 = vld [vmem:[#allocation8 + $0x94] sm:$0xf]
    %v1741 = vld [vmem:[#allocation8 + $0x98] sm:$0xf]
    %v1742 = vld [vmem:[#allocation8 + $0x9c] sm:$0xf]
    %v1743 = vld [vmem:[#allocation8 + $0xa0] sm:$0xf]
    %v1744 = vld [vmem:[#allocation8 + $0xa4] sm:$0xf]
    %v1745 = vld [vmem:[#allocation8 + $0xa8] sm:$0xf]
    %v1746 = vld [vmem:[#allocation8 + $0xac] sm:$0xf]
    %v1747 = vld [vmem:[#allocation8 + $0xb0] sm:$0xf]
    %v1748 = vld [vmem:[#allocation8 + $0xb4] sm:$0xf]
    %v1749 = vld [vmem:[#allocation8 + $0xb8] sm:$0xf]
    %v1750 = vld [vmem:[#allocation8 + $0xbc] sm:$0xf]
    %v1751 = vld [vmem:[#allocation8 + $0xc0] sm:$0xf]
    %v1752 = vld [vmem:[#allocation8 + $0xc4] sm:$0xf]
    %v1753 = vld [vmem:[#allocation8 + $0xc8] sm:$0xf]
    %v1754 = vld [vmem:[#allocation8 + $0xcc] sm:$0xf]
    %v1755 = vld [vmem:[#allocation8 + $0xd0] sm:$0xf]
    %v1756 = vld [vmem:[#allocation8 + $0xd4] sm:$0xf]
    %v1757 = vld [vmem:[#allocation8 + $0xd8] sm:$0xf]
    %v1758 = vld [vmem:[#allocation8 + $0xdc] sm:$0xf]
    %v1759 = vld [vmem:[#allocation8 + $0xe0] sm:$0xf]
    %v1760 = vld [vmem:[#allocation8 + $0xe4] sm:$0xf]
    %v1761 = vld [vmem:[#allocation8 + $0xe8] sm:$0xf]
    %v1762 = vld [vmem:[#allocation8 + $0xec] sm:$0xf]
    %v1763 = vld [vmem:[#allocation8 + $0xf0] sm:$0xf]
    %v1764 = vld [vmem:[#allocation8 + $0xf4] sm:$0xf]
    %v1765 = vld [vmem:[#allocation8 + $0xf8] sm:$0xf]
    %v1766 = vld [vmem:[#allocation8 + $0xfc] sm:$0xf]
    %v1767 = vld [vmem:[%s5] sm:$0x1]
    %v1769 = vlaneseq
    %v1770 = vshrl.u32 %v1769, 7
    %v1771 = vsub.s32 0, %v1770
    %v1772 = vrot.slane %v1767, %v1771
    %v1838 = vunpack.c.l.b16 %v1703
    %v1839 = vunpack.c.l.b16 %v1704
    %v1840 = vunpack.c.l.b16 %v1705
    %v1841 = vunpack.c.l.b16 %v1706
    %v1842 = vunpack.c.l.b16 %v1707
    %v1843 = vunpack.c.l.b16 %v1708
    %v1844 = vunpack.c.l.b16 %v1709
    %v1845 = vunpack.c.l.b16 %v1710
    %v1846 = vunpack.c.l.b16 %v1711
    %v1847 = vunpack.c.l.b16 %v1712
    %v1848 = vunpack.c.l.b16 %v1713
    %v1849 = vunpack.c.l.b16 %v1714
    %v1850 = vunpack.c.l.b16 %v1715
    %v1851 = vunpack.c.l.b16 %v1716
    %v1852 = vunpack.c.l.b16 %v1717
    %v1853 = vunpack.c.l.b16 %v1718
    %v1854 = vunpack.c.l.b16 %v1719
    %v1855 = vunpack.c.l.b16 %v1720
    %v1856 = vunpack.c.l.b16 %v1721
    %v1857 = vunpack.c.l.b16 %v1722
    %v1858 = vunpack.c.l.b16 %v1723
    %v1859 = vunpack.c.l.b16 %v1724
    %v1860 = vunpack.c.l.b16 %v1725
    %v1861 = vunpack.c.l.b16 %v1726
    %v1862 = vunpack.c.l.b16 %v1727
    %v1863 = vunpack.c.l.b16 %v1728
    %v1864 = vunpack.c.l.b16 %v1729
    %v1865 = vunpack.c.l.b16 %v1730
    %v1866 = vunpack.c.l.b16 %v1731
    %v1867 = vunpack.c.l.b16 %v1732
    %v1868 = vunpack.c.l.b16 %v1733
    %v1869 = vunpack.c.l.b16 %v1734
    %v1870 = vunpack.c.l.b16 %v1735
    %v1871 = vunpack.c.l.b16 %v1736
    %v1872 = vunpack.c.l.b16 %v1737
    %v1873 = vunpack.c.l.b16 %v1738
    %v1874 = vunpack.c.l.b16 %v1739
    %v1875 = vunpack.c.l.b16 %v1740
    %v1876 = vunpack.c.l.b16 %v1741
    %v1877 = vunpack.c.l.b16 %v1742
    %v1878 = vunpack.c.l.b16 %v1743
    %v1879 = vunpack.c.l.b16 %v1744
    %v1880 = vunpack.c.l.b16 %v1745
    %v1881 = vunpack.c.l.b16 %v1746
    %v1882 = vunpack.c.l.b16 %v1747
    %v1883 = vunpack.c.l.b16 %v1748
    %v1884 = vunpack.c.l.b16 %v1749
    %v1885 = vunpack.c.l.b16 %v1750
    %v1886 = vunpack.c.l.b16 %v1751
    %v1887 = vunpack.c.l.b16 %v1752
    %v1888 = vunpack.c.l.b16 %v1753
    %v1889 = vunpack.c.l.b16 %v1754
    %v1890 = vunpack.c.l.b16 %v1755
    %v1891 = vunpack.c.l.b16 %v1756
    %v1892 = vunpack.c.l.b16 %v1757
    %v1893 = vunpack.c.l.b16 %v1758
    %v1894 = vunpack.c.l.b16 %v1759
    %v1895 = vunpack.c.l.b16 %v1760
    %v1896 = vunpack.c.l.b16 %v1761
    %v1897 = vunpack.c.l.b16 %v1762
    %v1898 = vunpack.c.l.b16 %v1763
    %v1899 = vunpack.c.l.b16 %v1764
    %v1900 = vunpack.c.l.b16 %v1765
    %v1901 = vunpack.c.l.b16 %v1766
    %v1902 = vpack.c.b16 %v1839, %v1838
    %v1903 = vpack.c.b16 %v1841, %v1840
    %v1904 = vpack.c.b16 %v1843, %v1842
    %v1905 = vpack.c.b16 %v1845, %v1844
    %v1906 = vpack.c.b16 %v1847, %v1846
    %v1907 = vpack.c.b16 %v1849, %v1848
    %v1908 = vpack.c.b16 %v1851, %v1850
    %v1909 = vpack.c.b16 %v1853, %v1852
    %v1910 = vpack.c.b16 %v1855, %v1854
    %v1911 = vpack.c.b16 %v1857, %v1856
    %v1912 = vpack.c.b16 %v1859, %v1858
    %v1913 = vpack.c.b16 %v1861, %v1860
    %v1914 = vpack.c.b16 %v1863, %v1862
    %v1915 = vpack.c.b16 %v1865, %v1864
    %v1916 = vpack.c.b16 %v1867, %v1866
    %v1917 = vpack.c.b16 %v1869, %v1868
    %v1918 = vpack.c.b16 %v1871, %v1870
    %v1919 = vpack.c.b16 %v1873, %v1872
    %v1920 = vpack.c.b16 %v1875, %v1874
    %v1921 = vpack.c.b16 %v1877, %v1876
    %v1922 = vpack.c.b16 %v1879, %v1878
    %v1923 = vpack.c.b16 %v1881, %v1880
    %v1924 = vpack.c.b16 %v1883, %v1882
    %v1925 = vpack.c.b16 %v1885, %v1884
    %v1926 = vpack.c.b16 %v1887, %v1886
    %v1927 = vpack.c.b16 %v1889, %v1888
    %v1928 = vpack.c.b16 %v1891, %v1890
    %v1929 = vpack.c.b16 %v1893, %v1892
    %v1930 = vpack.c.b16 %v1895, %v1894
    %v1931 = vpack.c.b16 %v1897, %v1896
    %v1932 = vpack.c.b16 %v1899, %v1898
    %v1933 = vpack.c.b16 %v1901, %v1900
    %1966 = vmatprep.subr.bf16.mxu0 0
    %1967 = vmatpush1.bf16.msra.mxu0 %v1902
    %1968 = vmatprep.subr.bf16.mxu0 0
    %1969 = vmatpush1.bf16.msra.mxu0 %v1903
    %1970 = vmatprep.subr.bf16.mxu0 0
    %1971 = vmatpush1.bf16.msra.mxu0 %v1904
    %1972 = vmatprep.subr.bf16.mxu0 0
    %1973 = vmatpush1.bf16.msra.mxu0 %v1905
    %1974 = vmatprep.subr.bf16.mxu0 0
    %1975 = vmatpush1.bf16.msra.mxu0 %v1906
    %1976 = vmatprep.subr.bf16.mxu0 0
    %1977 = vmatpush1.bf16.msra.mxu0 %v1907
    %1978 = vmatprep.subr.bf16.mxu0 0
    %1979 = vmatpush1.bf16.msra.mxu0 %v1908
    %1980 = vmatprep.subr.bf16.mxu0 0
    %1981 = vmatpush1.bf16.msra.mxu0 %v1909
    %1982 = vmatprep.subr.bf16.mxu0 0
    %1983 = vmatpush1.bf16.msra.mxu0 %v1910
    %1984 = vmatprep.subr.bf16.mxu0 0
    %1985 = vmatpush1.bf16.msra.mxu0 %v1911
    %1986 = vmatprep.subr.bf16.mxu0 0
    %1987 = vmatpush1.bf16.msra.mxu0 %v1912
    %1988 = vmatprep.subr.bf16.mxu0 0
    %1989 = vmatpush1.bf16.msra.mxu0 %v1913
    %1990 = vmatprep.subr.bf16.mxu0 0
    %1991 = vmatpush1.bf16.msra.mxu0 %v1914
    %1992 = vmatprep.subr.bf16.mxu0 0
    %1993 = vmatpush1.bf16.msra.mxu0 %v1915
    %1994 = vmatprep.subr.bf16.mxu0 0
    %1995 = vmatpush1.bf16.msra.mxu0 %v1916
    %1996 = vmatprep.subr.bf16.mxu0 0
    %1997 = vmatpush1.bf16.msra.mxu0 %v1917
    %1998 = vmatprep.mubr.bf16.mxu0 %v1700
    %1999 = vmatmul.mubr.bf16.gmra.mrb[0].mxu0 %v1699
    %v2000 = vpop.f32.mrb[0].mxu0
    %v2001 = vadd.f32 %v1772, %v2000
    %v2002 = vpop.f32.mrb[0].mxu0
    %v2003 = vpop.f32.mrb[0].mxu0
    %v2004 = vadd.f32 %v1772, %v2003
    %v2005 = vpop.f32.mrb[0].mxu0
    %2006 = vdwg.mxu0
    %2007 = vmatprep.subr.bf16.mxu0 0
    %2008 = vmatpush1.bf16.msra.mxu0 %v1918
    %2009 = vmatprep.subr.bf16.mxu0 0
    %2010 = vmatpush1.bf16.msra.mxu0 %v1919
    %2011 = vmatprep.subr.bf16.mxu0 0
    %2012 = vmatpush1.bf16.msra.mxu0 %v1920
    %2013 = vmatprep.subr.bf16.mxu0 0
    %2014 = vmatpush1.bf16.msra.mxu0 %v1921
    %2015 = vmatprep.subr.bf16.mxu0 0
    %2016 = vmatpush1.bf16.msra.mxu0 %v1922
    %2017 = vmatprep.subr.bf16.mxu0 0
    %2018 = vmatpush1.bf16.msra.mxu0 %v1923
    %2019 = vmatprep.subr.bf16.mxu0 0
    %2020 = vmatpush1.bf16.msra.mxu0 %v1924
    %2021 = vmatprep.subr.bf16.mxu0 0
    %2022 = vmatpush1.bf16.msra.mxu0 %v1925
    %2023 = vmatprep.subr.bf16.mxu0 0
    %2024 = vmatpush1.bf16.msra.mxu0 %v1926
    %2025 = vmatprep.subr.bf16.mxu0 0
    %2026 = vmatpush1.bf16.msra.mxu0 %v1927
    %2027 = vmatprep.subr.bf16.mxu0 0
    %2028 = vmatpush1.bf16.msra.mxu0 %v1928
    %2029 = vmatprep.subr.bf16.mxu0 0
    %2030 = vmatpush1.bf16.msra.mxu0 %v1929
    %2031 = vmatprep.subr.bf16.mxu0 0
    %2032 = vmatpush1.bf16.msra.mxu0 %v1930
    %2033 = vmatprep.subr.bf16.mxu0 0
    %2034 = vmatpush1.bf16.msra.mxu0 %v1931
    %2035 = vmatprep.subr.bf16.mxu0 0
    %2036 = vmatpush1.bf16.msra.mxu0 %v1932
    %2037 = vmatprep.subr.bf16.mxu0 0
    %2038 = vmatpush1.bf16.msra.mxu0 %v1933
    %2039 = vmatprep.mubr.bf16.mxu0 %v1702
    %2040 = vmatmul.mubr.bf16.gmra.mrb[0].mxu0 %v1701
    %v2041 = vpop.f32.mrb[0].mxu0
    %v2042 = vadd.f32 %v2001, %v2041
    %v2043 = vpop.f32.mrb[0].mxu0
    %v2044 = vpop.f32.mrb[0].mxu0
    %v2045 = vadd.f32 %v2004, %v2044
    %v2046 = vpop.f32.mrb[0].mxu0
    %2047 = vdwg.mxu0
    %2048 = vrot.lane.b32.xlu0 %v2042, 64
    %v2049 = vpop.permute.xlu0 %2048
    %2050 = vrot.lane.b32.xlu0 %v2045, 64
    %v2051 = vpop.permute.xlu0 %2050
    %v2052 = vmul.f32 %v2049, 0.5
    %v2053 = vmul.f32 %v2051, 0.5
    %v2054 = vmul.f32 %v2052, 1.442695
    %v2055 = vpow.pop %v2054
    %v2056 = vmul.f32 %v2053, 1.442695
    %v2057 = vpow.pop %v2056
    %v2058 = vmul.f32 %v143, %v2055
    %v2059 = vmul.f32 %v144, %v2057
    %v2060 = vadd.f32 %v2042, %v2058
    %v2061 = vadd.f32 %v2045, %v2059
    %v2062 = vpack.c.bf16 %v2061, %v2060
    %v2063 = vld [vmem:[#allocation10] sm:$0xff]
    %v2064 = vld [vmem:[#allocation10 + $0x8] sm:$0xff]
    %v2065 = vld [vmem:[#allocation10 + $0x10] sm:$0xff]
    %v2066 = vld [vmem:[#allocation10 + $0x18] sm:$0xff]
    %v2067 = vld [vmem:[#allocation10 + $0x20] sm:$0xff]
    %v2068 = vld [vmem:[#allocation10 + $0x28] sm:$0xff]
    %v2069 = vld [vmem:[#allocation10 + $0x30] sm:$0xff]
    %v2070 = vld [vmem:[#allocation10 + $0x38] sm:$0xff]
    %v2071 = vld [vmem:[#allocation10 + $0x40] sm:$0xff]
    %v2072 = vld [vmem:[#allocation10 + $0x48] sm:$0xff]
    %v2073 = vld [vmem:[#allocation10 + $0x50] sm:$0xff]
    %v2074 = vld [vmem:[#allocation10 + $0x58] sm:$0xff]
    %v2075 = vld [vmem:[#allocation10 + $0x60] sm:$0xff]
    %v2076 = vld [vmem:[#allocation10 + $0x68] sm:$0xff]
    %v2077 = vld [vmem:[#allocation10 + $0x70] sm:$0xff]
    %v2078 = vld [vmem:[#allocation10 + $0x78] sm:$0xff]
    %v2079 = vld [vmem:[#allocation10 + $0x80] sm:$0xff]
    %v2080 = vld [vmem:[#allocation10 + $0x88] sm:$0xff]
    %v2081 = vld [vmem:[#allocation10 + $0x90] sm:$0xff]
    %v2082 = vld [vmem:[#allocation10 + $0x98] sm:$0xff]
    %v2083 = vld [vmem:[#allocation10 + $0xa0] sm:$0xff]
    %v2084 = vld [vmem:[#allocation10 + $0xa8] sm:$0xff]
    %v2085 = vld [vmem:[#allocation10 + $0xb0] sm:$0xff]
    %v2086 = vld [vmem:[#allocation10 + $0xb8] sm:$0xff]
    %v2087 = vld [vmem:[#allocation10 + $0xc0] sm:$0xff]
    %v2088 = vld [vmem:[#allocation10 + $0xc8] sm:$0xff]
    %v2089 = vld [vmem:[#allocation10 + $0xd0] sm:$0xff]
    %v2090 = vld [vmem:[#allocation10 + $0xd8] sm:$0xff]
    %v2091 = vld [vmem:[#allocation10 + $0xe0] sm:$0xff]
    %v2092 = vld [vmem:[#allocation10 + $0xe8] sm:$0xff]
    %v2093 = vld [vmem:[#allocation10 + $0xf0] sm:$0xff]
    %v2094 = vld [vmem:[#allocation10 + $0xf8] sm:$0xff]
    %v2095 = vld [vmem:[%s7] sm:$0xf]
    %v2097 = vlaneseq
    %v2098 = vshrl.u32 %v2097, 7
    %v2099 = vsub.s32 0, %v2098
    %v2100 = vrot.slane %v2095, %v2099
    %v2101 = vlaneseq
    %v2102 = vshrl.u32 %v2101, 7
    %v2103 = vsub.s32 1, %v2102
    %v2104 = vrot.slane %v2095, %v2103
    %v2105 = vlaneseq
    %v2106 = vshrl.u32 %v2105, 7
    %v2107 = vsub.s32 2, %v2106
    %v2108 = vrot.slane %v2095, %v2107
    %v2109 = vlaneseq
    %v2110 = vshrl.u32 %v2109, 7
    %v2111 = vsub.s32 3, %v2110
    %v2112 = vrot.slane %v2095, %v2111
    %v2149 = vunpack.c.l.b16 %v2063
    %v2150 = vunpack.c.h.b16 %v2063
    %v2151 = vunpack.c.l.b16 %v2064
    %v2152 = vunpack.c.h.b16 %v2064
    %v2153 = vunpack.c.l.b16 %v2065
    %v2154 = vunpack.c.h.b16 %v2065
    %v2155 = vunpack.c.l.b16 %v2066
    %v2156 = vunpack.c.h.b16 %v2066
    %v2157 = vunpack.c.l.b16 %v2067
    %v2158 = vunpack.c.h.b16 %v2067
    %v2159 = vunpack.c.l.b16 %v2068
    %v2160 = vunpack.c.h.b16 %v2068
    %v2161 = vunpack.c.l.b16 %v2069
    %v2162 = vunpack.c.h.b16 %v2069
    %v2163 = vunpack.c.l.b16 %v2070
    %v2164 = vunpack.c.h.b16 %v2070
    %v2165 = vunpack.c.l.b16 %v2071
    %v2166 = vunpack.c.h.b16 %v2071
    %v2167 = vunpack.c.l.b16 %v2072
    %v2168 = vunpack.c.h.b16 %v2072
    %v2169 = vunpack.c.l.b16 %v2073
    %v2170 = vunpack.c.h.b16 %v2073
    %v2171 = vunpack.c.l.b16 %v2074
    %v2172 = vunpack.c.h.b16 %v2074
    %v2173 = vunpack.c.l.b16 %v2075
    %v2174 = vunpack.c.h.b16 %v2075
    %v2175 = vunpack.c.l.b16 %v2076
    %v2176 = vunpack.c.h.b16 %v2076
    %v2177 = vunpack.c.l.b16 %v2077
    %v2178 = vunpack.c.h.b16 %v2077
    %v2179 = vunpack.c.l.b16 %v2078
    %v2180 = vunpack.c.h.b16 %v2078
    %v2181 = vunpack.c.l.b16 %v2079
    %v2182 = vunpack.c.h.b16 %v2079
    %v2183 = vunpack.c.l.b16 %v2080
    %v2184 = vunpack.c.h.b16 %v2080
    %v2185 = vunpack.c.l.b16 %v2081
    %v2186 = vunpack.c.h.b16 %v2081
    %v2187 = vunpack.c.l.b16 %v2082
    %v2188 = vunpack.c.h.b16 %v2082
    %v2189 = vunpack.c.l.b16 %v2083
    %v2190 = vunpack.c.h.b16 %v2083
    %v2191 = vunpack.c.l.b16 %v2084
    %v2192 = vunpack.c.h.b16 %v2084
    %v2193 = vunpack.c.l.b16 %v2085
    %v2194 = vunpack.c.h.b16 %v2085
    %v2195 = vunpack.c.l.b16 %v2086
    %v2196 = vunpack.c.h.b16 %v2086
    %v2197 = vunpack.c.l.b16 %v2087
    %v2198 = vunpack.c.h.b16 %v2087
    %v2199 = vunpack.c.l.b16 %v2088
    %v2200 = vunpack.c.h.b16 %v2088
    %v2201 = vunpack.c.l.b16 %v2089
    %v2202 = vunpack.c.h.b16 %v2089
    %v2203 = vunpack.c.l.b16 %v2090
    %v2204 = vunpack.c.h.b16 %v2090
    %v2205 = vunpack.c.l.b16 %v2091
    %v2206 = vunpack.c.h.b16 %v2091
    %v2207 = vunpack.c.l.b16 %v2092
    %v2208 = vunpack.c.h.b16 %v2092
    %v2209 = vunpack.c.l.b16 %v2093
    %v2210 = vunpack.c.h.b16 %v2093
    %v2211 = vunpack.c.l.b16 %v2094
    %v2212 = vunpack.c.h.b16 %v2094
    %v2213 = vpack.c.b16 %v2153, %v2149
    %v2214 = vpack.c.b16 %v2154, %v2150
    %v2215 = vpack.c.b16 %v2155, %v2151
    %v2216 = vpack.c.b16 %v2156, %v2152
    %v2217 = vpack.c.b16 %v2161, %v2157
    %v2218 = vpack.c.b16 %v2162, %v2158
    %v2219 = vpack.c.b16 %v2163, %v2159
    %v2220 = vpack.c.b16 %v2164, %v2160
    %v2221 = vpack.c.b16 %v2169, %v2165
    %v2222 = vpack.c.b16 %v2170, %v2166
    %v2223 = vpack.c.b16 %v2171, %v2167
    %v2224 = vpack.c.b16 %v2172, %v2168
    %v2225 = vpack.c.b16 %v2177, %v2173
    %v2226 = vpack.c.b16 %v2178, %v2174
    %v2227 = vpack.c.b16 %v2179, %v2175
    %v2228 = vpack.c.b16 %v2180, %v2176
    %v2229 = vpack.c.b16 %v2185, %v2181
    %v2230 = vpack.c.b16 %v2186, %v2182
    %v2231 = vpack.c.b16 %v2187, %v2183
    %v2232 = vpack.c.b16 %v2188, %v2184
    %v2233 = vpack.c.b16 %v2193, %v2189
    %v2234 = vpack.c.b16 %v2194, %v2190
    %v2235 = vpack.c.b16 %v2195, %v2191
    %v2236 = vpack.c.b16 %v2196, %v2192
    %v2237 = vpack.c.b16 %v2201, %v2197
    %v2238 = vpack.c.b16 %v2202, %v2198
    %v2239 = vpack.c.b16 %v2203, %v2199
    %v2240 = vpack.c.b16 %v2204, %v2200
    %v2241 = vpack.c.b16 %v2209, %v2205
    %v2242 = vpack.c.b16 %v2210, %v2206
    %v2243 = vpack.c.b16 %v2211, %v2207
    %v2244 = vpack.c.b16 %v2212, %v2208
    %2277 = vmatprep.subr.bf16.mxu0 %v2214
    %2278 = vmatpush1.bf16.msra.mxu0 %v2213
    %2279 = vmatprep.subr.bf16.mxu0 %v2218
    %2280 = vmatpush1.bf16.msra.mxu0 %v2217
    %2281 = vmatprep.subr.bf16.mxu0 %v2222
    %2282 = vmatpush1.bf16.msra.mxu0 %v2221
    %2283 = vmatprep.subr.bf16.mxu0 %v2226
    %2284 = vmatpush1.bf16.msra.mxu0 %v2225
    %2285 = vmatprep.subr.bf16.mxu0 %v2230
    %2286 = vmatpush1.bf16.msra.mxu0 %v2229
    %2287 = vmatprep.subr.bf16.mxu0 %v2234
    %2288 = vmatpush1.bf16.msra.mxu0 %v2233
    %2289 = vmatprep.subr.bf16.mxu0 %v2238
    %2290 = vmatpush1.bf16.msra.mxu0 %v2237
    %2291 = vmatprep.subr.bf16.mxu0 %v2242
    %2292 = vmatpush1.bf16.msra.mxu0 %v2241
    %2293 = vmatprep.subr.bf16.mxu0 0
    %2294 = vmatpush1.bf16.msra.mxu0 0
    %2295 = vmatprep.subr.bf16.mxu0 0
    %2296 = vmatpush1.bf16.msra.mxu0 0
    %2297 = vmatprep.subr.bf16.mxu0 0
    %2298 = vmatpush1.bf16.msra.mxu0 0
    %2299 = vmatprep.subr.bf16.mxu0 0
    %2300 = vmatpush1.bf16.msra.mxu0 0
    %2301 = vmatprep.subr.bf16.mxu0 0
    %2302 = vmatpush1.bf16.msra.mxu0 0
    %2303 = vmatprep.subr.bf16.mxu0 0
    %2304 = vmatpush1.bf16.msra.mxu0 0
    %2305 = vmatprep.subr.bf16.mxu0 0
    %2306 = vmatpush1.bf16.msra.mxu0 0
    %2307 = vmatprep.subr.bf16.mxu0 0
    %2308 = vmatpush1.bf16.msra.mxu0 0
    %2309 = vmatprep.mubr.bf16.mxu0 0
    %2310 = vmatmul.mubr.bf16.gmra.mrb[0].mxu0 %v2062
    %v2311 = vpop.f32.mrb[0].mxu0
    %v2312 = vadd.f32 %v2100, %v2311
    %v2313 = vpop.f32.mrb[0].mxu0
    %v2314 = vadd.f32 %v2104, %v2313
    %v2315 = vpop.f32.mrb[0].mxu0
    %v2316 = vadd.f32 %v2100, %v2315
    %v2317 = vpop.f32.mrb[0].mxu0
    %v2318 = vadd.f32 %v2104, %v2317
    %2319 = vdwg.mxu0
    %2320 = vmatprep.subr.bf16.mxu0 %v2216
    %2321 = vmatpush1.bf16.msra.mxu0 %v2215
    %2322 = vmatprep.subr.bf16.mxu0 %v2220
    %2323 = vmatpush1.bf16.msra.mxu0 %v2219
    %2324 = vmatprep.subr.bf16.mxu0 %v2224
    %2325 = vmatpush1.bf16.msra.mxu0 %v2223
    %2326 = vmatprep.subr.bf16.mxu0 %v2228
    %2327 = vmatpush1.bf16.msra.mxu0 %v2227
    %2328 = vmatprep.subr.bf16.mxu0 %v2232
    %2329 = vmatpush1.bf16.msra.mxu0 %v2231
    %2330 = vmatprep.subr.bf16.mxu0 %v2236
    %2331 = vmatpush1.bf16.msra.mxu0 %v2235
    %2332 = vmatprep.subr.bf16.mxu0 %v2240
    %2333 = vmatpush1.bf16.msra.mxu0 %v2239
    %2334 = vmatprep.subr.bf16.mxu0 %v2244
    %2335 = vmatpush1.bf16.msra.mxu0 %v2243
    %2336 = vmatprep.subr.bf16.mxu0 0
    %2337 = vmatpush1.bf16.msra.mxu0 0
    %2338 = vmatprep.subr.bf16.mxu0 0
    %2339 = vmatpush1.bf16.msra.mxu0 0
    %2340 = vmatprep.subr.bf16.mxu0 0
    %2341 = vmatpush1.bf16.msra.mxu0 0
    %2342 = vmatprep.subr.bf16.mxu0 0
    %2343 = vmatpush1.bf16.msra.mxu0 0
    %2344 = vmatprep.subr.bf16.mxu0 0
    %2345 = vmatpush1.bf16.msra.mxu0 0
    %2346 = vmatprep.subr.bf16.mxu0 0
    %2347 = vmatpush1.bf16.msra.mxu0 0
    %2348 = vmatprep.subr.bf16.mxu0 0
    %2349 = vmatpush1.bf16.msra.mxu0 0
    %2350 = vmatprep.subr.bf16.mxu0 0
    %2351 = vmatpush1.bf16.msra.mxu0 0
    %2352 = vmatprep.mubr.bf16.mxu0 0
    %2353 = vmatmul.mubr.bf16.gmra.mrb[0].mxu0 %v2062
    %v2354 = vpop.f32.mrb[0].mxu0
    %v2355 = vadd.f32 %v2108, %v2354
    %v2356 = vpop.f32.mrb[0].mxu0
    %v2357 = vadd.f32 %v2112, %v2356
    %v2358 = vpop.f32.mrb[0].mxu0
    %v2359 = vadd.f32 %v2108, %v2358
    %v2360 = vpop.f32.mrb[0].mxu0
    %v2361 = vadd.f32 %v2112, %v2360
    %2362 = vdwg.mxu0
    %v2363 = vmax.f32 %v2312, 0.0
    %v2364 = vmax.f32 %v2314, 0.0
    %v2365 = vmax.f32 %v2355, 0.0
    %v2366 = vmax.f32 %v2357, 0.0
    %v2367 = vmax.f32 %v2316, 0.0
    %v2368 = vmax.f32 %v2318, 0.0
    %v2369 = vmax.f32 %v2359, 0.0
    %v2370 = vmax.f32 %v2361, 0.0
    %v2371 = vpack.c.bf16 %v2367, %v2363
    %v2372 = vpack.c.bf16 %v2368, %v2364
    %v2373 = vpack.c.bf16 %v2369, %v2365
    %v2374 = vpack.c.bf16 %v2370, %v2366
    %v2375 = vld [vmem:[#allocation11] sm:$0xff]
    %v2376 = vld [vmem:[#allocation11 + $0x8] sm:$0xff]
    %v2377 = vld [vmem:[#allocation11 + $0x10] sm:$0xff]
    %v2378 = vld [vmem:[#allocation11 + $0x18] sm:$0xf]
    %v2379 = vld [vmem:[#allocation11 + $0x1c] sm:$0xff]
    %v2380 = vld [vmem:[#allocation11 + $0x24] sm:$0xff]
    %v2381 = vld [vmem:[#allocation11 + $0x2c] sm:$0xff]
    %v2382 = vld [vmem:[#allocation11 + $0x34] sm:$0xf]
    %v2383 = vld [vmem:[#allocation11 + $0x38] sm:$0xff]
    %v2384 = vld [vmem:[#allocation11 + $0x40] sm:$0xff]
    %v2385 = vld [vmem:[#allocation11 + $0x48] sm:$0xff]
    %v2386 = vld [vmem:[#allocation11 + $0x50] sm:$0xf]
    %v2387 = vld [vmem:[#allocation11 + $0x54] sm:$0xff]
    %v2388 = vld [vmem:[#allocation11 + $0x5c] sm:$0xff]
    %v2389 = vld [vmem:[#allocation11 + $0x64] sm:$0xff]
    %v2390 = vld [vmem:[#allocation11 + $0x6c] sm:$0xf]
    %v2391 = vld [vmem:[#allocation11 + $0x70] sm:$0xff]
    %v2392 = vld [vmem:[#allocation11 + $0x78] sm:$0xff]
    %v2393 = vld [vmem:[#allocation11 + $0x80] sm:$0xff]
    %v2394 = vld [vmem:[#allocation11 + $0x88] sm:$0xf]
    %v2395 = vld [vmem:[#allocation11 + $0x8c] sm:$0xff]
    %v2396 = vld [vmem:[#allocation11 + $0x94] sm:$0xff]
    %v2397 = vld [vmem:[#allocation11 + $0x9c] sm:$0xff]
    %v2398 = vld [vmem:[#allocation11 + $0xa4] sm:$0xf]
    %v2399 = vld [vmem:[#allocation11 + $0xa8] sm:$0xff]
    %v2400 = vld [vmem:[#allocation11 + $0xb0] sm:$0xff]
    %v2401 = vld [vmem:[#allocation11 + $0xb8] sm:$0xff]
    %v2402 = vld [vmem:[#allocation11 + $0xc0] sm:$0xf]
    %v2403 = vld [vmem:[#allocation11 + $0xc4] sm:$0xff]
    %v2404 = vld [vmem:[#allocation11 + $0xcc] sm:$0xff]
    %v2405 = vld [vmem:[#allocation11 + $0xd4] sm:$0xff]
    %v2406 = vld [vmem:[#allocation11 + $0xdc] sm:$0xf]
    %v2407 = vld [vmem:[#allocation11 + $0xe0] sm:$0xff]
    %v2408 = vld [vmem:[#allocation11 + $0xe8] sm:$0xff]
    %v2409 = vld [vmem:[#allocation11 + $0xf0] sm:$0xff]
    %v2410 = vld [vmem:[#allocation11 + $0xf8] sm:$0xf]
    %v2411 = vld [vmem:[#allocation11 + $0xfc] sm:$0xff]
    %v2412 = vld [vmem:[#allocation11 + $0x104] sm:$0xff]
    %v2413 = vld [vmem:[#allocation11 + $0x10c] sm:$0xff]
    %v2414 = vld [vmem:[#allocation11 + $0x114] sm:$0xf]
    %v2415 = vld [vmem:[#allocation11 + $0x118] sm:$0xff]
    %v2416 = vld [vmem:[#allocation11 + $0x120] sm:$0xff]
    %v2417 = vld [vmem:[#allocation11 + $0x128] sm:$0xff]
    %v2418 = vld [vmem:[#allocation11 + $0x130] sm:$0xf]
    %v2419 = vld [vmem:[#allocation11 + $0x134] sm:$0xff]
    %v2420 = vld [vmem:[#allocation11 + $0x13c] sm:$0xff]
    %v2421 = vld [vmem:[#allocation11 + $0x144] sm:$0xff]
    %v2422 = vld [vmem:[#allocation11 + $0x14c] sm:$0xf]
    %v2423 = vld [vmem:[#allocation11 + $0x150] sm:$0xff]
    %v2424 = vld [vmem:[#allocation11 + $0x158] sm:$0xff]
    %v2425 = vld [vmem:[#allocation11 + $0x160] sm:$0xff]
    %v2426 = vld [vmem:[#allocation11 + $0x168] sm:$0xf]
    %v2427 = vld [vmem:[#allocation11 + $0x16c] sm:$0xff]
    %v2428 = vld [vmem:[#allocation11 + $0x174] sm:$0xff]
    %v2429 = vld [vmem:[#allocation11 + $0x17c] sm:$0xff]
    %v2430 = vld [vmem:[#allocation11 + $0x184] sm:$0xf]
    %v2431 = vld [vmem:[#allocation11 + $0x188] sm:$0xff]
    %v2432 = vld [vmem:[#allocation11 + $0x190] sm:$0xff]
    %v2433 = vld [vmem:[#allocation11 + $0x198] sm:$0xff]
    %v2434 = vld [vmem:[#allocation11 + $0x1a0] sm:$0xf]
    %v2435 = vld [vmem:[#allocation11 + $0x1a4] sm:$0xff]
    %v2436 = vld [vmem:[#allocation11 + $0x1ac] sm:$0xff]
    %v2437 = vld [vmem:[#allocation11 + $0x1b4] sm:$0xff]
    %v2438 = vld [vmem:[#allocation11 + $0x1bc] sm:$0xf]
    %v2439 = vld [vmem:[#allocation11 + $0x1c0] sm:$0xff]
    %v2440 = vld [vmem:[#allocation11 + $0x1c8] sm:$0xff]
    %v2441 = vld [vmem:[#allocation11 + $0x1d0] sm:$0xff]
    %v2442 = vld [vmem:[#allocation11 + $0x1d8] sm:$0xf]
    %v2443 = vld [vmem:[#allocation11 + $0x1dc] sm:$0xff]
    %v2444 = vld [vmem:[#allocation11 + $0x1e4] sm:$0xff]
    %v2445 = vld [vmem:[#allocation11 + $0x1ec] sm:$0xff]
    %v2446 = vld [vmem:[#allocation11 + $0x1f4] sm:$0xf]
    %v2447 = vld [vmem:[#allocation11 + $0x1f8] sm:$0xff]
    %v2448 = vld [vmem:[#allocation11 + $0x200] sm:$0xff]
    %v2449 = vld [vmem:[#allocation11 + $0x208] sm:$0xff]
    %v2450 = vld [vmem:[#allocation11 + $0x210] sm:$0xf]
    %v2451 = vld [vmem:[#allocation11 + $0x214] sm:$0xff]
    %v2452 = vld [vmem:[#allocation11 + $0x21c] sm:$0xff]
    %v2453 = vld [vmem:[#allocation11 + $0x224] sm:$0xff]
    %v2454 = vld [vmem:[#allocation11 + $0x22c] sm:$0xf]
    %v2455 = vld [vmem:[#allocation11 + $0x230] sm:$0xff]
    %v2456 = vld [vmem:[#allocation11 + $0x238] sm:$0xff]
    %v2457 = vld [vmem:[#allocation11 + $0x240] sm:$0xff]
    %v2458 = vld [vmem:[#allocation11 + $0x248] sm:$0xf]
    %v2459 = vld [vmem:[#allocation11 + $0x24c] sm:$0xff]
    %v2460 = vld [vmem:[#allocation11 + $0x254] sm:$0xff]
    %v2461 = vld [vmem:[#allocation11 + $0x25c] sm:$0xff]
    %v2462 = vld [vmem:[#allocation11 + $0x264] sm:$0xf]
    %v2463 = vld [vmem:[#allocation11 + $0x268] sm:$0xff]
    %v2464 = vld [vmem:[#allocation11 + $0x270] sm:$0xff]
    %v2465 = vld [vmem:[#allocation11 + $0x278] sm:$0xff]
    %v2466 = vld [vmem:[#allocation11 + $0x280] sm:$0xf]
    %v2467 = vld [vmem:[#allocation11 + $0x284] sm:$0xff]
    %v2468 = vld [vmem:[#allocation11 + $0x28c] sm:$0xff]
    %v2469 = vld [vmem:[#allocation11 + $0x294] sm:$0xff]
    %v2470 = vld [vmem:[#allocation11 + $0x29c] sm:$0xf]
    %v2471 = vld [vmem:[#allocation11 + $0x2a0] sm:$0xff]
    %v2472 = vld [vmem:[#allocation11 + $0x2a8] sm:$0xff]
    %v2473 = vld [vmem:[#allocation11 + $0x2b0] sm:$0xff]
    %v2474 = vld [vmem:[#allocation11 + $0x2b8] sm:$0xf]
    %v2475 = vld [vmem:[#allocation11 + $0x2bc] sm:$0xff]
    %v2476 = vld [vmem:[#allocation11 + $0x2c4] sm:$0xff]
    %v2477 = vld [vmem:[#allocation11 + $0x2cc] sm:$0xff]
    %v2478 = vld [vmem:[#allocation11 + $0x2d4] sm:$0xf]
    %v2479 = vld [vmem:[#allocation11 + $0x2d8] sm:$0xff]
    %v2480 = vld [vmem:[#allocation11 + $0x2e0] sm:$0xff]
    %v2481 = vld [vmem:[#allocation11 + $0x2e8] sm:$0xff]
    %v2482 = vld [vmem:[#allocation11 + $0x2f0] sm:$0xf]
    %v2483 = vld [vmem:[#allocation11 + $0x2f4] sm:$0xff]
    %v2484 = vld [vmem:[#allocation11 + $0x2fc] sm:$0xff]
    %v2485 = vld [vmem:[#allocation11 + $0x304] sm:$0xff]
    %v2486 = vld [vmem:[#allocation11 + $0x30c] sm:$0xf]
    %v2487 = vld [vmem:[#allocation11 + $0x310] sm:$0xff]
    %v2488 = vld [vmem:[#allocation11 + $0x318] sm:$0xff]
    %v2489 = vld [vmem:[#allocation11 + $0x320] sm:$0xff]
    %v2490 = vld [vmem:[#allocation11 + $0x328] sm:$0xf]
    %v2491 = vld [vmem:[#allocation11 + $0x32c] sm:$0xff]
    %v2492 = vld [vmem:[#allocation11 + $0x334] sm:$0xff]
    %v2493 = vld [vmem:[#allocation11 + $0x33c] sm:$0xff]
    %v2494 = vld [vmem:[#allocation11 + $0x344] sm:$0xf]
    %v2495 = vld [vmem:[#allocation11 + $0x348] sm:$0xff]
    %v2496 = vld [vmem:[#allocation11 + $0x350] sm:$0xff]
    %v2497 = vld [vmem:[#allocation11 + $0x358] sm:$0xff]
    %v2498 = vld [vmem:[#allocation11 + $0x360] sm:$0xf]
    %v2499 = vld [vmem:[#allocation11 + $0x364] sm:$0xff]
    %v2500 = vld [vmem:[#allocation11 + $0x36c] sm:$0xff]
    %v2501 = vld [vmem:[#allocation11 + $0x374] sm:$0xff]
    %v2502 = vld [vmem:[#allocation11 + $0x37c] sm:$0xf]
    %v2503 = vld [vmem:[#allocation11 + $0x380] sm:$0xff]
    %v2504 = vld [vmem:[#allocation11 + $0x388] sm:$0xff]
    %v2505 = vld [vmem:[#allocation11 + $0x390] sm:$0xff]
    %v2506 = vld [vmem:[#allocation11 + $0x398] sm:$0xf]
    %v2507 = vld [vmem:[#allocation11 + $0x39c] sm:$0xff]
    %v2508 = vld [vmem:[#allocation11 + $0x3a4] sm:$0xff]
    %v2509 = vld [vmem:[#allocation11 + $0x3ac] sm:$0xff]
    %v2510 = vld [vmem:[#allocation11 + $0x3b4] sm:$0xf]
    %v2511 = vld [vmem:[#allocation11 + $0x3b8] sm:$0xff]
    %v2512 = vld [vmem:[#allocation11 + $0x3c0] sm:$0xff]
    %v2513 = vld [vmem:[#allocation11 + $0x3c8] sm:$0xff]
    %v2514 = vld [vmem:[#allocation11 + $0x3d0] sm:$0xf]
    %v2515 = vld [vmem:[#allocation11 + $0x3d4] sm:$0xff]
    %v2516 = vld [vmem:[#allocation11 + $0x3dc] sm:$0xff]
    %v2517 = vld [vmem:[#allocation11 + $0x3e4] sm:$0xff]
    %v2518 = vld [vmem:[#allocation11 + $0x3ec] sm:$0xf]
    %v2519 = vld [vmem:[#allocation11 + $0x3f0] sm:$0xff]
    %v2520 = vld [vmem:[#allocation11 + $0x3f8] sm:$0xff]
    %v2521 = vld [vmem:[#allocation11 + $0x400] sm:$0xff]
    %v2522 = vld [vmem:[#allocation11 + $0x408] sm:$0xf]
    %v2523 = vld [vmem:[#allocation11 + $0x40c] sm:$0xff]
    %v2524 = vld [vmem:[#allocation11 + $0x414] sm:$0xff]
    %v2525 = vld [vmem:[#allocation11 + $0x41c] sm:$0xff]
    %v2526 = vld [vmem:[#allocation11 + $0x424] sm:$0xf]
    %v2527 = vld [vmem:[#allocation11 + $0x428] sm:$0xff]
    %v2528 = vld [vmem:[#allocation11 + $0x430] sm:$0xff]
    %v2529 = vld [vmem:[#allocation11 + $0x438] sm:$0xff]
    %v2530 = vld [vmem:[#allocation11 + $0x440] sm:$0xf]
    %v2531 = vld [vmem:[#allocation11 + $0x444] sm:$0xff]
    %v2532 = vld [vmem:[#allocation11 + $0x44c] sm:$0xff]
    %v2533 = vld [vmem:[#allocation11 + $0x454] sm:$0xff]
    %v2534 = vld [vmem:[#allocation11 + $0x45c] sm:$0xf]
    %v2535 = vld [vmem:[#allocation11 + $0x460] sm:$0xff]
    %v2536 = vld [vmem:[#allocation11 + $0x468] sm:$0xff]
    %v2537 = vld [vmem:[#allocation11 + $0x470] sm:$0xff]
    %v2538 = vld [vmem:[#allocation11 + $0x478] sm:$0xf]
    %v2539 = vld [vmem:[#allocation11 + $0x47c] sm:$0xff]
    %v2540 = vld [vmem:[#allocation11 + $0x484] sm:$0xff]
    %v2541 = vld [vmem:[#allocation11 + $0x48c] sm:$0xff]
    %v2542 = vld [vmem:[#allocation11 + $0x494] sm:$0xf]
    %v2543 = vld [vmem:[#allocation11 + $0x498] sm:$0xff]
    %v2544 = vld [vmem:[#allocation11 + $0x4a0] sm:$0xff]
    %v2545 = vld [vmem:[#allocation11 + $0x4a8] sm:$0xff]
    %v2546 = vld [vmem:[#allocation11 + $0x4b0] sm:$0xf]
    %v2547 = vld [vmem:[#allocation11 + $0x4b4] sm:$0xff]
    %v2548 = vld [vmem:[#allocation11 + $0x4bc] sm:$0xff]
    %v2549 = vld [vmem:[#allocation11 + $0x4c4] sm:$0xff]
    %v2550 = vld [vmem:[#allocation11 + $0x4cc] sm:$0xf]
    %v2551 = vld [vmem:[#allocation11 + $0x4d0] sm:$0xff]
    %v2552 = vld [vmem:[#allocation11 + $0x4d8] sm:$0xff]
    %v2553 = vld [vmem:[#allocation11 + $0x4e0] sm:$0xff]
    %v2554 = vld [vmem:[#allocation11 + $0x4e8] sm:$0xf]
    %v2555 = vld [vmem:[#allocation11 + $0x4ec] sm:$0xff]
    %v2556 = vld [vmem:[#allocation11 + $0x4f4] sm:$0xff]
    %v2557 = vld [vmem:[#allocation11 + $0x4fc] sm:$0xff]
    %v2558 = vld [vmem:[#allocation11 + $0x504] sm:$0xf]
    %v2559 = vld [vmem:[#allocation11 + $0x508] sm:$0xff]
    %v2560 = vld [vmem:[#allocation11 + $0x510] sm:$0xff]
    %v2561 = vld [vmem:[#allocation11 + $0x518] sm:$0xff]
    %v2562 = vld [vmem:[#allocation11 + $0x520] sm:$0xf]
    %v2563 = vld [vmem:[#allocation11 + $0x524] sm:$0xff]
    %v2564 = vld [vmem:[#allocation11 + $0x52c] sm:$0xff]
    %v2565 = vld [vmem:[#allocation11 + $0x534] sm:$0xff]
    %v2566 = vld [vmem:[#allocation11 + $0x53c] sm:$0xf]
    %v2567 = vld [vmem:[#allocation11 + $0x540] sm:$0xff]
    %v2568 = vld [vmem:[#allocation11 + $0x548] sm:$0xff]
    %v2569 = vld [vmem:[#allocation11 + $0x550] sm:$0xff]
    %v2570 = vld [vmem:[#allocation11 + $0x558] sm:$0xf]
    %v2571 = vld [vmem:[#allocation11 + $0x55c] sm:$0xff]
    %v2572 = vld [vmem:[#allocation11 + $0x564] sm:$0xff]
    %v2573 = vld [vmem:[#allocation11 + $0x56c] sm:$0xff]
    %v2574 = vld [vmem:[#allocation11 + $0x574] sm:$0xf]
    %v2575 = vld [vmem:[#allocation11 + $0x578] sm:$0xff]
    %v2576 = vld [vmem:[#allocation11 + $0x580] sm:$0xff]
    %v2577 = vld [vmem:[#allocation11 + $0x588] sm:$0xff]
    %v2578 = vld [vmem:[#allocation11 + $0x590] sm:$0xf]
    %v2579 = vld [vmem:[#allocation11 + $0x594] sm:$0xff]
    %v2580 = vld [vmem:[#allocation11 + $0x59c] sm:$0xff]
    %v2581 = vld [vmem:[#allocation11 + $0x5a4] sm:$0xff]
    %v2582 = vld [vmem:[#allocation11 + $0x5ac] sm:$0xf]
    %v2583 = vld [vmem:[#allocation11 + $0x5b0] sm:$0xff]
    %v2584 = vld [vmem:[#allocation11 + $0x5b8] sm:$0xff]
    %v2585 = vld [vmem:[#allocation11 + $0x5c0] sm:$0xff]
    %v2586 = vld [vmem:[#allocation11 + $0x5c8] sm:$0xf]
    %v2587 = vld [vmem:[#allocation11 + $0x5cc] sm:$0xff]
    %v2588 = vld [vmem:[#allocation11 + $0x5d4] sm:$0xff]
    %v2589 = vld [vmem:[#allocation11 + $0x5dc] sm:$0xff]
    %v2590 = vld [vmem:[#allocation11 + $0x5e4] sm:$0xf]
    %v2591 = vld [vmem:[#allocation11 + $0x5e8] sm:$0xff]
    %v2592 = vld [vmem:[#allocation11 + $0x5f0] sm:$0xff]
    %v2593 = vld [vmem:[#allocation11 + $0x5f8] sm:$0xff]
    %v2594 = vld [vmem:[#allocation11 + $0x600] sm:$0xf]
    %v2595 = vld [vmem:[#allocation11 + $0x604] sm:$0xff]
    %v2596 = vld [vmem:[#allocation11 + $0x60c] sm:$0xff]
    %v2597 = vld [vmem:[#allocation11 + $0x614] sm:$0xff]
    %v2598 = vld [vmem:[#allocation11 + $0x61c] sm:$0xf]
    %v2599 = vld [vmem:[#allocation11 + $0x620] sm:$0xff]
    %v2600 = vld [vmem:[#allocation11 + $0x628] sm:$0xff]
    %v2601 = vld [vmem:[#allocation11 + $0x630] sm:$0xff]
    %v2602 = vld [vmem:[#allocation11 + $0x638] sm:$0xf]
    %v2603 = vld [vmem:[#allocation11 + $0x63c] sm:$0xff]
    %v2604 = vld [vmem:[#allocation11 + $0x644] sm:$0xff]
    %v2605 = vld [vmem:[#allocation11 + $0x64c] sm:$0xff]
    %v2606 = vld [vmem:[#allocation11 + $0x654] sm:$0xf]
    %v2607 = vld [vmem:[#allocation11 + $0x658] sm:$0xff]
    %v2608 = vld [vmem:[#allocation11 + $0x660] sm:$0xff]
    %v2609 = vld [vmem:[#allocation11 + $0x668] sm:$0xff]
    %v2610 = vld [vmem:[#allocation11 + $0x670] sm:$0xf]
    %v2611 = vld [vmem:[#allocation11 + $0x674] sm:$0xff]
    %v2612 = vld [vmem:[#allocation11 + $0x67c] sm:$0xff]
    %v2613 = vld [vmem:[#allocation11 + $0x684] sm:$0xff]
    %v2614 = vld [vmem:[#allocation11 + $0x68c] sm:$0xf]
    %v2615 = vld [vmem:[#allocation11 + $0x690] sm:$0xff]
    %v2616 = vld [vmem:[#allocation11 + $0x698] sm:$0xff]
    %v2617 = vld [vmem:[#allocation11 + $0x6a0] sm:$0xff]
    %v2618 = vld [vmem:[#allocation11 + $0x6a8] sm:$0xf]
    %v2619 = vld [vmem:[#allocation11 + $0x6ac] sm:$0xff]
    %v2620 = vld [vmem:[#allocation11 + $0x6b4] sm:$0xff]
    %v2621 = vld [vmem:[#allocation11 + $0x6bc] sm:$0xff]
    %v2622 = vld [vmem:[#allocation11 + $0x6c4] sm:$0xf]
    %v2623 = vld [vmem:[#allocation11 + $0x6c8] sm:$0xff]
    %v2624 = vld [vmem:[#allocation11 + $0x6d0] sm:$0xff]
    %v2625 = vld [vmem:[#allocation11 + $0x6d8] sm:$0xff]
    %v2626 = vld [vmem:[#allocation11 + $0x6e0] sm:$0xf]
    %v2627 = vld [vmem:[#allocation11 + $0x6e4] sm:$0xff]
    %v2628 = vld [vmem:[#allocation11 + $0x6ec] sm:$0xff]
    %v2629 = vld [vmem:[#allocation11 + $0x6f4] sm:$0xff]
    %v2630 = vld [vmem:[#allocation11 + $0x6fc] sm:$0xf]
    %v2631 = vld [vmem:[%s9] sm:$0xff]
    %v2633 = vlaneseq
    %v2634 = vshrl.u32 %v2633, 7
    %v2635 = vsub.s32 0, %v2634
    %v2636 = vrot.slane %v2631, %v2635
    %v2637 = vlaneseq
    %v2638 = vshrl.u32 %v2637, 7
    %v2639 = vsub.s32 1, %v2638
    %v2640 = vrot.slane %v2631, %v2639
    %v2641 = vlaneseq
    %v2642 = vshrl.u32 %v2641, 7
    %v2643 = vsub.s32 2, %v2642
    %v2644 = vrot.slane %v2631, %v2643
    %v2645 = vlaneseq
    %v2646 = vshrl.u32 %v2645, 7
    %v2647 = vsub.s32 3, %v2646
    %v2648 = vrot.slane %v2631, %v2647
    %v2649 = vlaneseq
    %v2650 = vshrl.u32 %v2649, 7
    %v2651 = vsub.s32 4, %v2650
    %v2652 = vrot.slane %v2631, %v2651
    %v2653 = vlaneseq
    %v2654 = vshrl.u32 %v2653, 7
    %v2655 = vsub.s32 5, %v2654
    %v2656 = vrot.slane %v2631, %v2655
    %v2657 = vlaneseq
    %v2658 = vshrl.u32 %v2657, 7
    %v2659 = vsub.s32 6, %v2658
    %v2660 = vrot.slane %v2631, %v2659
    %v2924 = vunpack.c.l.b16 %v2375
    %v2925 = vunpack.c.h.b16 %v2375
    %v2926 = vunpack.c.l.b16 %v2376
    %v2927 = vunpack.c.h.b16 %v2376
    %v2928 = vunpack.c.l.b16 %v2377
    %v2929 = vunpack.c.h.b16 %v2377
    %v2930 = vunpack.c.l.b16 %v2378
    %v2931 = vunpack.c.l.b16 %v2379
    %v2932 = vunpack.c.h.b16 %v2379
    %v2933 = vunpack.c.l.b16 %v2380
    %v2934 = vunpack.c.h.b16 %v2380
    %v2935 = vunpack.c.l.b16 %v2381
    %v2936 = vunpack.c.h.b16 %v2381
    %v2937 = vunpack.c.l.b16 %v2382
    %v2938 = vunpack.c.l.b16 %v2383
    %v2939 = vunpack.c.h.b16 %v2383
    %v2940 = vunpack.c.l.b16 %v2384
    %v2941 = vunpack.c.h.b16 %v2384
    %v2942 = vunpack.c.l.b16 %v2385
    %v2943 = vunpack.c.h.b16 %v2385
    %v2944 = vunpack.c.l.b16 %v2386
    %v2945 = vunpack.c.l.b16 %v2387
    %v2946 = vunpack.c.h.b16 %v2387
    %v2947 = vunpack.c.l.b16 %v2388
    %v2948 = vunpack.c.h.b16 %v2388
    %v2949 = vunpack.c.l.b16 %v2389
    %v2950 = vunpack.c.h.b16 %v2389
    %v2951 = vunpack.c.l.b16 %v2390
    %v2952 = vunpack.c.l.b16 %v2391
    %v2953 = vunpack.c.h.b16 %v2391
    %v2954 = vunpack.c.l.b16 %v2392
    %v2955 = vunpack.c.h.b16 %v2392
    %v2956 = vunpack.c.l.b16 %v2393
    %v2957 = vunpack.c.h.b16 %v2393
    %v2958 = vunpack.c.l.b16 %v2394
    %v2959 = vunpack.c.l.b16 %v2395
    %v2960 = vunpack.c.h.b16 %v2395
    %v2961 = vunpack.c.l.b16 %v2396
    %v2962 = vunpack.c.h.b16 %v2396
    %v2963 = vunpack.c.l.b16 %v2397
    %v2964 = vunpack.c.h.b16 %v2397
    %v2965 = vunpack.c.l.b16 %v2398
    %v2966 = vunpack.c.l.b16 %v2399
    %v2967 = vunpack.c.h.b16 %v2399
    %v2968 = vunpack.c.l.b16 %v2400
    %v2969 = vunpack.c.h.b16 %v2400
    %v2970 = vunpack.c.l.b16 %v2401
    %v2971 = vunpack.c.h.b16 %v2401
    %v2972 = vunpack.c.l.b16 %v2402
    %v2973 = vunpack.c.l.b16 %v2403
    %v2974 = vunpack.c.h.b16 %v2403
    %v2975 = vunpack.c.l.b16 %v2404
    %v2976 = vunpack.c.h.b16 %v2404
    %v2977 = vunpack.c.l.b16 %v2405
    %v2978 = vunpack.c.h.b16 %v2405
    %v2979 = vunpack.c.l.b16 %v2406
    %v2980 = vunpack.c.l.b16 %v2407
    %v2981 = vunpack.c.h.b16 %v2407
    %v2982 = vunpack.c.l.b16 %v2408
    %v2983 = vunpack.c.h.b16 %v2408
    %v2984 = vunpack.c.l.b16 %v2409
    %v2985 = vunpack.c.h.b16 %v2409
    %v2986 = vunpack.c.l.b16 %v2410
    %v2987 = vunpack.c.l.b16 %v2411
    %v2988 = vunpack.c.h.b16 %v2411
    %v2989 = vunpack.c.l.b16 %v2412
    %v2990 = vunpack.c.h.b16 %v2412
    %v2991 = vunpack.c.l.b16 %v2413
    %v2992 = vunpack.c.h.b16 %v2413
    %v2993 = vunpack.c.l.b16 %v2414
    %v2994 = vunpack.c.l.b16 %v2415
    %v2995 = vunpack.c.h.b16 %v2415
    %v2996 = vunpack.c.l.b16 %v2416
    %v2997 = vunpack.c.h.b16 %v2416
    %v2998 = vunpack.c.l.b16 %v2417
    %v2999 = vunpack.c.h.b16 %v2417
    %v3000 = vunpack.c.l.b16 %v2418
    %v3001 = vunpack.c.l.b16 %v2419
    %v3002 = vunpack.c.h.b16 %v2419
    %v3003 = vunpack.c.l.b16 %v2420
    %v3004 = vunpack.c.h.b16 %v2420
    %v3005 = vunpack.c.l.b16 %v2421
    %v3006 = vunpack.c.h.b16 %v2421
    %v3007 = vunpack.c.l.b16 %v2422
    %v3008 = vunpack.c.l.b16 %v2423
    %v3009 = vunpack.c.h.b16 %v2423
    %v3010 = vunpack.c.l.b16 %v2424
    %v3011 = vunpack.c.h.b16 %v2424
    %v3012 = vunpack.c.l.b16 %v2425
    %v3013 = vunpack.c.h.b16 %v2425
    %v3014 = vunpack.c.l.b16 %v2426
    %v3015 = vunpack.c.l.b16 %v2427
    %v3016 = vunpack.c.h.b16 %v2427
    %v3017 = vunpack.c.l.b16 %v2428
    %v3018 = vunpack.c.h.b16 %v2428
    %v3019 = vunpack.c.l.b16 %v2429
    %v3020 = vunpack.c.h.b16 %v2429
    %v3021 = vunpack.c.l.b16 %v2430
    %v3022 = vunpack.c.l.b16 %v2431
    %v3023 = vunpack.c.h.b16 %v2431
    %v3024 = vunpack.c.l.b16 %v2432
    %v3025 = vunpack.c.h.b16 %v2432
    %v3026 = vunpack.c.l.b16 %v2433
    %v3027 = vunpack.c.h.b16 %v2433
    %v3028 = vunpack.c.l.b16 %v2434
    %v3029 = vunpack.c.l.b16 %v2435
    %v3030 = vunpack.c.h.b16 %v2435
    %v3031 = vunpack.c.l.b16 %v2436
    %v3032 = vunpack.c.h.b16 %v2436
    %v3033 = vunpack.c.l.b16 %v2437
    %v3034 = vunpack.c.h.b16 %v2437
    %v3035 = vunpack.c.l.b16 %v2438
    %v3036 = vunpack.c.l.b16 %v2439
    %v3037 = vunpack.c.h.b16 %v2439
    %v3038 = vunpack.c.l.b16 %v2440
    %v3039 = vunpack.c.h.b16 %v2440
    %v3040 = vunpack.c.l.b16 %v2441
    %v3041 = vunpack.c.h.b16 %v2441
    %v3042 = vunpack.c.l.b16 %v2442
    %v3043 = vunpack.c.l.b16 %v2443
    %v3044 = vunpack.c.h.b16 %v2443
    %v3045 = vunpack.c.l.b16 %v2444
    %v3046 = vunpack.c.h.b16 %v2444
    %v3047 = vunpack.c.l.b16 %v2445
    %v3048 = vunpack.c.h.b16 %v2445
    %v3049 = vunpack.c.l.b16 %v2446
    %v3050 = vunpack.c.l.b16 %v2447
    %v3051 = vunpack.c.h.b16 %v2447
    %v3052 = vunpack.c.l.b16 %v2448
    %v3053 = vunpack.c.h.b16 %v2448
    %v3054 = vunpack.c.l.b16 %v2449
    %v3055 = vunpack.c.h.b16 %v2449
    %v3056 = vunpack.c.l.b16 %v2450
    %v3057 = vunpack.c.l.b16 %v2451
    %v3058 = vunpack.c.h.b16 %v2451
    %v3059 = vunpack.c.l.b16 %v2452
    %v3060 = vunpack.c.h.b16 %v2452
    %v3061 = vunpack.c.l.b16 %v2453
    %v3062 = vunpack.c.h.b16 %v2453
    %v3063 = vunpack.c.l.b16 %v2454
    %v3064 = vunpack.c.l.b16 %v2455
    %v3065 = vunpack.c.h.b16 %v2455
    %v3066 = vunpack.c.l.b16 %v2456
    %v3067 = vunpack.c.h.b16 %v2456
    %v3068 = vunpack.c.l.b16 %v2457
    %v3069 = vunpack.c.h.b16 %v2457
    %v3070 = vunpack.c.l.b16 %v2458
    %v3071 = vunpack.c.l.b16 %v2459
    %v3072 = vunpack.c.h.b16 %v2459
    %v3073 = vunpack.c.l.b16 %v2460
    %v3074 = vunpack.c.h.b16 %v2460
    %v3075 = vunpack.c.l.b16 %v2461
    %v3076 = vunpack.c.h.b16 %v2461
    %v3077 = vunpack.c.l.b16 %v2462
    %v3078 = vunpack.c.l.b16 %v2463
    %v3079 = vunpack.c.h.b16 %v2463
    %v3080 = vunpack.c.l.b16 %v2464
    %v3081 = vunpack.c.h.b16 %v2464
    %v3082 = vunpack.c.l.b16 %v2465
    %v3083 = vunpack.c.h.b16 %v2465
    %v3084 = vunpack.c.l.b16 %v2466
    %v3085 = vunpack.c.l.b16 %v2467
    %v3086 = vunpack.c.h.b16 %v2467
    %v3087 = vunpack.c.l.b16 %v2468
    %v3088 = vunpack.c.h.b16 %v2468
    %v3089 = vunpack.c.l.b16 %v2469
    %v3090 = vunpack.c.h.b16 %v2469
    %v3091 = vunpack.c.l.b16 %v2470
    %v3092 = vunpack.c.l.b16 %v2471
    %v3093 = vunpack.c.h.b16 %v2471
    %v3094 = vunpack.c.l.b16 %v2472
    %v3095 = vunpack.c.h.b16 %v2472
    %v3096 = vunpack.c.l.b16 %v2473
    %v3097 = vunpack.c.h.b16 %v2473
    %v3098 = vunpack.c.l.b16 %v2474
    %v3099 = vunpack.c.l.b16 %v2475
    %v3100 = vunpack.c.h.b16 %v2475
    %v3101 = vunpack.c.l.b16 %v2476
    %v3102 = vunpack.c.h.b16 %v2476
    %v3103 = vunpack.c.l.b16 %v2477
    %v3104 = vunpack.c.h.b16 %v2477
    %v3105 = vunpack.c.l.b16 %v2478
    %v3106 = vunpack.c.l.b16 %v2479
    %v3107 = vunpack.c.h.b16 %v2479
    %v3108 = vunpack.c.l.b16 %v2480
    %v3109 = vunpack.c.h.b16 %v2480
    %v3110 = vunpack.c.l.b16 %v2481
    %v3111 = vunpack.c.h.b16 %v2481
    %v3112 = vunpack.c.l.b16 %v2482
    %v3113 = vunpack.c.l.b16 %v2483
    %v3114 = vunpack.c.h.b16 %v2483
    %v3115 = vunpack.c.l.b16 %v2484
    %v3116 = vunpack.c.h.b16 %v2484
    %v3117 = vunpack.c.l.b16 %v2485
    %v3118 = vunpack.c.h.b16 %v2485
    %v3119 = vunpack.c.l.b16 %v2486
    %v3120 = vunpack.c.l.b16 %v2487
    %v3121 = vunpack.c.h.b16 %v2487
    %v3122 = vunpack.c.l.b16 %v2488
    %v3123 = vunpack.c.h.b16 %v2488
    %v3124 = vunpack.c.l.b16 %v2489
    %v3125 = vunpack.c.h.b16 %v2489
    %v3126 = vunpack.c.l.b16 %v2490
    %v3127 = vunpack.c.l.b16 %v2491
    %v3128 = vunpack.c.h.b16 %v2491
    %v3129 = vunpack.c.l.b16 %v2492
    %v3130 = vunpack.c.h.b16 %v2492
    %v3131 = vunpack.c.l.b16 %v2493
    %v3132 = vunpack.c.h.b16 %v2493
    %v3133 = vunpack.c.l.b16 %v2494
    %v3134 = vunpack.c.l.b16 %v2495
    %v3135 = vunpack.c.h.b16 %v2495
    %v3136 = vunpack.c.l.b16 %v2496
    %v3137 = vunpack.c.h.b16 %v2496
    %v3138 = vunpack.c.l.b16 %v2497
    %v3139 = vunpack.c.h.b16 %v2497
    %v3140 = vunpack.c.l.b16 %v2498
    %v3141 = vunpack.c.l.b16 %v2499
    %v3142 = vunpack.c.h.b16 %v2499
    %v3143 = vunpack.c.l.b16 %v2500
    %v3144 = vunpack.c.h.b16 %v2500
    %v3145 = vunpack.c.l.b16 %v2501
    %v3146 = vunpack.c.h.b16 %v2501
    %v3147 = vunpack.c.l.b16 %v2502
    %v3148 = vunpack.c.l.b16 %v2503
    %v3149 = vunpack.c.h.b16 %v2503
    %v3150 = vunpack.c.l.b16 %v2504
    %v3151 = vunpack.c.h.b16 %v2504
    %v3152 = vunpack.c.l.b16 %v2505
    %v3153 = vunpack.c.h.b16 %v2505
    %v3154 = vunpack.c.l.b16 %v2506
    %v3155 = vunpack.c.l.b16 %v2507
    %v3156 = vunpack.c.h.b16 %v2507
    %v3157 = vunpack.c.l.b16 %v2508
    %v3158 = vunpack.c.h.b16 %v2508
    %v3159 = vunpack.c.l.b16 %v2509
    %v3160 = vunpack.c.h.b16 %v2509
    %v3161 = vunpack.c.l.b16 %v2510
    %v3162 = vunpack.c.l.b16 %v2511
    %v3163 = vunpack.c.h.b16 %v2511
    %v3164 = vunpack.c.l.b16 %v2512
    %v3165 = vunpack.c.h.b16 %v2512
    %v3166 = vunpack.c.l.b16 %v2513
    %v3167 = vunpack.c.h.b16 %v2513
    %v3168 = vunpack.c.l.b16 %v2514
    %v3169 = vunpack.c.l.b16 %v2515
    %v3170 = vunpack.c.h.b16 %v2515
    %v3171 = vunpack.c.l.b16 %v2516
    %v3172 = vunpack.c.h.b16 %v2516
    %v3173 = vunpack.c.l.b16 %v2517
    %v3174 = vunpack.c.h.b16 %v2517
    %v3175 = vunpack.c.l.b16 %v2518
    %v3176 = vunpack.c.l.b16 %v2519
    %v3177 = vunpack.c.h.b16 %v2519
    %v3178 = vunpack.c.l.b16 %v2520
    %v3179 = vunpack.c.h.b16 %v2520
    %v3180 = vunpack.c.l.b16 %v2521
    %v3181 = vunpack.c.h.b16 %v2521
    %v3182 = vunpack.c.l.b16 %v2522
    %v3183 = vunpack.c.l.b16 %v2523
    %v3184 = vunpack.c.h.b16 %v2523
    %v3185 = vunpack.c.l.b16 %v2524
    %v3186 = vunpack.c.h.b16 %v2524
    %v3187 = vunpack.c.l.b16 %v2525
    %v3188 = vunpack.c.h.b16 %v2525
    %v3189 = vunpack.c.l.b16 %v2526
    %v3190 = vunpack.c.l.b16 %v2527
    %v3191 = vunpack.c.h.b16 %v2527
    %v3192 = vunpack.c.l.b16 %v2528
    %v3193 = vunpack.c.h.b16 %v2528
    %v3194 = vunpack.c.l.b16 %v2529
    %v3195 = vunpack.c.h.b16 %v2529
    %v3196 = vunpack.c.l.b16 %v2530
    %v3197 = vunpack.c.l.b16 %v2531
    %v3198 = vunpack.c.h.b16 %v2531
    %v3199 = vunpack.c.l.b16 %v2532
    %v3200 = vunpack.c.h.b16 %v2532
    %v3201 = vunpack.c.l.b16 %v2533
    %v3202 = vunpack.c.h.b16 %v2533
    %v3203 = vunpack.c.l.b16 %v2534
    %v3204 = vunpack.c.l.b16 %v2535
    %v3205 = vunpack.c.h.b16 %v2535
    %v3206 = vunpack.c.l.b16 %v2536
    %v3207 = vunpack.c.h.b16 %v2536
    %v3208 = vunpack.c.l.b16 %v2537
    %v3209 = vunpack.c.h.b16 %v2537
    %v3210 = vunpack.c.l.b16 %v2538
    %v3211 = vunpack.c.l.b16 %v2539
    %v3212 = vunpack.c.h.b16 %v2539
    %v3213 = vunpack.c.l.b16 %v2540
    %v3214 = vunpack.c.h.b16 %v2540
    %v3215 = vunpack.c.l.b16 %v2541
    %v3216 = vunpack.c.h.b16 %v2541
    %v3217 = vunpack.c.l.b16 %v2542
    %v3218 = vunpack.c.l.b16 %v2543
    %v3219 = vunpack.c.h.b16 %v2543
    %v3220 = vunpack.c.l.b16 %v2544
    %v3221 = vunpack.c.h.b16 %v2544
    %v3222 = vunpack.c.l.b16 %v2545
    %v3223 = vunpack.c.h.b16 %v2545
    %v3224 = vunpack.c.l.b16 %v2546
    %v3225 = vunpack.c.l.b16 %v2547
    %v3226 = vunpack.c.h.b16 %v2547
    %v3227 = vunpack.c.l.b16 %v2548
    %v3228 = vunpack.c.h.b16 %v2548
    %v3229 = vunpack.c.l.b16 %v2549
    %v3230 = vunpack.c.h.b16 %v2549
    %v3231 = vunpack.c.l.b16 %v2550
    %v3232 = vunpack.c.l.b16 %v2551
    %v3233 = vunpack.c.h.b16 %v2551
    %v3234 = vunpack.c.l.b16 %v2552
    %v3235 = vunpack.c.h.b16 %v2552
    %v3236 = vunpack.c.l.b16 %v2553
    %v3237 = vunpack.c.h.b16 %v2553
    %v3238 = vunpack.c.l.b16 %v2554
    %v3239 = vunpack.c.l.b16 %v2555
    %v3240 = vunpack.c.h.b16 %v2555
    %v3241 = vunpack.c.l.b16 %v2556
    %v3242 = vunpack.c.h.b16 %v2556
    %v3243 = vunpack.c.l.b16 %v2557
    %v3244 = vunpack.c.h.b16 %v2557
    %v3245 = vunpack.c.l.b16 %v2558
    %v3246 = vunpack.c.l.b16 %v2559
    %v3247 = vunpack.c.h.b16 %v2559
    %v3248 = vunpack.c.l.b16 %v2560
    %v3249 = vunpack.c.h.b16 %v2560
    %v3250 = vunpack.c.l.b16 %v2561
    %v3251 = vunpack.c.h.b16 %v2561
    %v3252 = vunpack.c.l.b16 %v2562
    %v3253 = vunpack.c.l.b16 %v2563
    %v3254 = vunpack.c.h.b16 %v2563
    %v3255 = vunpack.c.l.b16 %v2564
    %v3256 = vunpack.c.h.b16 %v2564
    %v3257 = vunpack.c.l.b16 %v2565
    %v3258 = vunpack.c.h.b16 %v2565
    %v3259 = vunpack.c.l.b16 %v2566
    %v3260 = vunpack.c.l.b16 %v2567
    %v3261 = vunpack.c.h.b16 %v2567
    %v3262 = vunpack.c.l.b16 %v2568
    %v3263 = vunpack.c.h.b16 %v2568
    %v3264 = vunpack.c.l.b16 %v2569
    %v3265 = vunpack.c.h.b16 %v2569
    %v3266 = vunpack.c.l.b16 %v2570
    %v3267 = vunpack.c.l.b16 %v2571
    %v3268 = vunpack.c.h.b16 %v2571
    %v3269 = vunpack.c.l.b16 %v2572
    %v3270 = vunpack.c.h.b16 %v2572
    %v3271 = vunpack.c.l.b16 %v2573
    %v3272 = vunpack.c.h.b16 %v2573
    %v3273 = vunpack.c.l.b16 %v2574
    %v3274 = vunpack.c.l.b16 %v2575
    %v3275 = vunpack.c.h.b16 %v2575
    %v3276 = vunpack.c.l.b16 %v2576
    %v3277 = vunpack.c.h.b16 %v2576
    %v3278 = vunpack.c.l.b16 %v2577
    %v3279 = vunpack.c.h.b16 %v2577
    %v3280 = vunpack.c.l.b16 %v2578
    %v3281 = vunpack.c.l.b16 %v2579
    %v3282 = vunpack.c.h.b16 %v2579
    %v3283 = vunpack.c.l.b16 %v2580
    %v3284 = vunpack.c.h.b16 %v2580
    %v3285 = vunpack.c.l.b16 %v2581
    %v3286 = vunpack.c.h.b16 %v2581
    %v3287 = vunpack.c.l.b16 %v2582
    %v3288 = vunpack.c.l.b16 %v2583
    %v3289 = vunpack.c.h.b16 %v2583
    %v3290 = vunpack.c.l.b16 %v2584
    %v3291 = vunpack.c.h.b16 %v2584
    %v3292 = vunpack.c.l.b16 %v2585
    %v3293 = vunpack.c.h.b16 %v2585
    %v3294 = vunpack.c.l.b16 %v2586
    %v3295 = vunpack.c.l.b16 %v2587
    %v3296 = vunpack.c.h.b16 %v2587
    %v3297 = vunpack.c.l.b16 %v2588
    %v3298 = vunpack.c.h.b16 %v2588
    %v3299 = vunpack.c.l.b16 %v2589
    %v3300 = vunpack.c.h.b16 %v2589
    %v3301 = vunpack.c.l.b16 %v2590
    %v3302 = vunpack.c.l.b16 %v2591
    %v3303 = vunpack.c.h.b16 %v2591
    %v3304 = vunpack.c.l.b16 %v2592
    %v3305 = vunpack.c.h.b16 %v2592
    %v3306 = vunpack.c.l.b16 %v2593
    %v3307 = vunpack.c.h.b16 %v2593
    %v3308 = vunpack.c.l.b16 %v2594
    %v3309 = vunpack.c.l.b16 %v2595
    %v3310 = vunpack.c.h.b16 %v2595
    %v3311 = vunpack.c.l.b16 %v2596
    %v3312 = vunpack.c.h.b16 %v2596
    %v3313 = vunpack.c.l.b16 %v2597
    %v3314 = vunpack.c.h.b16 %v2597
    %v3315 = vunpack.c.l.b16 %v2598
    %v3316 = vunpack.c.l.b16 %v2599
    %v3317 = vunpack.c.h.b16 %v2599
    %v3318 = vunpack.c.l.b16 %v2600
    %v3319 = vunpack.c.h.b16 %v2600
    %v3320 = vunpack.c.l.b16 %v2601
    %v3321 = vunpack.c.h.b16 %v2601
    %v3322 = vunpack.c.l.b16 %v2602
    %v3323 = vunpack.c.l.b16 %v2603
    %v3324 = vunpack.c.h.b16 %v2603
    %v3325 = vunpack.c.l.b16 %v2604
    %v3326 = vunpack.c.h.b16 %v2604
    %v3327 = vunpack.c.l.b16 %v2605
    %v3328 = vunpack.c.h.b16 %v2605
    %v3329 = vunpack.c.l.b16 %v2606
    %v3330 = vunpack.c.l.b16 %v2607
    %v3331 = vunpack.c.h.b16 %v2607
    %v3332 = vunpack.c.l.b16 %v2608
    %v3333 = vunpack.c.h.b16 %v2608
    %v3334 = vunpack.c.l.b16 %v2609
    %v3335 = vunpack.c.h.b16 %v2609
    %v3336 = vunpack.c.l.b16 %v2610
    %v3337 = vunpack.c.l.b16 %v2611
    %v3338 = vunpack.c.h.b16 %v2611
    %v3339 = vunpack.c.l.b16 %v2612
    %v3340 = vunpack.c.h.b16 %v2612
    %v3341 = vunpack.c.l.b16 %v2613
    %v3342 = vunpack.c.h.b16 %v2613
    %v3343 = vunpack.c.l.b16 %v2614
    %v3344 = vunpack.c.l.b16 %v2615
    %v3345 = vunpack.c.h.b16 %v2615
    %v3346 = vunpack.c.l.b16 %v2616
    %v3347 = vunpack.c.h.b16 %v2616
    %v3348 = vunpack.c.l.b16 %v2617
    %v3349 = vunpack.c.h.b16 %v2617
    %v3350 = vunpack.c.l.b16 %v2618
    %v3351 = vunpack.c.l.b16 %v2619
    %v3352 = vunpack.c.h.b16 %v2619
    %v3353 = vunpack.c.l.b16 %v2620
    %v3354 = vunpack.c.h.b16 %v2620
    %v3355 = vunpack.c.l.b16 %v2621
    %v3356 = vunpack.c.h.b16 %v2621
    %v3357 = vunpack.c.l.b16 %v2622
    %v3358 = vunpack.c.l.b16 %v2623
    %v3359 = vunpack.c.h.b16 %v2623
    %v3360 = vunpack.c.l.b16 %v2624
    %v3361 = vunpack.c.h.b16 %v2624
    %v3362 = vunpack.c.l.b16 %v2625
    %v3363 = vunpack.c.h.b16 %v2625
    %v3364 = vunpack.c.l.b16 %v2626
    %v3365 = vunpack.c.l.b16 %v2627
    %v3366 = vunpack.c.h.b16 %v2627
    %v3367 = vunpack.c.l.b16 %v2628
    %v3368 = vunpack.c.h.b16 %v2628
    %v3369 = vunpack.c.l.b16 %v2629
    %v3370 = vunpack.c.h.b16 %v2629
    %v3371 = vunpack.c.l.b16 %v2630
    %v3372 = vpack.c.b16 %v2931, %v2924
    %v3373 = vpack.c.b16 %v2932, %v2925
    %v3374 = vpack.c.b16 %v2933, %v2926
    %v3375 = vpack.c.b16 %v2934, %v2927
    %v3376 = vpack.c.b16 %v2935, %v2928
    %v3377 = vpack.c.b16 %v2936, %v2929
    %v3378 = vpack.c.b16 %v2937, %v2930
    %v3379 = vpack.c.b16 %v2945, %v2938
    %v3380 = vpack.c.b16 %v2946, %v2939
    %v3381 = vpack.c.b16 %v2947, %v2940
    %v3382 = vpack.c.b16 %v2948, %v2941
    %v3383 = vpack.c.b16 %v2949, %v2942
    %v3384 = vpack.c.b16 %v2950, %v2943
    %v3385 = vpack.c.b16 %v2951, %v2944
    %v3386 = vpack.c.b16 %v2959, %v2952
    %v3387 = vpack.c.b16 %v2960, %v2953
    %v3388 = vpack.c.b16 %v2961, %v2954
    %v3389 = vpack.c.b16 %v2962, %v2955
    %v3390 = vpack.c.b16 %v2963, %v2956
    %v3391 = vpack.c.b16 %v2964, %v2957
    %v3392 = vpack.c.b16 %v2965, %v2958
    %v3393 = vpack.c.b16 %v2973, %v2966
    %v3394 = vpack.c.b16 %v2974, %v2967
    %v3395 = vpack.c.b16 %v2975, %v2968
    %v3396 = vpack.c.b16 %v2976, %v2969
    %v3397 = vpack.c.b16 %v2977, %v2970
    %v3398 = vpack.c.b16 %v2978, %v2971
    %v3399 = vpack.c.b16 %v2979, %v2972
    %v3400 = vpack.c.b16 %v2987, %v2980
    %v3401 = vpack.c.b16 %v2988, %v2981
    %v3402 = vpack.c.b16 %v2989, %v2982
    %v3403 = vpack.c.b16 %v2990, %v2983
    %v3404 = vpack.c.b16 %v2991, %v2984
    %v3405 = vpack.c.b16 %v2992, %v2985
    %v3406 = vpack.c.b16 %v2993, %v2986
    %v3407 = vpack.c.b16 %v3001, %v2994
    %v3408 = vpack.c.b16 %v3002, %v2995
    %v3409 = vpack.c.b16 %v3003, %v2996
    %v3410 = vpack.c.b16 %v3004, %v2997
    %v3411 = vpack.c.b16 %v3005, %v2998
    %v3412 = vpack.c.b16 %v3006, %v2999
    %v3413 = vpack.c.b16 %v3007, %v3000
    %v3414 = vpack.c.b16 %v3015, %v3008
    %v3415 = vpack.c.b16 %v3016, %v3009
    %v3416 = vpack.c.b16 %v3017, %v3010
    %v3417 = vpack.c.b16 %v3018, %v3011
    %v3418 = vpack.c.b16 %v3019, %v3012
    %v3419 = vpack.c.b16 %v3020, %v3013
    %v3420 = vpack.c.b16 %v3021, %v3014
    %v3421 = vpack.c.b16 %v3029, %v3022
    %v3422 = vpack.c.b16 %v3030, %v3023
    %v3423 = vpack.c.b16 %v3031, %v3024
    %v3424 = vpack.c.b16 %v3032, %v3025
    %v3425 = vpack.c.b16 %v3033, %v3026
    %v3426 = vpack.c.b16 %v3034, %v3027
    %v3427 = vpack.c.b16 %v3035, %v3028
    %v3428 = vpack.c.b16 %v3043, %v3036
    %v3429 = vpack.c.b16 %v3044, %v3037
    %v3430 = vpack.c.b16 %v3045, %v3038
    %v3431 = vpack.c.b16 %v3046, %v3039
    %v3432 = vpack.c.b16 %v3047, %v3040
    %v3433 = vpack.c.b16 %v3048, %v3041
    %v3434 = vpack.c.b16 %v3049, %v3042
    %v3435 = vpack.c.b16 %v3057, %v3050
    %v3436 = vpack.c.b16 %v3058, %v3051
    %v3437 = vpack.c.b16 %v3059, %v3052
    %v3438 = vpack.c.b16 %v3060, %v3053
    %v3439 = vpack.c.b16 %v3061, %v3054
    %v3440 = vpack.c.b16 %v3062, %v3055
    %v3441 = vpack.c.b16 %v3063, %v3056
    %v3442 = vpack.c.b16 %v3071, %v3064
    %v3443 = vpack.c.b16 %v3072, %v3065
    %v3444 = vpack.c.b16 %v3073, %v3066
    %v3445 = vpack.c.b16 %v3074, %v3067
    %v3446 = vpack.c.b16 %v3075, %v3068
    %v3447 = vpack.c.b16 %v3076, %v3069
    %v3448 = vpack.c.b16 %v3077, %v3070
    %v3449 = vpack.c.b16 %v3085, %v3078
    %v3450 = vpack.c.b16 %v3086, %v3079
    %v3451 = vpack.c.b16 %v3087, %v3080
    %v3452 = vpack.c.b16 %v3088, %v3081
    %v3453 = vpack.c.b16 %v3089, %v3082
    %v3454 = vpack.c.b16 %v3090, %v3083
    %v3455 = vpack.c.b16 %v3091, %v3084
    %v3456 = vpack.c.b16 %v3099, %v3092
    %v3457 = vpack.c.b16 %v3100, %v3093
    %v3458 = vpack.c.b16 %v3101, %v3094
    %v3459 = vpack.c.b16 %v3102, %v3095
    %v3460 = vpack.c.b16 %v3103, %v3096
    %v3461 = vpack.c.b16 %v3104, %v3097
    %v3462 = vpack.c.b16 %v3105, %v3098
    %v3463 = vpack.c.b16 %v3113, %v3106
    %v3464 = vpack.c.b16 %v3114, %v3107
    %v3465 = vpack.c.b16 %v3115, %v3108
    %v3466 = vpack.c.b16 %v3116, %v3109
    %v3467 = vpack.c.b16 %v3117, %v3110
    %v3468 = vpack.c.b16 %v3118, %v3111
    %v3469 = vpack.c.b16 %v3119, %v3112
    %v3470 = vpack.c.b16 %v3127, %v3120
    %v3471 = vpack.c.b16 %v3128, %v3121
    %v3472 = vpack.c.b16 %v3129, %v3122
    %v3473 = vpack.c.b16 %v3130, %v3123
    %v3474 = vpack.c.b16 %v3131, %v3124
    %v3475 = vpack.c.b16 %v3132, %v3125
    %v3476 = vpack.c.b16 %v3133, %v3126
    %v3477 = vpack.c.b16 %v3141, %v3134
    %v3478 = vpack.c.b16 %v3142, %v3135
    %v3479 = vpack.c.b16 %v3143, %v3136
    %v3480 = vpack.c.b16 %v3144, %v3137
    %v3481 = vpack.c.b16 %v3145, %v3138
    %v3482 = vpack.c.b16 %v3146, %v3139
    %v3483 = vpack.c.b16 %v3147, %v3140
    %v3484 = vpack.c.b16 %v3155, %v3148
    %v3485 = vpack.c.b16 %v3156, %v3149
    %v3486 = vpack.c.b16 %v3157, %v3150
    %v3487 = vpack.c.b16 %v3158, %v3151
    %v3488 = vpack.c.b16 %v3159, %v3152
    %v3489 = vpack.c.b16 %v3160, %v3153
    %v3490 = vpack.c.b16 %v3161, %v3154
    %v3491 = vpack.c.b16 %v3169, %v3162
    %v3492 = vpack.c.b16 %v3170, %v3163
    %v3493 = vpack.c.b16 %v3171, %v3164
    %v3494 = vpack.c.b16 %v3172, %v3165
    %v3495 = vpack.c.b16 %v3173, %v3166
    %v3496 = vpack.c.b16 %v3174, %v3167
    %v3497 = vpack.c.b16 %v3175, %v3168
    %v3498 = vpack.c.b16 %v3183, %v3176
    %v3499 = vpack.c.b16 %v3184, %v3177
    %v3500 = vpack.c.b16 %v3185, %v3178
    %v3501 = vpack.c.b16 %v3186, %v3179
    %v3502 = vpack.c.b16 %v3187, %v3180
    %v3503 = vpack.c.b16 %v3188, %v3181
    %v3504 = vpack.c.b16 %v3189, %v3182
    %v3505 = vpack.c.b16 %v3197, %v3190
    %v3506 = vpack.c.b16 %v3198, %v3191
    %v3507 = vpack.c.b16 %v3199, %v3192
    %v3508 = vpack.c.b16 %v3200, %v3193
    %v3509 = vpack.c.b16 %v3201, %v3194
    %v3510 = vpack.c.b16 %v3202, %v3195
    %v3511 = vpack.c.b16 %v3203, %v3196
    %v3512 = vpack.c.b16 %v3211, %v3204
    %v3513 = vpack.c.b16 %v3212, %v3205
    %v3514 = vpack.c.b16 %v3213, %v3206
    %v3515 = vpack.c.b16 %v3214, %v3207
    %v3516 = vpack.c.b16 %v3215, %v3208
    %v3517 = vpack.c.b16 %v3216, %v3209
    %v3518 = vpack.c.b16 %v3217, %v3210
    %v3519 = vpack.c.b16 %v3225, %v3218
    %v3520 = vpack.c.b16 %v3226, %v3219
    %v3521 = vpack.c.b16 %v3227, %v3220
    %v3522 = vpack.c.b16 %v3228, %v3221
    %v3523 = vpack.c.b16 %v3229, %v3222
    %v3524 = vpack.c.b16 %v3230, %v3223
    %v3525 = vpack.c.b16 %v3231, %v3224
    %v3526 = vpack.c.b16 %v3239, %v3232
    %v3527 = vpack.c.b16 %v3240, %v3233
    %v3528 = vpack.c.b16 %v3241, %v3234
    %v3529 = vpack.c.b16 %v3242, %v3235
    %v3530 = vpack.c.b16 %v3243, %v3236
    %v3531 = vpack.c.b16 %v3244, %v3237
    %v3532 = vpack.c.b16 %v3245, %v3238
    %v3533 = vpack.c.b16 %v3253, %v3246
    %v3534 = vpack.c.b16 %v3254, %v3247
    %v3535 = vpack.c.b16 %v3255, %v3248
    %v3536 = vpack.c.b16 %v3256, %v3249
    %v3537 = vpack.c.b16 %v3257, %v3250
    %v3538 = vpack.c.b16 %v3258, %v3251
    %v3539 = vpack.c.b16 %v3259, %v3252
    %v3540 = vpack.c.b16 %v3267, %v3260
    %v3541 = vpack.c.b16 %v3268, %v3261
    %v3542 = vpack.c.b16 %v3269, %v3262
    %v3543 = vpack.c.b16 %v3270, %v3263
    %v3544 = vpack.c.b16 %v3271, %v3264
    %v3545 = vpack.c.b16 %v3272, %v3265
    %v3546 = vpack.c.b16 %v3273, %v3266
    %v3547 = vpack.c.b16 %v3281, %v3274
    %v3548 = vpack.c.b16 %v3282, %v3275
    %v3549 = vpack.c.b16 %v3283, %v3276
    %v3550 = vpack.c.b16 %v3284, %v3277
    %v3551 = vpack.c.b16 %v3285, %v3278
    %v3552 = vpack.c.b16 %v3286, %v3279
    %v3553 = vpack.c.b16 %v3287, %v3280
    %v3554 = vpack.c.b16 %v3295, %v3288
    %v3555 = vpack.c.b16 %v3296, %v3289
    %v3556 = vpack.c.b16 %v3297, %v3290
    %v3557 = vpack.c.b16 %v3298, %v3291
    %v3558 = vpack.c.b16 %v3299, %v3292
    %v3559 = vpack.c.b16 %v3300, %v3293
    %v3560 = vpack.c.b16 %v3301, %v3294
    %v3561 = vpack.c.b16 %v3309, %v3302
    %v3562 = vpack.c.b16 %v3310, %v3303
    %v3563 = vpack.c.b16 %v3311, %v3304
    %v3564 = vpack.c.b16 %v3312, %v3305
    %v3565 = vpack.c.b16 %v3313, %v3306
    %v3566 = vpack.c.b16 %v3314, %v3307
    %v3567 = vpack.c.b16 %v3315, %v3308
    %v3568 = vpack.c.b16 %v3323, %v3316
    %v3569 = vpack.c.b16 %v3324, %v3317
    %v3570 = vpack.c.b16 %v3325, %v3318
    %v3571 = vpack.c.b16 %v3326, %v3319
    %v3572 = vpack.c.b16 %v3327, %v3320
    %v3573 = vpack.c.b16 %v3328, %v3321
    %v3574 = vpack.c.b16 %v3329, %v3322
    %v3575 = vpack.c.b16 %v3337, %v3330
    %v3576 = vpack.c.b16 %v3338, %v3331
    %v3577 = vpack.c.b16 %v3339, %v3332
    %v3578 = vpack.c.b16 %v3340, %v3333
    %v3579 = vpack.c.b16 %v3341, %v3334
    %v3580 = vpack.c.b16 %v3342, %v3335
    %v3581 = vpack.c.b16 %v3343, %v3336
    %v3582 = vpack.c.b16 %v3351, %v3344
    %v3583 = vpack.c.b16 %v3352, %v3345
    %v3584 = vpack.c.b16 %v3353, %v3346
    %v3585 = vpack.c.b16 %v3354, %v3347
    %v3586 = vpack.c.b16 %v3355, %v3348
    %v3587 = vpack.c.b16 %v3356, %v3349
    %v3588 = vpack.c.b16 %v3357, %v3350
    %v3589 = vpack.c.b16 %v3365, %v3358
    %v3590 = vpack.c.b16 %v3366, %v3359
    %v3591 = vpack.c.b16 %v3367, %v3360
    %v3592 = vpack.c.b16 %v3368, %v3361
    %v3593 = vpack.c.b16 %v3369, %v3362
    %v3594 = vpack.c.b16 %v3370, %v3363
    %v3595 = vpack.c.b16 %v3371, %v3364
    %3820 = vmatprep.subr.bf16.mxu0 %v3373
    %3821 = vmatpush1.bf16.msra.mxu0 %v3372
    %3822 = vmatprep.subr.bf16.mxu0 %v3380
    %3823 = vmatpush1.bf16.msra.mxu0 %v3379
    %3824 = vmatprep.subr.bf16.mxu0 %v3387
    %3825 = vmatpush1.bf16.msra.mxu0 %v3386
    %3826 = vmatprep.subr.bf16.mxu0 %v3394
    %3827 = vmatpush1.bf16.msra.mxu0 %v3393
    %3828 = vmatprep.subr.bf16.mxu0 %v3401
    %3829 = vmatpush1.bf16.msra.mxu0 %v3400
    %3830 = vmatprep.subr.bf16.mxu0 %v3408
    %3831 = vmatpush1.bf16.msra.mxu0 %v3407
    %3832 = vmatprep.subr.bf16.mxu0 %v3415
    %3833 = vmatpush1.bf16.msra.mxu0 %v3414
    %3834 = vmatprep.subr.bf16.mxu0 %v3422
    %3835 = vmatpush1.bf16.msra.mxu0 %v3421
    %3836 = vmatprep.subr.bf16.mxu0 %v3429
    %3837 = vmatpush1.bf16.msra.mxu0 %v3428
    %3838 = vmatprep.subr.bf16.mxu0 %v3436
    %3839 = vmatpush1.bf16.msra.mxu0 %v3435
    %3840 = vmatprep.subr.bf16.mxu0 %v3443
    %3841 = vmatpush1.bf16.msra.mxu0 %v3442
    %3842 = vmatprep.subr.bf16.mxu0 %v3450
    %3843 = vmatpush1.bf16.msra.mxu0 %v3449
    %3844 = vmatprep.subr.bf16.mxu0 %v3457
    %3845 = vmatpush1.bf16.msra.mxu0 %v3456
    %3846 = vmatprep.subr.bf16.mxu0 %v3464
    %3847 = vmatpush1.bf16.msra.mxu0 %v3463
    %3848 = vmatprep.subr.bf16.mxu0 %v3471
    %3849 = vmatpush1.bf16.msra.mxu0 %v3470
    %3850 = vmatprep.subr.bf16.mxu0 %v3478
    %3851 = vmatpush1.bf16.msra.mxu0 %v3477
    %3852 = vmatprep.mubr.bf16.mxu0 %v2372
    %3853 = vmatmul.mubr.bf16.gmra.mrb[0].mxu0 %v2371
    %v3854 = vpop.f32.mrb[0].mxu0
    %v3855 = vadd.f32 %v2636, %v3854
    %v3856 = vpop.f32.mrb[0].mxu0
    %v3857 = vadd.f32 %v2640, %v3856
    %v3858 = vpop.f32.mrb[0].mxu0
    %v3859 = vadd.f32 %v2636, %v3858
    %v3860 = vpop.f32.mrb[0].mxu0
    %v3861 = vadd.f32 %v2640, %v3860
    %3862 = vdwg.mxu0
    %3863 = vmatprep.subr.bf16.mxu0 %v3485
    %3864 = vmatpush1.bf16.msra.mxu0 %v3484
    %3865 = vmatprep.subr.bf16.mxu0 %v3492
    %3866 = vmatpush1.bf16.msra.mxu0 %v3491
    %3867 = vmatprep.subr.bf16.mxu0 %v3499
    %3868 = vmatpush1.bf16.msra.mxu0 %v3498
    %3869 = vmatprep.subr.bf16.mxu0 %v3506
    %3870 = vmatpush1.bf16.msra.mxu0 %v3505
    %3871 = vmatprep.subr.bf16.mxu0 %v3513
    %3872 = vmatpush1.bf16.msra.mxu0 %v3512
    %3873 = vmatprep.subr.bf16.mxu0 %v3520
    %3874 = vmatpush1.bf16.msra.mxu0 %v3519
    %3875 = vmatprep.subr.bf16.mxu0 %v3527
    %3876 = vmatpush1.bf16.msra.mxu0 %v3526
    %3877 = vmatprep.subr.bf16.mxu0 %v3534
    %3878 = vmatpush1.bf16.msra.mxu0 %v3533
    %3879 = vmatprep.subr.bf16.mxu0 %v3541
    %3880 = vmatpush1.bf16.msra.mxu0 %v3540
    %3881 = vmatprep.subr.bf16.mxu0 %v3548
    %3882 = vmatpush1.bf16.msra.mxu0 %v3547
    %3883 = vmatprep.subr.bf16.mxu0 %v3555
    %3884 = vmatpush1.bf16.msra.mxu0 %v3554
    %3885 = vmatprep.subr.bf16.mxu0 %v3562
    %3886 = vmatpush1.bf16.msra.mxu0 %v3561
    %3887 = vmatprep.subr.bf16.mxu0 %v3569
    %3888 = vmatpush1.bf16.msra.mxu0 %v3568
    %3889 = vmatprep.subr.bf16.mxu0 %v3576
    %3890 = vmatpush1.bf16.msra.mxu0 %v3575
    %3891 = vmatprep.subr.bf16.mxu0 %v3583
    %3892 = vmatpush1.bf16.msra.mxu0 %v3582
    %3893 = vmatprep.subr.bf16.mxu0 %v3590
    %3894 = vmatpush1.bf16.msra.mxu0 %v3589
    %3895 = vmatprep.mubr.bf16.mxu0 %v2374
    %3896 = vmatmul.mubr.bf16.gmra.mrb[0].mxu0 %v2373
    %v3897 = vpop.f32.mrb[0].mxu0
    %v3898 = vadd.f32 %v3855, %v3897
    %v3899 = vpop.f32.mrb[0].mxu0
    %v3900 = vadd.f32 %v3857, %v3899
    %v3901 = vpop.f32.mrb[0].mxu0
    %v3902 = vadd.f32 %v3859, %v3901
    %v3903 = vpop.f32.mrb[0].mxu0
    %v3904 = vadd.f32 %v3861, %v3903
    %3905 = vdwg.mxu0
    %3906 = vmatprep.subr.bf16.mxu0 %v3375
    %3907 = vmatpush1.bf16.msra.mxu0 %v3374
    %3908 = vmatprep.subr.bf16.mxu0 %v3382
    %3909 = vmatpush1.bf16.msra.mxu0 %v3381
    %3910 = vmatprep.subr.bf16.mxu0 %v3389
    %3911 = vmatpush1.bf16.msra.mxu0 %v3388
    %3912 = vmatprep.subr.bf16.mxu0 %v3396
    %3913 = vmatpush1.bf16.msra.mxu0 %v3395
    %3914 = vmatprep.subr.bf16.mxu0 %v3403
    %3915 = vmatpush1.bf16.msra.mxu0 %v3402
    %3916 = vmatprep.subr.bf16.mxu0 %v3410
    %3917 = vmatpush1.bf16.msra.mxu0 %v3409
    %3918 = vmatprep.subr.bf16.mxu0 %v3417
    %3919 = vmatpush1.bf16.msra.mxu0 %v3416
    %3920 = vmatprep.subr.bf16.mxu0 %v3424
    %3921 = vmatpush1.bf16.msra.mxu0 %v3423
    %3922 = vmatprep.subr.bf16.mxu0 %v3431
    %3923 = vmatpush1.bf16.msra.mxu0 %v3430
    %3924 = vmatprep.subr.bf16.mxu0 %v3438
    %3925 = vmatpush1.bf16.msra.mxu0 %v3437
    %3926 = vmatprep.subr.bf16.mxu0 %v3445
    %3927 = vmatpush1.bf16.msra.mxu0 %v3444
    %3928 = vmatprep.subr.bf16.mxu0 %v3452
    %3929 = vmatpush1.bf16.msra.mxu0 %v3451
    %3930 = vmatprep.subr.bf16.mxu0 %v3459
    %3931 = vmatpush1.bf16.msra.mxu0 %v3458
    %3932 = vmatprep.subr.bf16.mxu0 %v3466
    %3933 = vmatpush1.bf16.msra.mxu0 %v3465
    %3934 = vmatprep.subr.bf16.mxu0 %v3473
    %3935 = vmatpush1.bf16.msra.mxu0 %v3472
    %3936 = vmatprep.subr.bf16.mxu0 %v3480
    %3937 = vmatpush1.bf16.msra.mxu0 %v3479
    %3938 = vmatprep.mubr.bf16.mxu0 %v2372
    %3939 = vmatmul.mubr.bf16.gmra.mrb[0].mxu0 %v2371
    %v3940 = vpop.f32.mrb[0].mxu0
    %v3941 = vadd.f32 %v2644, %v3940
    %v3942 = vpop.f32.mrb[0].mxu0
    %v3943 = vadd.f32 %v2648, %v3942
    %v3944 = vpop.f32.mrb[0].mxu0
    %v3945 = vadd.f32 %v2644, %v3944
    %v3946 = vpop.f32.mrb[0].mxu0
    %v3947 = vadd.f32 %v2648, %v3946
    %3948 = vdwg.mxu0
    %3949 = vmatprep.subr.bf16.mxu0 %v3487
    %3950 = vmatpush1.bf16.msra.mxu0 %v3486
    %3951 = vmatprep.subr.bf16.mxu0 %v3494
    %3952 = vmatpush1.bf16.msra.mxu0 %v3493
    %3953 = vmatprep.subr.bf16.mxu0 %v3501
    %3954 = vmatpush1.bf16.msra.mxu0 %v3500
    %3955 = vmatprep.subr.bf16.mxu0 %v3508
    %3956 = vmatpush1.bf16.msra.mxu0 %v3507
    %3957 = vmatprep.subr.bf16.mxu0 %v3515
    %3958 = vmatpush1.bf16.msra.mxu0 %v3514
    %3959 = vmatprep.subr.bf16.mxu0 %v3522
    %3960 = vmatpush1.bf16.msra.mxu0 %v3521
    %3961 = vmatprep.subr.bf16.mxu0 %v3529
    %3962 = vmatpush1.bf16.msra.mxu0 %v3528
    %3963 = vmatprep.subr.bf16.mxu0 %v3536
    %3964 = vmatpush1.bf16.msra.mxu0 %v3535
    %3965 = vmatprep.subr.bf16.mxu0 %v3543
    %3966 = vmatpush1.bf16.msra.mxu0 %v3542
    %3967 = vmatprep.subr.bf16.mxu0 %v3550
    %3968 = vmatpush1.bf16.msra.mxu0 %v3549
    %3969 = vmatprep.subr.bf16.mxu0 %v3557
    %3970 = vmatpush1.bf16.msra.mxu0 %v3556
    %3971 = vmatprep.subr.bf16.mxu0 %v3564
    %3972 = vmatpush1.bf16.msra.mxu0 %v3563
    %3973 = vmatprep.subr.bf16.mxu0 %v3571
    %3974 = vmatpush1.bf16.msra.mxu0 %v3570
    %3975 = vmatprep.subr.bf16.mxu0 %v3578
    %3976 = vmatpush1.bf16.msra.mxu0 %v3577
    %3977 = vmatprep.subr.bf16.mxu0 %v3585
    %3978 = vmatpush1.bf16.msra.mxu0 %v3584
    %3979 = vmatprep.subr.bf16.mxu0 %v3592
    %3980 = vmatpush1.bf16.msra.mxu0 %v3591
    %3981 = vmatprep.mubr.bf16.mxu0 %v2374
    %3982 = vmatmul.mubr.bf16.gmra.mrb[0].mxu0 %v2373
    %v3983 = vpop.f32.mrb[0].mxu0
    %v3984 = vadd.f32 %v3941, %v3983
    %v3985 = vpop.f32.mrb[0].mxu0
    %v3986 = vadd.f32 %v3943, %v3985
    %v3987 = vpop.f32.mrb[0].mxu0
    %v3988 = vadd.f32 %v3945, %v3987
    %v3989 = vpop.f32.mrb[0].mxu0
    %v3990 = vadd.f32 %v3947, %v3989
    %3991 = vdwg.mxu0
    %3992 = vmatprep.subr.bf16.mxu0 %v3377
    %3993 = vmatpush1.bf16.msra.mxu0 %v3376
    %3994 = vmatprep.subr.bf16.mxu0 %v3384
    %3995 = vmatpush1.bf16.msra.mxu0 %v3383
    %3996 = vmatprep.subr.bf16.mxu0 %v3391
    %3997 = vmatpush1.bf16.msra.mxu0 %v3390
    %3998 = vmatprep.subr.bf16.mxu0 %v3398
    %3999 = vmatpush1.bf16.msra.mxu0 %v3397
    %4000 = vmatprep.subr.bf16.mxu0 %v3405
    %4001 = vmatpush1.bf16.msra.mxu0 %v3404
    %4002 = vmatprep.subr.bf16.mxu0 %v3412
    %4003 = vmatpush1.bf16.msra.mxu0 %v3411
    %4004 = vmatprep.subr.bf16.mxu0 %v3419
    %4005 = vmatpush1.bf16.msra.mxu0 %v3418
    %4006 = vmatprep.subr.bf16.mxu0 %v3426
    %4007 = vmatpush1.bf16.msra.mxu0 %v3425
    %4008 = vmatprep.subr.bf16.mxu0 %v3433
    %4009 = vmatpush1.bf16.msra.mxu0 %v3432
    %4010 = vmatprep.subr.bf16.mxu0 %v3440
    %4011 = vmatpush1.bf16.msra.mxu0 %v3439
    %4012 = vmatprep.subr.bf16.mxu0 %v3447
    %4013 = vmatpush1.bf16.msra.mxu0 %v3446
    %4014 = vmatprep.subr.bf16.mxu0 %v3454
    %4015 = vmatpush1.bf16.msra.mxu0 %v3453
    %4016 = vmatprep.subr.bf16.mxu0 %v3461
    %4017 = vmatpush1.bf16.msra.mxu0 %v3460
    %4018 = vmatprep.subr.bf16.mxu0 %v3468
    %4019 = vmatpush1.bf16.msra.mxu0 %v3467
    %4020 = vmatprep.subr.bf16.mxu0 %v3475
    %4021 = vmatpush1.bf16.msra.mxu0 %v3474
    %4022 = vmatprep.subr.bf16.mxu0 %v3482
    %4023 = vmatpush1.bf16.msra.mxu0 %v3481
    %4024 = vmatprep.mubr.bf16.mxu0 %v2372
    %4025 = vmatmul.mubr.bf16.gmra.mrb[0].mxu0 %v2371
    %v4026 = vpop.f32.mrb[0].mxu0
    %v4027 = vadd.f32 %v2652, %v4026
    %v4028 = vpop.f32.mrb[0].mxu0
    %v4029 = vadd.f32 %v2656, %v4028
    %v4030 = vpop.f32.mrb[0].mxu0
    %v4031 = vadd.f32 %v2652, %v4030
    %v4032 = vpop.f32.mrb[0].mxu0
    %v4033 = vadd.f32 %v2656, %v4032
    %4034 = vdwg.mxu0
    %4035 = vmatprep.subr.bf16.mxu0 %v3489
    %4036 = vmatpush1.bf16.msra.mxu0 %v3488
    %4037 = vmatprep.subr.bf16.mxu0 %v3496
    %4038 = vmatpush1.bf16.msra.mxu0 %v3495
    %4039 = vmatprep.subr.bf16.mxu0 %v3503
    %4040 = vmatpush1.bf16.msra.mxu0 %v3502
    %4041 = vmatprep.subr.bf16.mxu0 %v3510
    %4042 = vmatpush1.bf16.msra.mxu0 %v3509
    %4043 = vmatprep.subr.bf16.mxu0 %v3517
    %4044 = vmatpush1.bf16.msra.mxu0 %v3516
    %4045 = vmatprep.subr.bf16.mxu0 %v3524
    %4046 = vmatpush1.bf16.msra.mxu0 %v3523
    %4047 = vmatprep.subr.bf16.mxu0 %v3531
    %4048 = vmatpush1.bf16.msra.mxu0 %v3530
    %4049 = vmatprep.subr.bf16.mxu0 %v3538
    %4050 = vmatpush1.bf16.msra.mxu0 %v3537
    %4051 = vmatprep.subr.bf16.mxu0 %v3545
    %4052 = vmatpush1.bf16.msra.mxu0 %v3544
    %4053 = vmatprep.subr.bf16.mxu0 %v3552
    %4054 = vmatpush1.bf16.msra.mxu0 %v3551
    %4055 = vmatprep.subr.bf16.mxu0 %v3559
    %4056 = vmatpush1.bf16.msra.mxu0 %v3558
    %4057 = vmatprep.subr.bf16.mxu0 %v3566
    %4058 = vmatpush1.bf16.msra.mxu0 %v3565
    %4059 = vmatprep.subr.bf16.mxu0 %v3573
    %4060 = vmatpush1.bf16.msra.mxu0 %v3572
    %4061 = vmatprep.subr.bf16.mxu0 %v3580
    %4062 = vmatpush1.bf16.msra.mxu0 %v3579
    %4063 = vmatprep.subr.bf16.mxu0 %v3587
    %4064 = vmatpush1.bf16.msra.mxu0 %v3586
    %4065 = vmatprep.subr.bf16.mxu0 %v3594
    %4066 = vmatpush1.bf16.msra.mxu0 %v3593
    %4067 = vmatprep.mubr.bf16.mxu0 %v2374
    %4068 = vmatmul.mubr.bf16.gmra.mrb[0].mxu0 %v2373
    %v4069 = vpop.f32.mrb[0].mxu0
    %v4070 = vadd.f32 %v4027, %v4069
    %v4071 = vpop.f32.mrb[0].mxu0
    %v4072 = vadd.f32 %v4029, %v4071
    %v4073 = vpop.f32.mrb[0].mxu0
    %v4074 = vadd.f32 %v4031, %v4073
    %v4075 = vpop.f32.mrb[0].mxu0
    %v4076 = vadd.f32 %v4033, %v4075
    %4077 = vdwg.mxu0
    %4078 = vmatprep.subr.bf16.mxu0 0
    %4079 = vmatpush1.bf16.msra.mxu0 %v3378
    %4080 = vmatprep.subr.bf16.mxu0 0
    %4081 = vmatpush1.bf16.msra.mxu0 %v3385
    %4082 = vmatprep.subr.bf16.mxu0 0
    %4083 = vmatpush1.bf16.msra.mxu0 %v3392
    %4084 = vmatprep.subr.bf16.mxu0 0
    %4085 = vmatpush1.bf16.msra.mxu0 %v3399
    %4086 = vmatprep.subr.bf16.mxu0 0
    %4087 = vmatpush1.bf16.msra.mxu0 %v3406
    %4088 = vmatprep.subr.bf16.mxu0 0
    %4089 = vmatpush1.bf16.msra.mxu0 %v3413
    %4090 = vmatprep.subr.bf16.mxu0 0
    %4091 = vmatpush1.bf16.msra.mxu0 %v3420
    %4092 = vmatprep.subr.bf16.mxu0 0
    %4093 = vmatpush1.bf16.msra.mxu0 %v3427
    %4094 = vmatprep.subr.bf16.mxu0 0
    %4095 = vmatpush1.bf16.msra.mxu0 %v3434
    %4096 = vmatprep.subr.bf16.mxu0 0
    %4097 = vmatpush1.bf16.msra.mxu0 %v3441
    %4098 = vmatprep.subr.bf16.mxu0 0
    %4099 = vmatpush1.bf16.msra.mxu0 %v3448
    %4100 = vmatprep.subr.bf16.mxu0 0
    %4101 = vmatpush1.bf16.msra.mxu0 %v3455
    %4102 = vmatprep.subr.bf16.mxu0 0
    %4103 = vmatpush1.bf16.msra.mxu0 %v3462
    %4104 = vmatprep.subr.bf16.mxu0 0
    %4105 = vmatpush1.bf16.msra.mxu0 %v3469
    %4106 = vmatprep.subr.bf16.mxu0 0
    %4107 = vmatpush1.bf16.msra.mxu0 %v3476
    %4108 = vmatprep.subr.bf16.mxu0 0
    %4109 = vmatpush1.bf16.msra.mxu0 %v3483
    %4110 = vmatprep.mubr.bf16.mxu0 %v2372
    %4111 = vmatmul.mubr.bf16.gmra.mrb[0].mxu0 %v2371
    %v4112 = vpop.f32.mrb[0].mxu0
    %v4113 = vadd.f32 %v2660, %v4112
    %v4114 = vpop.f32.mrb[0].mxu0
    %v4115 = vpop.f32.mrb[0].mxu0
    %v4116 = vadd.f32 %v2660, %v4115
    %v4117 = vpop.f32.mrb[0].mxu0
    %4118 = vdwg.mxu0
    %4119 = vmatprep.subr.bf16.mxu0 0
    %4120 = vmatpush1.bf16.msra.mxu0 %v3490
    %4121 = vmatprep.subr.bf16.mxu0 0
    %4122 = vmatpush1.bf16.msra.mxu0 %v3497
    %4123 = vmatprep.subr.bf16.mxu0 0
    %4124 = vmatpush1.bf16.msra.mxu0 %v3504
    %4125 = vmatprep.subr.bf16.mxu0 0
    %4126 = vmatpush1.bf16.msra.mxu0 %v3511
    %4127 = vmatprep.subr.bf16.mxu0 0
    %4128 = vmatpush1.bf16.msra.mxu0 %v3518
    %4129 = vmatprep.subr.bf16.mxu0 0
    %4130 = vmatpush1.bf16.msra.mxu0 %v3525
    %4131 = vmatprep.subr.bf16.mxu0 0
    %4132 = vmatpush1.bf16.msra.mxu0 %v3532
    %4133 = vmatprep.subr.bf16.mxu0 0
    %4134 = vmatpush1.bf16.msra.mxu0 %v3539
    %4135 = vmatprep.subr.bf16.mxu0 0
    %4136 = vmatpush1.bf16.msra.mxu0 %v3546
    %4137 = vmatprep.subr.bf16.mxu0 0
    %4138 = vmatpush1.bf16.msra.mxu0 %v3553
    %4139 = vmatprep.subr.bf16.mxu0 0
    %4140 = vmatpush1.bf16.msra.mxu0 %v3560
    %4141 = vmatprep.subr.bf16.mxu0 0
    %4142 = vmatpush1.bf16.msra.mxu0 %v3567
    %4143 = vmatprep.subr.bf16.mxu0 0
    %4144 = vmatpush1.bf16.msra.mxu0 %v3574
    %4145 = vmatprep.subr.bf16.mxu0 0
    %4146 = vmatpush1.bf16.msra.mxu0 %v3581
    %4147 = vmatprep.subr.bf16.mxu0 0
    %4148 = vmatpush1.bf16.msra.mxu0 %v3588
    %4149 = vmatprep.subr.bf16.mxu0 0
    %4150 = vmatpush1.bf16.msra.mxu0 %v3595
    %4151 = vmatprep.mubr.bf16.mxu0 %v2374
    %4152 = vmatmul.mubr.bf16.gmra.mrb[0].mxu0 %v2373
    %v4153 = vpop.f32.mrb[0].mxu0
    %v4154 = vadd.f32 %v4113, %v4153
    %v4155 = vpop.f32.mrb[0].mxu0
    %v4156 = vpop.f32.mrb[0].mxu0
    %v4157 = vadd.f32 %v4116, %v4156
    %v4158 = vpop.f32.mrb[0].mxu0
    %4159 = vdwg.mxu0
    %v4160 = vxor.u32 %v3898, 2147483648
    %v4161 = vxor.u32 %v3900, 2147483648
    %v4162 = vxor.u32 %v3984, 2147483648
    %v4163 = vxor.u32 %v3986, 2147483648
    %v4164 = vxor.u32 %v4070, 2147483648
    %v4165 = vxor.u32 %v4072, 2147483648
    %v4166 = vxor.u32 %v4154, 2147483648
    %v4167 = vxor.u32 %v3902, 2147483648
    %v4168 = vxor.u32 %v3904, 2147483648
    %v4169 = vxor.u32 %v3988, 2147483648
    %v4170 = vxor.u32 %v3990, 2147483648
    %v4171 = vxor.u32 %v4074, 2147483648
    %v4172 = vxor.u32 %v4076, 2147483648
    %v4173 = vxor.u32 %v4157, 2147483648
    %v4174 = vmul.f32 %v4160, 1.442695
    %v4175 = vpow.pop %v4174
    %v4176 = vmul.f32 %v4161, 1.442695
    %v4177 = vpow.pop %v4176
    %v4178 = vmul.f32 %v4162, 1.442695
    %v4179 = vpow.pop %v4178
    %v4180 = vmul.f32 %v4163, 1.442695
    %v4181 = vpow.pop %v4180
    %v4182 = vmul.f32 %v4164, 1.442695
    %v4183 = vpow.pop %v4182
    %v4184 = vmul.f32 %v4165, 1.442695
    %v4185 = vpow.pop %v4184
    %v4186 = vmul.f32 %v4166, 1.442695
    %v4187 = vpow.pop %v4186
    %v4188 = vmul.f32 %v4167, 1.442695
    %v4189 = vpow.pop %v4188
    %v4190 = vmul.f32 %v4168, 1.442695
    %v4191 = vpow.pop %v4190
    %v4192 = vmul.f32 %v4169, 1.442695
    %v4193 = vpow.pop %v4192
    %v4194 = vmul.f32 %v4170, 1.442695
    %v4195 = vpow.pop %v4194
    %v4196 = vmul.f32 %v4171, 1.442695
    %v4197 = vpow.pop %v4196
    %v4198 = vmul.f32 %v4172, 1.442695
    %v4199 = vpow.pop %v4198
    %v4200 = vmul.f32 %v4173, 1.442695
    %v4201 = vpow.pop %v4200
    %v4202 = vadd.f32 %v4175, 1.0
    %v4203 = vadd.f32 %v4177, 1.0
    %v4204 = vadd.f32 %v4179, 1.0
    %v4205 = vadd.f32 %v4181, 1.0
    %v4206 = vadd.f32 %v4183, 1.0
    %v4207 = vadd.f32 %v4185, 1.0
    %v4208 = vadd.f32 %v4187, 1.0
    %v4209 = vadd.f32 %v4189, 1.0
    %v4210 = vadd.f32 %v4191, 1.0
    %v4211 = vadd.f32 %v4193, 1.0
    %v4212 = vadd.f32 %v4195, 1.0
    %v4213 = vadd.f32 %v4197, 1.0
    %v4214 = vadd.f32 %v4199, 1.0
    %v4215 = vadd.f32 %v4201, 1.0
    %v4216 = vrcp.pop %v4202
    %v4217 = vmul.f32 1.0, %v4216
    %v4218 = vrcp.pop %v4203
    %v4219 = vmul.f32 1.0, %v4218
    %v4220 = vrcp.pop %v4204
    %v4221 = vmul.f32 1.0, %v4220
    %v4222 = vrcp.pop %v4205
    %v4223 = vmul.f32 1.0, %v4222
    %v4224 = vrcp.pop %v4206
    %v4225 = vmul.f32 1.0, %v4224
    %v4226 = vrcp.pop %v4207
    %v4227 = vmul.f32 1.0, %v4226
    %v4228 = vrcp.pop %v4208
    %v4229 = vmul.f32 1.0, %v4228
    %v4230 = vrcp.pop %v4209
    %v4231 = vmul.f32 1.0, %v4230
    %v4232 = vrcp.pop %v4210
    %v4233 = vmul.f32 1.0, %v4232
    %v4234 = vrcp.pop %v4211
    %v4235 = vmul.f32 1.0, %v4234
    %v4236 = vrcp.pop %v4212
    %v4237 = vmul.f32 1.0, %v4236
    %v4238 = vrcp.pop %v4213
    %v4239 = vmul.f32 1.0, %v4238
    %v4240 = vrcp.pop %v4214
    %v4241 = vmul.f32 1.0, %v4240
    %v4242 = vrcp.pop %v4215
    %v4243 = vmul.f32 1.0, %v4242
    %v4244 = vpack.c.bf16 %v4231, %v4217
    %v4245 = vpack.c.bf16 %v4233, %v4219
    %v4246 = vpack.c.bf16 %v4235, %v4221
    %v4247 = vpack.c.bf16 %v4237, %v4223
    %v4248 = vpack.c.bf16 %v4239, %v4225
    %v4249 = vpack.c.bf16 %v4241, %v4227
    %v4250 = vpack.c.bf16 %v4243, %v4229
    %v4258 = vunpack.c.l.b16 %v4244
    %v4259 = vunpack.c.l.b16 %v4245
    %v4260 = vunpack.c.l.b16 %v4246
    %v4261 = vunpack.c.l.b16 %v4247
    %v4262 = vunpack.c.l.b16 %v4248
    %v4263 = vunpack.c.l.b16 %v4249
    %v4264 = vunpack.c.l.b16 %v4250
    %v4265 = vunpack.c.h.b16 %v4244
    %v4266 = vunpack.c.h.b16 %v4245
    %v4267 = vunpack.c.h.b16 %v4246
    %v4268 = vunpack.c.h.b16 %v4247
    %v4269 = vunpack.c.h.b16 %v4248
    %v4270 = vunpack.c.h.b16 %v4249
    %v4271 = vunpack.c.h.b16 %v4250
    %v4272 = vpack.c.b16 %v4259, %v4258
    %v4273 = vpack.c.b16 %v4261, %v4260
    %v4274 = vpack.c.b16 %v4263, %v4262
    %v4275 = vpack.c.b16 %v4264, %v4264
    %v4276 = vpack.c.b16 %v4266, %v4265
    %v4277 = vpack.c.b16 %v4268, %v4267
    %v4278 = vpack.c.b16 %v4270, %v4269
    %v4279 = vpack.c.b16 %v4271, %v4271
    %4288 = vst [vmem:[#allocation13] sm:$0xff] %v4272
    %4289 = vst [vmem:[#allocation13 + $0x8] sm:$0xff] %v4273
    %4290 = vst [vmem:[#allocation13 + $0x10] sm:$0xff] %v4274
    %4291 = vst [vmem:[#allocation13 + $0x18] sm:$0xf] %v4275
    %4292 = vst [vmem:[#allocation13 + $0x1c] sm:$0xff] %v4276
    %4293 = vst [vmem:[#allocation13 + $0x24] sm:$0xff] %v4277
    %4294 = vst [vmem:[#allocation13 + $0x2c] sm:$0xff] %v4278
    %4295 = vst [vmem:[#allocation13 + $0x34] sm:$0xf] %v4279
    %4296 = vst [vmem:[#allocation14] sm:$0xff] %v2042
    %4297 = vst [vmem:[#allocation14 + $0x8] sm:$0xff] %v2045
    // Predicated region
    $region66: #{tpu_custom_call.1} parent=1 // pred_check
      _
    $region67: #{tpu_custom_call.1} parent=1 // pred_check_branch
      %4299 = sbr.rel (0) target = $region69
    $region68: #{tpu_custom_call.1} parent=1 // pred_region
      %s4301 = ssub.s32 896, 896
      %4302 = vsyncadd [#allocation4], %s4301
      %s4303 = sshll.u32 [#allocation13], 4
      %s4304 = int_to_ptr.vmem [resolvable:$true] %s4303
      %4309 = dma.vmem_to_hbm [thread:$0]  %s4304, 896, %s10, [#allocation4], 448, 448, 28
    $region69: #{tpu_custom_call.1} parent=1 // pred_fallthru
      _
    // Predicated region
    $region70: #{tpu_custom_call.1} parent=1 // pred_check
      _
    $region71: #{tpu_custom_call.1} parent=1 // pred_check_branch
      %4311 = sbr.rel (0) target = $region73
    $region72: #{tpu_custom_call.1} parent=1 // pred_region
      %s4313 = ssub.s32 256, 256
      %4314 = vsyncadd [#allocation15], %s4313
      %s4315 = sshll.u32 [#allocation14], 4
      %s4316 = int_to_ptr.vmem [resolvable:$true] %s4315
      %4321 = dma.vmem_to_hbm [thread:$0]  %s4316, 256, %s11, [#allocation15], 128, 128, 8
    $region73: #{tpu_custom_call.1} parent=1 // pred_fallthru
      _
    // Predicated region
    $region74: #{tpu_custom_call.1} parent=1 // pred_check
      _
    $region75: #{tpu_custom_call.1} parent=1 // pred_check_branch
      %4323 = sbr.rel (0) target = $region77
    $region76: #{tpu_custom_call.1} parent=1 // pred_region
      %4324 = dma.done [#allocation4], 896
    $region77: #{tpu_custom_call.1} parent=1 // pred_fallthru
      _
    // Predicated region
    $region78: #{tpu_custom_call.1} parent=1 // pred_check
      _
    $region79: #{tpu_custom_call.1} parent=1 // pred_check_branch
      %4326 = sbr.rel (0) target = $region81
    $region80: #{tpu_custom_call.1} parent=1 // pred_region
      %4327 = dma.done [#allocation15], 256
    $region81: #{tpu_custom_call.1} parent=1 // pred_fallthru
      _
    %4328 = vsyncpa [#allocation3], 1
    %4329 = vsyncpa [#allocation6], 1
    %4330 = vsyncpa [#allocation9], 1
    %4331 = vsyncpa [#allocation12], 1
    %4332 = vsyncpa [#allocation4], 1
    %4333 = vsyncpa [#allocation15], 1

</llo_original>
